<compile_context>
chip_gen: v7x
topology: tpu7x:2x2x1
jax: 0.10.0
libtpu: 0.0.40
codegen_flags: <defaults>
</compile_context>

<pallas_src>
import functools
import numpy as np
import jax
import jax.numpy as jnp
from jax.experimental import pallas as pl
from jax.experimental.pallas import tpu as pltpu

LN_EPS = 1e-5


# ---------------------------------------------------------------------------
# In-kernel helpers
# ---------------------------------------------------------------------------
def _layer_norm(x, gamma, beta, eps=LN_EPS):
    # x: (N, D); gamma/beta: (1, D)
    mu = jnp.mean(x, axis=-1, keepdims=True)
    var = jnp.mean((x - mu) ** 2, axis=-1, keepdims=True)
    return (x - mu) * jax.lax.rsqrt(var + eps) * gamma + beta


# ---------------------------------------------------------------------------
# Fused forward kernel: grid = (batch_tiles, num_layers)
# ---------------------------------------------------------------------------
def fused_transformer_kernel(nhead,
                             x_ref, win_ref, bin_ref, pe_ref,
                             wqkv_ref, wo_ref, w1_ref, w2_ref, vec_ref,
                             pooled_ref, h_ref):
    layer = pl.program_id(1)
    num_layers = pl.num_programs(1)

    TB, S, Fin = x_ref.shape            # batch tile, sequence, input features
    D = win_ref.shape[1]                # d_model
    F = w1_ref.shape[-1]                # dim_feedforward
    H = nhead
    hd = D // H                         # head dim
    N = TB * S
    scale = 1.0 / float(np.sqrt(hd))

    # ---- input projection + positional encoding (first layer step only) ----
    @pl.when(layer == 0)
    def _():
        x2 = x_ref[...].reshape(N, Fin)
        h0 = jnp.dot(x2.astype(jnp.bfloat16), win_ref[...],
                     preferred_element_type=jnp.float32) + bin_ref[...]
        h0 = h0.reshape(TB, S, D) + pe_ref[...][None, :, :]
        h_ref[...] = h0.reshape(N, D)

    # ---- encoder layer `layer` (post-norm, ReLU FFN, dropout=identity) ----
    xin = h_ref[...]                                          # (N, D) f32
    xb = xin.astype(jnp.bfloat16)

    # Packed per-layer small vectors (see init_params for row layout).
    vecs = vec_ref[...]                                       # (8, W) f32
    b_qkv = vecs[0:1, :3 * D]
    b_o = vecs[1:2, :D]
    ln1w = vecs[2:3, :D]
    ln1b = vecs[3:4, :D]
    b_1 = vecs[4:5, :F]
    b_2 = vecs[5:6, :D]
    ln2w = vecs[6:7, :D]
    ln2b = vecs[7:8, :D]

    # Fused QKV projection: one full-lane-width MXU matmul.
    qkv = jnp.dot(xb, wqkv_ref[...],
                  preferred_element_type=jnp.float32) + b_qkv  # (N, 3D) f32
    qkvb = qkv.astype(jnp.bfloat16)

    # Per-head scaled-dot-product attention (static unroll; einsums only —
    # all weight matmuls are full width outside this loop).
    ctx_heads = []
    for h in range(H):
        qh = qkvb[:, h * hd:(h + 1) * hd].reshape(TB, S, hd)
        kh = qkvb[:, D + h * hd:D + (h + 1) * hd].reshape(TB, S, hd)
        vh = qkvb[:, 2 * D + h * hd:2 * D + (h + 1) * hd].reshape(TB, S, hd)
        s = jnp.einsum('bqd,bkd->bqk', qh, kh,
                       preferred_element_type=jnp.float32) * scale  # (TB,S,S)
        s = s - jnp.max(s, axis=-1, keepdims=True)
        p = jnp.exp(s)
        p = p * pl.reciprocal(jnp.sum(p, axis=-1, keepdims=True), approx=True)
        ctx = jnp.einsum('bqk,bkd->bqd', p.astype(jnp.bfloat16), vh,
                         preferred_element_type=jnp.float32)        # (TB,S,hd)
        ctx_heads.append(ctx.reshape(N, hd))
    ctx_all = jnp.concatenate(ctx_heads, axis=-1)             # (N, D)

    # Single full-K output projection.
    attn = jnp.dot(ctx_all.astype(jnp.bfloat16), wo_ref[...],
                   preferred_element_type=jnp.float32) + b_o

    # residual + LayerNorm1
    x1 = _layer_norm(xin + attn, ln1w, ln1b)

    # feed-forward (ReLU)
    ff = jnp.dot(x1.astype(jnp.bfloat16), w1_ref[...],
                 preferred_element_type=jnp.float32) + b_1
    ff = jnp.maximum(ff, 0.0)
    ff = jnp.dot(ff.astype(jnp.bfloat16), w2_ref[...],
                 preferred_element_type=jnp.float32) + b_2

    # residual + LayerNorm2
    x2 = _layer_norm(x1 + ff, ln2w, ln2b)
    h_ref[...] = x2

    # ---- mean-pool over sequence (last layer step only); lane-dense (TB,D) --
    @pl.when(layer == num_layers - 1)
    def _():
        pooled_ref[...] = jnp.mean(x2.reshape(TB, S, D), axis=1, keepdims=True)


# ---------------------------------------------------------------------------
# Parameter construction (deterministic, synthetic; (in, out) weight layout)
# ---------------------------------------------------------------------------
def make_positional_encoding(max_len, d_model):
    assert d_model % 2 == 0, "sinusoidal PE assumes even d_model"
    pe = np.zeros((max_len, d_model), dtype=np.float32)
    position = np.arange(0, max_len, dtype=np.float32)[:, None]
    div_term = np.exp(np.arange(0, d_model, 2, dtype=np.float32)
                      * -(np.log(10000.0) / d_model))
    pe[:, 0::2] = np.sin(position * div_term)
    pe[:, 1::2] = np.cos(position * div_term)
    return jnp.asarray(pe)


def init_params(key, input_size, d_model, nhead, num_layers,
                dim_feedforward, output_size, max_seq_length):
    assert d_model % nhead == 0, "nhead must divide d_model"
    D, F = d_model, dim_feedforward
    W = max(3 * D, F)

    def dense(k, in_dim, out_dim, scale=0.02):
        # (in, out) layout: y = x @ w + b
        return scale * jax.random.normal(k, (in_dim, out_dim), dtype=jnp.float32)

    keys = jax.random.split(key, 2 + num_layers)
    params = {
        'w_in': dense(keys[0], input_size, D).astype(jnp.bfloat16),
        'b_in': jnp.zeros((1, D), jnp.float32),
        'pe': make_positional_encoding(max_seq_length, D),
    }

    wqkv, wo, w1, w2, vecs = [], [], [], [], []
    for l in range(num_layers):
        lk = jax.random.split(keys[2 + l], 4)
        # fused QKV: columns ordered [Q | K | V], heads contiguous inside each
        wqkv.append(dense(lk[0], D, 3 * D).astype(jnp.bfloat16))
        wo.append(dense(lk[1], D, D).astype(jnp.bfloat16))
        w1.append(dense(lk[2], D, F).astype(jnp.bfloat16))
        w2.append(dense(lk[3], F, D).astype(jnp.bfloat16))
        # packed small vectors, one (8, W) slab per layer; row layout:
        #  0: b_qkv(3D)  1: b_o(D)  2: ln1_w(D)  3: ln1_b(D)
        #  4: b1(F)      5: b2(D)   6: ln2_w(D)  7: ln2_b(D)
        v = np.zeros((8, W), np.float32)
        v[2, :D] = 1.0     # ln1 gamma
        v[6, :D] = 1.0     # ln2 gamma
        vecs.append(jnp.asarray(v))
    params['layers'] = {
        'wqkv': jnp.stack(wqkv), 'wo': jnp.stack(wo),
        'w1': jnp.stack(w1), 'w2': jnp.stack(w2), 'vecs': jnp.stack(vecs),
    }

    hk = jax.random.split(keys[1], 2)
    params['w_out1'] = dense(hk[0], D, D // 2)
    params['b_out1'] = jnp.zeros((1, D // 2), jnp.float32)
    params['w_out2'] = dense(hk[1], D // 2, output_size)
    params['b_out2'] = jnp.zeros((1, output_size), jnp.float32)
    return params


# ---------------------------------------------------------------------------
# Forward wrapper: one fused pallas_call + tiny XLA output head
# ---------------------------------------------------------------------------
def _vmem_limit_bytes():
    # ~85% of physical VMEM: raises the conservative default scoped limits on
    # v5e (16 MiB) / v6e (32 MiB), stays under v7x's 64 MiB per-TensorCore.
    try:
        cap = int(pltpu.get_tpu_info().vmem_capacity_bytes)
    except Exception:
        cap = 64 * 1024 * 1024
    return int(cap * 0.85)


def _auto_batch_tile(batch, seq, target_rows=256, max_rows=2048):
    """Smallest divisor of `batch` giving >= target MXU rows (TB*S), capped."""
    best = 1
    for tb in range(1, batch + 1):
        if batch % tb:
            continue
        if tb * seq <= max_rows or best == 1:
            best = tb
        if tb * seq >= target_rows:
            break
    return best


def _make_in_specs(TB, S, Fin, D, F, W, use_single_buffer):
    const2 = lambda b, l: (0, 0)
    lay3 = lambda b, l: (l, 0, 0)
    # Layer-invariant inputs: their block never changes along the (inner)
    # layer axis, so a single buffer suffices -> halves their VMEM footprint.
    kw = dict(pipeline_mode=pl.Buffered(1)) if use_single_buffer else {}
    return [
        pl.BlockSpec((TB, S, Fin), lambda b, l: (b, 0, 0), **kw),   # x
        pl.BlockSpec((Fin, D), const2, **kw),                       # w_in
        pl.BlockSpec((1, D), const2, **kw),                         # b_in
        pl.BlockSpec((S, D), const2, **kw),                         # pe
        pl.BlockSpec((None, D, 3 * D), lay3),                       # wqkv
        pl.BlockSpec((None, D, D), lay3),                           # wo
        pl.BlockSpec((None, D, F), lay3),                           # w1
        pl.BlockSpec((None, F, D), lay3),                           # w2
        pl.BlockSpec((None, 8, W), lay3),                           # packed vecs
    ]


def pallas_transformer_forward(x, params, nhead, *, batch_tile=None):
    B, S, Fin = x.shape
    D = params['w_in'].shape[1]
    lp = params['layers']
    L = lp['wqkv'].shape[0]
    F = lp['w1'].shape[-1]
    W = lp['vecs'].shape[-1]
    assert D % nhead == 0
    assert params['pe'].shape[0] >= S, "sequence longer than max_seq_length"

    TB = batch_tile if batch_tile is not None else _auto_batch_tile(B, S)
    assert B % TB == 0, "batch_tile must divide batch"

    pe = params['pe'][:S]

    def run(use_single_buffer):
        # NOTE: the layer axis MUST stay the innermost (last) grid axis — the
        # h_ref scratch carries activations across it and is rewritten at
        # layer==0 of each batch tile; pooled_ref is written at the last layer.
        return pl.pallas_call(
            functools.partial(fused_transformer_kernel, nhead),
            out_shape=jax.ShapeDtypeStruct((B, 1, D), jnp.float32),
            grid_spec=pltpu.PrefetchScalarGridSpec(
                num_scalar_prefetch=0,
                grid=(B // TB, L),
                in_specs=_make_in_specs(TB, S, Fin, D, F, W, use_single_buffer),
                out_specs=pl.BlockSpec((TB, 1, D), lambda b, l: (b, 0, 0)),
                scratch_shapes=[pltpu.VMEM((TB * S, D), jnp.float32)],
            ),
            compiler_params=pltpu.CompilerParams(
                dimension_semantics=("parallel", "arbitrary"),
                vmem_limit_bytes=_vmem_limit_bytes()),
        )(x, params['w_in'], params['b_in'], pe,
          lp['wqkv'], lp['wo'], lp['w1'], lp['w2'], lp['vecs'])

    try:
        pooled = run(True)
    except Exception:
        # Fallback if this Pallas version rejects pl.Buffered(1) (pure-VMEM
        # optimization; default double-buffering is functionally identical).
        pooled = run(False)

    # Tiny output MLP head on the pooled (B, D) slab — hoisted to plain XLA so
    # the Pallas output stays lane-dense (avoids 1-lane masked stores).
    pooled = pooled.reshape(B, D)
    z = jnp.maximum(pooled @ params['w_out1'] + params['b_out1'], 0.0)
    return z @ params['w_out2'] + params['b_out2']


# ---------------------------------------------------------------------------
if __name__ == "__main__":
    # Small, forward-consistent shapes.
    B, S = 2, 8
    input_size = 16
    d_model = 32
    nhead = 4
    num_layers = 2
    dim_feedforward = 64
    output_size = 1
    max_seq_length = 64

    key = jax.random.PRNGKey(0)
    pkey, xkey = jax.random.split(key)
    params = init_params(pkey, input_size, d_model, nhead, num_layers,
                         dim_feedforward, output_size, max_seq_length)
    x = jax.random.normal(xkey, (B, S, input_size), dtype=jnp.float32)

    out = pallas_transformer_forward(x, params, nhead)
    out = jax.block_until_ready(out)
    assert out.shape == (B, output_size), out.shape
    assert bool(jnp.all(jnp.isfinite(out)))
    print("KERNEL_OK")
</pallas_src>

<mosaic_0001>
module attributes {stable_mosaic.version = 11 : i64} {
  func.func @fused_transformer_kernel(%arg0: i32, %arg1: i32, %arg2: memref<2x8x16xf32, #tpu.memory_space<vmem>>, %arg3: memref<16x32xbf16, #tpu.memory_space<vmem>>, %arg4: memref<1x32xf32, #tpu.memory_space<vmem>>, %arg5: memref<8x32xf32, #tpu.memory_space<vmem>>, %arg6: memref<1x32x96xbf16, #tpu.memory_space<vmem>>, %arg7: memref<1x32x32xbf16, #tpu.memory_space<vmem>>, %arg8: memref<1x32x64xbf16, #tpu.memory_space<vmem>>, %arg9: memref<1x64x32xbf16, #tpu.memory_space<vmem>>, %arg10: memref<1x8x96xf32, #tpu.memory_space<vmem>>, %arg11: memref<2x1x32xf32, #tpu.memory_space<vmem>>, %arg12: memref<16x32xf32, #tpu.memory_space<vmem>>) attributes {dimension_semantics = [#tpu.dimension_semantics<parallel>, #tpu.dimension_semantics<arbitrary>], iteration_bounds = array<i64: 1, 2>, scalar_prefetch = 0 : i64, scratch_operands = 1 : i64, tpu.core_type = #tpu.core_type<tc>, window_params = [{pipeline_mode = #tpu.pipeline_mode<synchronous>, transform_indices = @transform_0, window_bounds = array<i64: 2, 8, 16>}, {pipeline_mode = #tpu.pipeline_mode<synchronous>, transform_indices = @transform_1, window_bounds = array<i64: 16, 32>}, {pipeline_mode = #tpu.pipeline_mode<synchronous>, transform_indices = @transform_2, window_bounds = array<i64: 1, 32>}, {pipeline_mode = #tpu.pipeline_mode<synchronous>, transform_indices = @transform_3, window_bounds = array<i64: 8, 32>}, {transform_indices = @transform_4, window_bounds = array<i64: 1, 32, 96>}, {transform_indices = @transform_5, window_bounds = array<i64: 1, 32, 32>}, {transform_indices = @transform_6, window_bounds = array<i64: 1, 32, 64>}, {transform_indices = @transform_7, window_bounds = array<i64: 1, 64, 32>}, {transform_indices = @transform_8, window_bounds = array<i64: 1, 8, 96>}, {transform_indices = @transform_9, window_bounds = array<i64: 2, 1, 32>}]} {
    %c0_i32 = arith.constant 0 : i32
    %0 = arith.cmpi eq, %arg1, %c0_i32 : i32
    %1 = arith.extui %0 : i1 to i32
    %c0_i32_0 = arith.constant 0 : i32
    %2 = arith.cmpi ne, %1, %c0_i32_0 : i32
    scf.if %2 {
      %c0_54 = arith.constant 0 : index
      %c0_55 = arith.constant 0 : index
      %c0_56 = arith.constant 0 : index
      %180 = vector.load %arg2[%c0_54, %c0_55, %c0_56] : memref<2x8x16xf32, #tpu.memory_space<vmem>>, vector<2x8x16xf32>
      %181 = vector.shape_cast %180 : vector<2x8x16xf32> to vector<16x16xf32>
      %182 = arith.truncf %181 : vector<16x16xf32> to vector<16x16xbf16>
      %c0_57 = arith.constant 0 : index
      %c0_58 = arith.constant 0 : index
      %183 = vector.load %arg3[%c0_57, %c0_58] : memref<16x32xbf16, #tpu.memory_space<vmem>>, vector<16x32xbf16>
      %cst_59 = arith.constant dense<0.000000e+00> : vector<16x32xf32>
      %184 = tpu.matmul %182, %183, %cst_59 {dimension_numbers = #tpu.dot_dimension_numbers<[1], [0], [0], [1], [0, 0, 1, 1], [], []>} : vector<16x16xbf16>, vector<16x32xbf16>, vector<16x32xf32> -> vector<16x32xf32>
      %c0_60 = arith.constant 0 : index
      %c0_61 = arith.constant 0 : index
      %185 = vector.load %arg4[%c0_60, %c0_61] : memref<1x32xf32, #tpu.memory_space<vmem>>, vector<1x32xf32>
      %186 = vector.broadcast %185 : vector<1x32xf32> to vector<16x32xf32>
      %187 = arith.addf %184, %186 : vector<16x32xf32>
      %188 = vector.shape_cast %187 : vector<16x32xf32> to vector<2x8x32xf32>
      %c0_62 = arith.constant 0 : index
      %c0_63 = arith.constant 0 : index
      %189 = vector.load %arg5[%c0_62, %c0_63] : memref<8x32xf32, #tpu.memory_space<vmem>>, vector<8x32xf32>
      %190 = vector.shape_cast %189 : vector<8x32xf32> to vector<1x8x32xf32>
      %191 = vector.broadcast %190 : vector<1x8x32xf32> to vector<2x8x32xf32>
      %192 = arith.addf %188, %191 : vector<2x8x32xf32>
      %193 = vector.shape_cast %192 : vector<2x8x32xf32> to vector<16x32xf32>
      %c0_64 = arith.constant 0 : index
      %c0_65 = arith.constant 0 : index
      %194 = vector.load %arg12[%c0_64, %c0_65] : memref<16x32xf32, #tpu.memory_space<vmem>>, vector<16x32xf32>
      tpu.vector_store %arg12[%c0_64, %c0_65], %193 {strides = array<i32>} : memref<16x32xf32, #tpu.memory_space<vmem>>, vector<16x32xf32>,
    } else {
    }
    %c0 = arith.constant 0 : index
    %c0_1 = arith.constant 0 : index
    %3 = vector.load %arg12[%c0, %c0_1] : memref<16x32xf32, #tpu.memory_space<vmem>>, vector<16x32xf32>
    %4 = arith.truncf %3 : vector<16x32xf32> to vector<16x32xbf16>
    %c0_2 = arith.constant 0 : index
    %c0_3 = arith.constant 0 : index
    %c0_4 = arith.constant 0 : index
    %5 = vector.load %arg10[%c0_2, %c0_3, %c0_4] : memref<1x8x96xf32, #tpu.memory_space<vmem>>, vector<1x8x96xf32>
    %6 = vector.shape_cast %5 : vector<1x8x96xf32> to vector<8x96xf32>
    %7 = vector.extract_strided_slice %6 {offsets = [0, 0], sizes = [1, 96], strides = [1, 1]} : vector<8x96xf32> to vector<1x96xf32>
    %8 = vector.extract_strided_slice %6 {offsets = [1, 0], sizes = [1, 32], strides = [1, 1]} : vector<8x96xf32> to vector<1x32xf32>
    %9 = vector.extract_strided_slice %6 {offsets = [2, 0], sizes = [1, 32], strides = [1, 1]} : vector<8x96xf32> to vector<1x32xf32>
    %10 = vector.extract_strided_slice %6 {offsets = [3, 0], sizes = [1, 32], strides = [1, 1]} : vector<8x96xf32> to vector<1x32xf32>
    %11 = vector.extract_strided_slice %6 {offsets = [4, 0], sizes = [1, 64], strides = [1, 1]} : vector<8x96xf32> to vector<1x64xf32>
    %12 = vector.extract_strided_slice %6 {offsets = [5, 0], sizes = [1, 32], strides = [1, 1]} : vector<8x96xf32> to vector<1x32xf32>
    %13 = vector.extract_strided_slice %6 {offsets = [6, 0], sizes = [1, 32], strides = [1, 1]} : vector<8x96xf32> to vector<1x32xf32>
    %14 = vector.extract_strided_slice %6 {offsets = [7, 0], sizes = [1, 32], strides = [1, 1]} : vector<8x96xf32> to vector<1x32xf32>
    %c0_5 = arith.constant 0 : index
    %c0_6 = arith.constant 0 : index
    %c0_7 = arith.constant 0 : index
    %15 = vector.load %arg6[%c0_5, %c0_6, %c0_7] : memref<1x32x96xbf16, #tpu.memory_space<vmem>>, vector<1x32x96xbf16>
    %16 = vector.shape_cast %15 : vector<1x32x96xbf16> to vector<32x96xbf16>
    %cst = arith.constant dense<0.000000e+00> : vector<16x96xf32>
    %17 = tpu.matmul %4, %16, %cst {dimension_numbers = #tpu.dot_dimension_numbers<[1], [0], [0], [1], [0, 0, 1, 1], [], []>} : vector<16x32xbf16>, vector<32x96xbf16>, vector<16x96xf32> -> vector<16x96xf32>
    %18 = vector.broadcast %7 : vector<1x96xf32> to vector<16x96xf32>
    %19 = arith.addf %17, %18 : vector<16x96xf32>
    %20 = arith.truncf %19 : vector<16x96xf32> to vector<16x96xbf16>
    %21 = vector.extract_strided_slice %20 {offsets = [0, 0], sizes = [16, 8], strides = [1, 1]} : vector<16x96xbf16> to vector<16x8xbf16>
    %22 = vector.shape_cast %21 : vector<16x8xbf16> to vector<2x8x8xbf16>
    %23 = vector.extract_strided_slice %20 {offsets = [0, 32], sizes = [16, 8], strides = [1, 1]} : vector<16x96xbf16> to vector<16x8xbf16>
    %24 = vector.shape_cast %23 : vector<16x8xbf16> to vector<2x8x8xbf16>
    %25 = vector.extract_strided_slice %20 {offsets = [0, 64], sizes = [16, 8], strides = [1, 1]} : vector<16x96xbf16> to vector<16x8xbf16>
    %26 = vector.shape_cast %25 : vector<16x8xbf16> to vector<2x8x8xbf16>
    "tpu.trace_start"() <{level = 10 : i32, message = "bqd,bkd->bqk"}> : () -> ()
    %cst_8 = arith.constant dense<0.000000e+00> : vector<2x8x8xf32>
    %27 = tpu.matmul %22, %24, %cst_8 {dimension_numbers = #tpu.dot_dimension_numbers<[2], [2], [1], [1], [0, 0, 0, 1, 1, 1], [0], [0]>} : vector<2x8x8xbf16>, vector<2x8x8xbf16>, vector<2x8x8xf32> -> vector<2x8x8xf32>
    "tpu.trace_stop"() : () -> ()
    %cst_9 = arith.constant 0.353553385 : f32
    %28 = vector.broadcast %cst_9 : f32 to vector<2x8x8xf32>
    %29 = arith.mulf %27, %28 : vector<2x8x8xf32>
    %cst_10 = arith.constant dense<0xFF800000> : vector<2x8xf32>
    %30 = vector.multi_reduction <maximumf>, %29, %cst_10 [2] : vector<2x8x8xf32> to vector<2x8xf32>
    %31 = vector.shape_cast %30 : vector<2x8xf32> to vector<2x8x1xf32>
    %32 = vector.broadcast %31 : vector<2x8x1xf32> to vector<2x8x8xf32>
    %33 = arith.subf %29, %32 : vector<2x8x8xf32>
    %34 = math.exp %33 : vector<2x8x8xf32>
    %cst_11 = arith.constant dense<0.000000e+00> : vector<2x8xf32>
    %35 = vector.multi_reduction <add>, %34, %cst_11 [2] : vector<2x8x8xf32> to vector<2x8xf32>
    %36 = vector.shape_cast %35 : vector<2x8xf32> to vector<2x8x1xf32>
    %37 = tpu.reciprocal %36 {approx = true} : vector<2x8x1xf32> -> vector<2x8x1xf32>
    %38 = vector.broadcast %37 : vector<2x8x1xf32> to vector<2x8x8xf32>
    %39 = arith.mulf %34, %38 : vector<2x8x8xf32>
    %40 = arith.truncf %39 : vector<2x8x8xf32> to vector<2x8x8xbf16>
    "tpu.trace_start"() <{level = 10 : i32, message = "bqk,bkd->bqd"}> : () -> ()
    %cst_12 = arith.constant dense<0.000000e+00> : vector<2x8x8xf32>
    %41 = tpu.matmul %40, %26, %cst_12 {dimension_numbers = #tpu.dot_dimension_numbers<[2], [1], [1], [2], [0, 0, 0, 1, 1, 2], [0], [0]>} : vector<2x8x8xbf16>, vector<2x8x8xbf16>, vector<2x8x8xf32> -> vector<2x8x8xf32>
    "tpu.trace_stop"() : () -> ()
    %42 = vector.shape_cast %41 : vector<2x8x8xf32> to vector<16x8xf32>
    %43 = vector.extract_strided_slice %20 {offsets = [0, 8], sizes = [16, 8], strides = [1, 1]} : vector<16x96xbf16> to vector<16x8xbf16>
    %44 = vector.shape_cast %43 : vector<16x8xbf16> to vector<2x8x8xbf16>
    %45 = vector.extract_strided_slice %20 {offsets = [0, 40], sizes = [16, 8], strides = [1, 1]} : vector<16x96xbf16> to vector<16x8xbf16>
    %46 = vector.shape_cast %45 : vector<16x8xbf16> to vector<2x8x8xbf16>
    %47 = vector.extract_strided_slice %20 {offsets = [0, 72], sizes = [16, 8], strides = [1, 1]} : vector<16x96xbf16> to vector<16x8xbf16>
    %48 = vector.shape_cast %47 : vector<16x8xbf16> to vector<2x8x8xbf16>
    "tpu.trace_start"() <{level = 10 : i32, message = "bqd,bkd->bqk"}> : () -> ()
    %cst_13 = arith.constant dense<0.000000e+00> : vector<2x8x8xf32>
    %49 = tpu.matmul %44, %46, %cst_13 {dimension_numbers = #tpu.dot_dimension_numbers<[2], [2], [1], [1], [0, 0, 0, 1, 1, 1], [0], [0]>} : vector<2x8x8xbf16>, vector<2x8x8xbf16>, vector<2x8x8xf32> -> vector<2x8x8xf32>
    "tpu.trace_stop"() : () -> ()
    %cst_14 = arith.constant 0.353553385 : f32
    %50 = vector.broadcast %cst_14 : f32 to vector<2x8x8xf32>
    %51 = arith.mulf %49, %50 : vector<2x8x8xf32>
    %cst_15 = arith.constant dense<0xFF800000> : vector<2x8xf32>
    %52 = vector.multi_reduction <maximumf>, %51, %cst_15 [2] : vector<2x8x8xf32> to vector<2x8xf32>
    %53 = vector.shape_cast %52 : vector<2x8xf32> to vector<2x8x1xf32>
    %54 = vector.broadcast %53 : vector<2x8x1xf32> to vector<2x8x8xf32>
    %55 = arith.subf %51, %54 : vector<2x8x8xf32>
    %56 = math.exp %55 : vector<2x8x8xf32>
    %cst_16 = arith.constant dense<0.000000e+00> : vector<2x8xf32>
    %57 = vector.multi_reduction <add>, %56, %cst_16 [2] : vector<2x8x8xf32> to vector<2x8xf32>
    %58 = vector.shape_cast %57 : vector<2x8xf32> to vector<2x8x1xf32>
    %59 = tpu.reciprocal %58 {approx = true} : vector<2x8x1xf32> -> vector<2x8x1xf32>
    %60 = vector.broadcast %59 : vector<2x8x1xf32> to vector<2x8x8xf32>
    %61 = arith.mulf %56, %60 : vector<2x8x8xf32>
    %62 = arith.truncf %61 : vector<2x8x8xf32> to vector<2x8x8xbf16>
    "tpu.trace_start"() <{level = 10 : i32, message = "bqk,bkd->bqd"}> : () -> ()
    %cst_17 = arith.constant dense<0.000000e+00> : vector<2x8x8xf32>
    %63 = tpu.matmul %62, %48, %cst_17 {dimension_numbers = #tpu.dot_dimension_numbers<[2], [1], [1], [2], [0, 0, 0, 1, 1, 2], [0], [0]>} : vector<2x8x8xbf16>, vector<2x8x8xbf16>, vector<2x8x8xf32> -> vector<2x8x8xf32>
    "tpu.trace_stop"() : () -> ()
    %64 = vector.shape_cast %63 : vector<2x8x8xf32> to vector<16x8xf32>
    %65 = vector.extract_strided_slice %20 {offsets = [0, 16], sizes = [16, 8], strides = [1, 1]} : vector<16x96xbf16> to vector<16x8xbf16>
    %66 = vector.shape_cast %65 : vector<16x8xbf16> to vector<2x8x8xbf16>
    %67 = vector.extract_strided_slice %20 {offsets = [0, 48], sizes = [16, 8], strides = [1, 1]} : vector<16x96xbf16> to vector<16x8xbf16>
    %68 = vector.shape_cast %67 : vector<16x8xbf16> to vector<2x8x8xbf16>
    %69 = vector.extract_strided_slice %20 {offsets = [0, 80], sizes = [16, 8], strides = [1, 1]} : vector<16x96xbf16> to vector<16x8xbf16>
    %70 = vector.shape_cast %69 : vector<16x8xbf16> to vector<2x8x8xbf16>
    "tpu.trace_start"() <{level = 10 : i32, message = "bqd,bkd->bqk"}> : () -> ()
    %cst_18 = arith.constant dense<0.000000e+00> : vector<2x8x8xf32>
    %71 = tpu.matmul %66, %68, %cst_18 {dimension_numbers = #tpu.dot_dimension_numbers<[2], [2], [1], [1], [0, 0, 0, 1, 1, 1], [0], [0]>} : vector<2x8x8xbf16>, vector<2x8x8xbf16>, vector<2x8x8xf32> -> vector<2x8x8xf32>
    "tpu.trace_stop"() : () -> ()
    %cst_19 = arith.constant 0.353553385 : f32
    %72 = vector.broadcast %cst_19 : f32 to vector<2x8x8xf32>
    %73 = arith.mulf %71, %72 : vector<2x8x8xf32>
    %cst_20 = arith.constant dense<0xFF800000> : vector<2x8xf32>
    %74 = vector.multi_reduction <maximumf>, %73, %cst_20 [2] : vector<2x8x8xf32> to vector<2x8xf32>
    %75 = vector.shape_cast %74 : vector<2x8xf32> to vector<2x8x1xf32>
    %76 = vector.broadcast %75 : vector<2x8x1xf32> to vector<2x8x8xf32>
    %77 = arith.subf %73, %76 : vector<2x8x8xf32>
    %78 = math.exp %77 : vector<2x8x8xf32>
    %cst_21 = arith.constant dense<0.000000e+00> : vector<2x8xf32>
    %79 = vector.multi_reduction <add>, %78, %cst_21 [2] : vector<2x8x8xf32> to vector<2x8xf32>
    %80 = vector.shape_cast %79 : vector<2x8xf32> to vector<2x8x1xf32>
    %81 = tpu.reciprocal %80 {approx = true} : vector<2x8x1xf32> -> vector<2x8x1xf32>
    %82 = vector.broadcast %81 : vector<2x8x1xf32> to vector<2x8x8xf32>
    %83 = arith.mulf %78, %82 : vector<2x8x8xf32>
    %84 = arith.truncf %83 : vector<2x8x8xf32> to vector<2x8x8xbf16>
    "tpu.trace_start"() <{level = 10 : i32, message = "bqk,bkd->bqd"}> : () -> ()
    %cst_22 = arith.constant dense<0.000000e+00> : vector<2x8x8xf32>
    %85 = tpu.matmul %84, %70, %cst_22 {dimension_numbers = #tpu.dot_dimension_numbers<[2], [1], [1], [2], [0, 0, 0, 1, 1, 2], [0], [0]>} : vector<2x8x8xbf16>, vector<2x8x8xbf16>, vector<2x8x8xf32> -> vector<2x8x8xf32>
    "tpu.trace_stop"() : () -> ()
    %86 = vector.shape_cast %85 : vector<2x8x8xf32> to vector<16x8xf32>
    %87 = vector.extract_strided_slice %20 {offsets = [0, 24], sizes = [16, 8], strides = [1, 1]} : vector<16x96xbf16> to vector<16x8xbf16>
    %88 = vector.shape_cast %87 : vector<16x8xbf16> to vector<2x8x8xbf16>
    %89 = vector.extract_strided_slice %20 {offsets = [0, 56], sizes = [16, 8], strides = [1, 1]} : vector<16x96xbf16> to vector<16x8xbf16>
    %90 = vector.shape_cast %89 : vector<16x8xbf16> to vector<2x8x8xbf16>
    %91 = vector.extract_strided_slice %20 {offsets = [0, 88], sizes = [16, 8], strides = [1, 1]} : vector<16x96xbf16> to vector<16x8xbf16>
    %92 = vector.shape_cast %91 : vector<16x8xbf16> to vector<2x8x8xbf16>
    "tpu.trace_start"() <{level = 10 : i32, message = "bqd,bkd->bqk"}> : () -> ()
    %cst_23 = arith.constant dense<0.000000e+00> : vector<2x8x8xf32>
    %93 = tpu.matmul %88, %90, %cst_23 {dimension_numbers = #tpu.dot_dimension_numbers<[2], [2], [1], [1], [0, 0, 0, 1, 1, 1], [0], [0]>} : vector<2x8x8xbf16>, vector<2x8x8xbf16>, vector<2x8x8xf32> -> vector<2x8x8xf32>
    "tpu.trace_stop"() : () -> ()
    %cst_24 = arith.constant 0.353553385 : f32
    %94 = vector.broadcast %cst_24 : f32 to vector<2x8x8xf32>
    %95 = arith.mulf %93, %94 : vector<2x8x8xf32>
    %cst_25 = arith.constant dense<0xFF800000> : vector<2x8xf32>
    %96 = vector.multi_reduction <maximumf>, %95, %cst_25 [2] : vector<2x8x8xf32> to vector<2x8xf32>
    %97 = vector.shape_cast %96 : vector<2x8xf32> to vector<2x8x1xf32>
    %98 = vector.broadcast %97 : vector<2x8x1xf32> to vector<2x8x8xf32>
    %99 = arith.subf %95, %98 : vector<2x8x8xf32>
    %100 = math.exp %99 : vector<2x8x8xf32>
    %cst_26 = arith.constant dense<0.000000e+00> : vector<2x8xf32>
    %101 = vector.multi_reduction <add>, %100, %cst_26 [2] : vector<2x8x8xf32> to vector<2x8xf32>
    %102 = vector.shape_cast %101 : vector<2x8xf32> to vector<2x8x1xf32>
    %103 = tpu.reciprocal %102 {approx = true} : vector<2x8x1xf32> -> vector<2x8x1xf32>
    %104 = vector.broadcast %103 : vector<2x8x1xf32> to vector<2x8x8xf32>
    %105 = arith.mulf %100, %104 : vector<2x8x8xf32>
    %106 = arith.truncf %105 : vector<2x8x8xf32> to vector<2x8x8xbf16>
    "tpu.trace_start"() <{level = 10 : i32, message = "bqk,bkd->bqd"}> : () -> ()
    %cst_27 = arith.constant dense<0.000000e+00> : vector<2x8x8xf32>
    %107 = tpu.matmul %106, %92, %cst_27 {dimension_numbers = #tpu.dot_dimension_numbers<[2], [1], [1], [2], [0, 0, 0, 1, 1, 2], [0], [0]>} : vector<2x8x8xbf16>, vector<2x8x8xbf16>, vector<2x8x8xf32> -> vector<2x8x8xf32>
    "tpu.trace_stop"() : () -> ()
    %108 = vector.shape_cast %107 : vector<2x8x8xf32> to vector<16x8xf32>
    %109 = tpu.concatenate %42, %64, %86, %108 in 1 : vector<16x8xf32>, vector<16x8xf32>, vector<16x8xf32>, vector<16x8xf32> -> vector<16x32xf32>
    %110 = arith.truncf %109 : vector<16x32xf32> to vector<16x32xbf16>
    %c0_28 = arith.constant 0 : index
    %c0_29 = arith.constant 0 : index
    %c0_30 = arith.constant 0 : index
    %111 = vector.load %arg7[%c0_28, %c0_29, %c0_30] : memref<1x32x32xbf16, #tpu.memory_space<vmem>>, vector<1x32x32xbf16>
    %112 = vector.shape_cast %111 : vector<1x32x32xbf16> to vector<32x32xbf16>
    %cst_31 = arith.constant dense<0.000000e+00> : vector<16x32xf32>
    %113 = tpu.matmul %110, %112, %cst_31 {dimension_numbers = #tpu.dot_dimension_numbers<[1], [0], [0], [1], [0, 0, 1, 1], [], []>} : vector<16x32xbf16>, vector<32x32xbf16>, vector<16x32xf32> -> vector<16x32xf32>
    %114 = vector.broadcast %8 : vector<1x32xf32> to vector<16x32xf32>
    %115 = arith.addf %113, %114 : vector<16x32xf32>
    %116 = arith.addf %3, %115 : vector<16x32xf32>
    %cst_32 = arith.constant dense<0.000000e+00> : vector<16xf32>
    %117 = vector.multi_reduction <add>, %116, %cst_32 [1] : vector<16x32xf32> to vector<16xf32>
    %118 = vector.shape_cast %117 : vector<16xf32> to vector<16x1xf32>
    %cst_33 = arith.constant 3.200000e+01 : f32
    %119 = vector.broadcast %cst_33 : f32 to vector<16x1xf32>
    %120 = arith.divf %118, %119 : vector<16x1xf32>
    %121 = vector.broadcast %120 : vector<16x1xf32> to vector<16x32xf32>
    %122 = arith.subf %116, %121 : vector<16x32xf32>
    %123 = arith.mulf %122, %122 : vector<16x32xf32>
    %cst_34 = arith.constant dense<0.000000e+00> : vector<16xf32>
    %124 = vector.multi_reduction <add>, %123, %cst_34 [1] : vector<16x32xf32> to vector<16xf32>
    %125 = vector.shape_cast %124 : vector<16xf32> to vector<16x1xf32>
    %cst_35 = arith.constant 3.200000e+01 : f32
    %126 = vector.broadcast %cst_35 : f32 to vector<16x1xf32>
    %127 = arith.divf %125, %126 : vector<16x1xf32>
    %128 = vector.broadcast %120 : vector<16x1xf32> to vector<16x32xf32>
    %129 = arith.subf %116, %128 : vector<16x32xf32>
    %cst_36 = arith.constant 9.99999974E-6 : f32
    %130 = vector.broadcast %cst_36 : f32 to vector<16x1xf32>
    %131 = arith.addf %127, %130 : vector<16x1xf32>
    %132 = math.rsqrt %131 : vector<16x1xf32>
    %133 = vector.broadcast %132 : vector<16x1xf32> to vector<16x32xf32>
    %134 = arith.mulf %129, %133 : vector<16x32xf32>
    %135 = vector.broadcast %9 : vector<1x32xf32> to vector<16x32xf32>
    %136 = arith.mulf %134, %135 : vector<16x32xf32>
    %137 = vector.broadcast %10 : vector<1x32xf32> to vector<16x32xf32>
    %138 = arith.addf %136, %137 : vector<16x32xf32>
    %139 = arith.truncf %138 : vector<16x32xf32> to vector<16x32xbf16>
    %c0_37 = arith.constant 0 : index
    %c0_38 = arith.constant 0 : index
    %c0_39 = arith.constant 0 : index
    %140 = vector.load %arg8[%c0_37, %c0_38, %c0_39] : memref<1x32x64xbf16, #tpu.memory_space<vmem>>, vector<1x32x64xbf16>
    %141 = vector.shape_cast %140 : vector<1x32x64xbf16> to vector<32x64xbf16>
    %cst_40 = arith.constant dense<0.000000e+00> : vector<16x64xf32>
    %142 = tpu.matmul %139, %141, %cst_40 {dimension_numbers = #tpu.dot_dimension_numbers<[1], [0], [0], [1], [0, 0, 1, 1], [], []>} : vector<16x32xbf16>, vector<32x64xbf16>, vector<16x64xf32> -> vector<16x64xf32>
    %143 = vector.broadcast %11 : vector<1x64xf32> to vector<16x64xf32>
    %144 = arith.addf %142, %143 : vector<16x64xf32>
    %cst_41 = arith.constant 0.000000e+00 : f32
    %145 = vector.broadcast %cst_41 : f32 to vector<16x64xf32>
    %146 = arith.maximumf %144, %145 : vector<16x64xf32>
    %147 = arith.truncf %146 : vector<16x64xf32> to vector<16x64xbf16>
    %c0_42 = arith.constant 0 : index
    %c0_43 = arith.constant 0 : index
    %c0_44 = arith.constant 0 : index
    %148 = vector.load %arg9[%c0_42, %c0_43, %c0_44] : memref<1x64x32xbf16, #tpu.memory_space<vmem>>, vector<1x64x32xbf16>
    %149 = vector.shape_cast %148 : vector<1x64x32xbf16> to vector<64x32xbf16>
    %cst_45 = arith.constant dense<0.000000e+00> : vector<16x32xf32>
    %150 = tpu.matmul %147, %149, %cst_45 {dimension_numbers = #tpu.dot_dimension_numbers<[1], [0], [0], [1], [0, 0, 1, 1], [], []>} : vector<16x64xbf16>, vector<64x32xbf16>, vector<16x32xf32> -> vector<16x32xf32>
    %151 = vector.broadcast %12 : vector<1x32xf32> to vector<16x32xf32>
    %152 = arith.addf %150, %151 : vector<16x32xf32>
    %153 = arith.addf %138, %152 : vector<16x32xf32>
    %cst_46 = arith.constant dense<0.000000e+00> : vector<16xf32>
    %154 = vector.multi_reduction <add>, %153, %cst_46 [1] : vector<16x32xf32> to vector<16xf32>
    %155 = vector.shape_cast %154 : vector<16xf32> to vector<16x1xf32>
    %cst_47 = arith.constant 3.200000e+01 : f32
    %156 = vector.broadcast %cst_47 : f32 to vector<16x1xf32>
    %157 = arith.divf %155, %156 : vector<16x1xf32>
    %158 = vector.broadcast %157 : vector<16x1xf32> to vector<16x32xf32>
    %159 = arith.subf %153, %158 : vector<16x32xf32>
    %160 = arith.mulf %159, %159 : vector<16x32xf32>
    %cst_48 = arith.constant dense<0.000000e+00> : vector<16xf32>
    %161 = vector.multi_reduction <add>, %160, %cst_48 [1] : vector<16x32xf32> to vector<16xf32>
    %162 = vector.shape_cast %161 : vector<16xf32> to vector<16x1xf32>
    %cst_49 = arith.constant 3.200000e+01 : f32
    %163 = vector.broadcast %cst_49 : f32 to vector<16x1xf32>
    %164 = arith.divf %162, %163 : vector<16x1xf32>
    %165 = vector.broadcast %157 : vector<16x1xf32> to vector<16x32xf32>
    %166 = arith.subf %153, %165 : vector<16x32xf32>
    %cst_50 = arith.constant 9.99999974E-6 : f32
    %167 = vector.broadcast %cst_50 : f32 to vector<16x1xf32>
    %168 = arith.addf %164, %167 : vector<16x1xf32>
    %169 = math.rsqrt %168 : vector<16x1xf32>
    %170 = vector.broadcast %169 : vector<16x1xf32> to vector<16x32xf32>
    %171 = arith.mulf %166, %170 : vector<16x32xf32>
    %172 = vector.broadcast %13 : vector<1x32xf32> to vector<16x32xf32>
    %173 = arith.mulf %171, %172 : vector<16x32xf32>
    %174 = vector.broadcast %14 : vector<1x32xf32> to vector<16x32xf32>
    %175 = arith.addf %173, %174 : vector<16x32xf32>
    %c0_51 = arith.constant 0 : index
    %c0_52 = arith.constant 0 : index
    %176 = vector.load %arg12[%c0_51, %c0_52] : memref<16x32xf32, #tpu.memory_space<vmem>>, vector<16x32xf32>
    tpu.vector_store %arg12[%c0_51, %c0_52], %175 {strides = array<i32>} : memref<16x32xf32, #tpu.memory_space<vmem>>, vector<16x32xf32>,
    %c1_i32 = arith.constant 1 : i32
    %177 = arith.cmpi eq, %arg1, %c1_i32 : i32
    %178 = arith.extui %177 : i1 to i32
    %c0_i32_53 = arith.constant 0 : i32
    %179 = arith.cmpi ne, %178, %c0_i32_53 : i32
    scf.if %179 {
      %180 = vector.shape_cast %175 : vector<16x32xf32> to vector<2x8x32xf32>
      %cst_54 = arith.constant dense<0.000000e+00> : vector<2x32xf32>
      %181 = vector.multi_reduction <add>, %180, %cst_54 [1] : vector<2x8x32xf32> to vector<2x32xf32>
      %182 = vector.shape_cast %181 : vector<2x32xf32> to vector<2x1x32xf32>
      %cst_55 = arith.constant 8.000000e+00 : f32
      %183 = vector.broadcast %cst_55 : f32 to vector<2x1x32xf32>
      %184 = arith.divf %182, %183 : vector<2x1x32xf32>
      %c0_56 = arith.constant 0 : index
      %c0_57 = arith.constant 0 : index
      %c0_58 = arith.constant 0 : index
      %185 = vector.load %arg11[%c0_56, %c0_57, %c0_58] : memref<2x1x32xf32, #tpu.memory_space<vmem>>, vector<2x1x32xf32>
      tpu.vector_store %arg11[%c0_56, %c0_57, %c0_58], %184 {strides = array<i32>} : memref<2x1x32xf32, #tpu.memory_space<vmem>>, vector<2x1x32xf32>,
    } else {
    }
    return
  }
  func.func @transform_0(%arg0: i32, %arg1: i32) -> (i32, i32, i32) {
    %c0_i32 = arith.constant 0 : i32
    %c0_i32_0 = arith.constant 0 : i32
    %c0_i32_1 = arith.constant 0 : i32
    return %arg0, %c0_i32, %c0_i32_0 : i32, i32, i32
  }
  func.func @transform_1(%arg0: i32, %arg1: i32) -> (i32, i32) {
    %c0_i32 = arith.constant 0 : i32
    %c0_i32_0 = arith.constant 0 : i32
    %c0_i32_1 = arith.constant 0 : i32
    return %c0_i32, %c0_i32_0 : i32, i32
  }
  func.func @transform_2(%arg0: i32, %arg1: i32) -> (i32, i32) {
    %c0_i32 = arith.constant 0 : i32
    %c0_i32_0 = arith.constant 0 : i32
    %c0_i32_1 = arith.constant 0 : i32
    return %c0_i32, %c0_i32_0 : i32, i32
  }
  func.func @transform_3(%arg0: i32, %arg1: i32) -> (i32, i32) {
    %c0_i32 = arith.constant 0 : i32
    %c0_i32_0 = arith.constant 0 : i32
    %c0_i32_1 = arith.constant 0 : i32
    return %c0_i32, %c0_i32_0 : i32, i32
  }
  func.func @transform_4(%arg0: i32, %arg1: i32) -> (i32, i32, i32) {
    %c0_i32 = arith.constant 0 : i32
    %c0_i32_0 = arith.constant 0 : i32
    %c0_i32_1 = arith.constant 0 : i32
    return %arg1, %c0_i32, %c0_i32_0 : i32, i32, i32
  }
  func.func @transform_5(%arg0: i32, %arg1: i32) -> (i32, i32, i32) {
    %c0_i32 = arith.constant 0 : i32
    %c0_i32_0 = arith.constant 0 : i32
    %c0_i32_1 = arith.constant 0 : i32
    return %arg1, %c0_i32, %c0_i32_0 : i32, i32, i32
  }
  func.func @transform_6(%arg0: i32, %arg1: i32) -> (i32, i32, i32) {
    %c0_i32 = arith.constant 0 : i32
    %c0_i32_0 = arith.constant 0 : i32
    %c0_i32_1 = arith.constant 0 : i32
    return %arg1, %c0_i32, %c0_i32_0 : i32, i32, i32
  }
  func.func @transform_7(%arg0: i32, %arg1: i32) -> (i32, i32, i32) {
    %c0_i32 = arith.constant 0 : i32
    %c0_i32_0 = arith.constant 0 : i32
    %c0_i32_1 = arith.constant 0 : i32
    return %arg1, %c0_i32, %c0_i32_0 : i32, i32, i32
  }
  func.func @transform_8(%arg0: i32, %arg1: i32) -> (i32, i32, i32) {
    %c0_i32 = arith.constant 0 : i32
    %c0_i32_0 = arith.constant 0 : i32
    %c0_i32_1 = arith.constant 0 : i32
    return %arg1, %c0_i32, %c0_i32_0 : i32, i32, i32
  }
  func.func @transform_9(%arg0: i32, %arg1: i32) -> (i32, i32, i32) {
    %c0_i32 = arith.constant 0 : i32
    %c0_i32_0 = arith.constant 0 : i32
    %c0_i32_1 = arith.constant 0 : i32
    return %arg0, %c0_i32, %c0_i32_0 : i32, i32, i32
  }
}

module attributes {stable_mosaic.version = 11 : i64} {
  func.func @fused_transformer_kernel(%arg0: i32, %arg1: i32, %arg2: memref<2x8x16xf32, #tpu.memory_space<vmem>>, %arg3: memref<16x32xbf16, #tpu.memory_space<vmem>>, %arg4: memref<1x32xf32, #tpu.memory_space<vmem>>, %arg5: memref<8x32xf32, #tpu.memory_space<vmem>>, %arg6: memref<1x32x96xbf16, #tpu.memory_space<vmem>>, %arg7: memref<1x32x32xbf16, #tpu.memory_space<vmem>>, %arg8: memref<1x32x64xbf16, #tpu.memory_space<vmem>>, %arg9: memref<1x64x32xbf16, #tpu.memory_space<vmem>>, %arg10: memref<1x8x96xf32, #tpu.memory_space<vmem>>, %arg11: memref<2x1x32xf32, #tpu.memory_space<vmem>>, %arg12: memref<16x32xf32, #tpu.memory_space<vmem>>) attributes {dimension_semantics = [#tpu.dimension_semantics<parallel>, #tpu.dimension_semantics<arbitrary>], iteration_bounds = array<i64: 1, 2>, scalar_prefetch = 0 : i64, scratch_operands = 1 : i64, tpu.core_type = #tpu.core_type<tc>, window_params = [{transform_indices = @transform_0, window_bounds = array<i64: 2, 8, 16>}, {pipeline_mode = #tpu.pipeline_mode<synchronous>, transform_indices = @transform_1, window_bounds = array<i64: 16, 32>}, {pipeline_mode = #tpu.pipeline_mode<synchronous>, transform_indices = @transform_2, window_bounds = array<i64: 1, 32>}, {pipeline_mode = #tpu.pipeline_mode<synchronous>, transform_indices = @transform_3, window_bounds = array<i64: 8, 32>}, {transform_indices = @transform_4, window_bounds = array<i64: 1, 32, 96>}, {transform_indices = @transform_5, window_bounds = array<i64: 1, 32, 32>}, {transform_indices = @transform_6, window_bounds = array<i64: 1, 32, 64>}, {transform_indices = @transform_7, window_bounds = array<i64: 1, 64, 32>}, {transform_indices = @transform_8, window_bounds = array<i64: 1, 8, 96>}, {transform_indices = @transform_9, window_bounds = array<i64: 2, 1, 32>}]} {
    %c0_i32 = arith.constant 0 : i32
    %0 = arith.cmpi eq, %arg1, %c0_i32 : i32
    %1 = arith.extui %0 : i1 to i32
    %c0_i32_0 = arith.constant 0 : i32
    %2 = arith.cmpi ne, %1, %c0_i32_0 : i32
    scf.if %2 {
      %c0_54 = arith.constant 0 : index
      %c0_55 = arith.constant 0 : index
      %c0_56 = arith.constant 0 : index
      %180 = vector.load %arg2[%c0_54, %c0_55, %c0_56] : memref<2x8x16xf32, #tpu.memory_space<vmem>>, vector<2x8x16xf32>
      %181 = vector.shape_cast %180 : vector<2x8x16xf32> to vector<16x16xf32>
      %182 = arith.truncf %181 : vector<16x16xf32> to vector<16x16xbf16>
      %c0_57 = arith.constant 0 : index
      %c0_58 = arith.constant 0 : index
      %183 = vector.load %arg3[%c0_57, %c0_58] : memref<16x32xbf16, #tpu.memory_space<vmem>>, vector<16x32xbf16>
      %cst_59 = arith.constant dense<0.000000e+00> : vector<16x32xf32>
      %184 = tpu.matmul %182, %183, %cst_59 {dimension_numbers = #tpu.dot_dimension_numbers<[1], [0], [0], [1], [0, 0, 1, 1], [], []>} : vector<16x16xbf16>, vector<16x32xbf16>, vector<16x32xf32> -> vector<16x32xf32>
      %c0_60 = arith.constant 0 : index
      %c0_61 = arith.constant 0 : index
      %185 = vector.load %arg4[%c0_60, %c0_61] : memref<1x32xf32, #tpu.memory_space<vmem>>, vector<1x32xf32>
      %186 = vector.broadcast %185 : vector<1x32xf32> to vector<16x32xf32>
      %187 = arith.addf %184, %186 : vector<16x32xf32>
      %188 = vector.shape_cast %187 : vector<16x32xf32> to vector<2x8x32xf32>
      %c0_62 = arith.constant 0 : index
      %c0_63 = arith.constant 0 : index
      %189 = vector.load %arg5[%c0_62, %c0_63] : memref<8x32xf32, #tpu.memory_space<vmem>>, vector<8x32xf32>
      %190 = vector.shape_cast %189 : vector<8x32xf32> to vector<1x8x32xf32>
      %191 = vector.broadcast %190 : vector<1x8x32xf32> to vector<2x8x32xf32>
      %192 = arith.addf %188, %191 : vector<2x8x32xf32>
      %193 = vector.shape_cast %192 : vector<2x8x32xf32> to vector<16x32xf32>
      %c0_64 = arith.constant 0 : index
      %c0_65 = arith.constant 0 : index
      %194 = vector.load %arg12[%c0_64, %c0_65] : memref<16x32xf32, #tpu.memory_space<vmem>>, vector<16x32xf32>
      tpu.vector_store %arg12[%c0_64, %c0_65], %193 {strides = array<i32>} : memref<16x32xf32, #tpu.memory_space<vmem>>, vector<16x32xf32>,
    } else {
    }
    %c0 = arith.constant 0 : index
    %c0_1 = arith.constant 0 : index
    %3 = vector.load %arg12[%c0, %c0_1] : memref<16x32xf32, #tpu.memory_space<vmem>>, vector<16x32xf32>
    %4 = arith.truncf %3 : vector<16x32xf32> to vector<16x32xbf16>
    %c0_2 = arith.constant 0 : index
    %c0_3 = arith.constant 0 : index
    %c0_4 = arith.constant 0 : index
    %5 = vector.load %arg10[%c0_2, %c0_3, %c0_4] : memref<1x8x96xf32, #tpu.memory_space<vmem>>, vector<1x8x96xf32>
    %6 = vector.shape_cast %5 : vector<1x8x96xf32> to vector<8x96xf32>
    %7 = vector.extract_strided_slice %6 {offsets = [0, 0], sizes = [1, 96], strides = [1, 1]} : vector<8x96xf32> to vector<1x96xf32>
    %8 = vector.extract_strided_slice %6 {offsets = [1, 0], sizes = [1, 32], strides = [1, 1]} : vector<8x96xf32> to vector<1x32xf32>
    %9 = vector.extract_strided_slice %6 {offsets = [2, 0], sizes = [1, 32], strides = [1, 1]} : vector<8x96xf32> to vector<1x32xf32>
    %10 = vector.extract_strided_slice %6 {offsets = [3, 0], sizes = [1, 32], strides = [1, 1]} : vector<8x96xf32> to vector<1x32xf32>
    %11 = vector.extract_strided_slice %6 {offsets = [4, 0], sizes = [1, 64], strides = [1, 1]} : vector<8x96xf32> to vector<1x64xf32>
    %12 = vector.extract_strided_slice %6 {offsets = [5, 0], sizes = [1, 32], strides = [1, 1]} : vector<8x96xf32> to vector<1x32xf32>
    %13 = vector.extract_strided_slice %6 {offsets = [6, 0], sizes = [1, 32], strides = [1, 1]} : vector<8x96xf32> to vector<1x32xf32>
    %14 = vector.extract_strided_slice %6 {offsets = [7, 0], sizes = [1, 32], strides = [1, 1]} : vector<8x96xf32> to vector<1x32xf32>
    %c0_5 = arith.constant 0 : index
    %c0_6 = arith.constant 0 : index
    %c0_7 = arith.constant 0 : index
    %15 = vector.load %arg6[%c0_5, %c0_6, %c0_7] : memref<1x32x96xbf16, #tpu.memory_space<vmem>>, vector<1x32x96xbf16>
    %16 = vector.shape_cast %15 : vector<1x32x96xbf16> to vector<32x96xbf16>
    %cst = arith.constant dense<0.000000e+00> : vector<16x96xf32>
    %17 = tpu.matmul %4, %16, %cst {dimension_numbers = #tpu.dot_dimension_numbers<[1], [0], [0], [1], [0, 0, 1, 1], [], []>} : vector<16x32xbf16>, vector<32x96xbf16>, vector<16x96xf32> -> vector<16x96xf32>
    %18 = vector.broadcast %7 : vector<1x96xf32> to vector<16x96xf32>
    %19 = arith.addf %17, %18 : vector<16x96xf32>
    %20 = arith.truncf %19 : vector<16x96xf32> to vector<16x96xbf16>
    %21 = vector.extract_strided_slice %20 {offsets = [0, 0], sizes = [16, 8], strides = [1, 1]} : vector<16x96xbf16> to vector<16x8xbf16>
    %22 = vector.shape_cast %21 : vector<16x8xbf16> to vector<2x8x8xbf16>
    %23 = vector.extract_strided_slice %20 {offsets = [0, 32], sizes = [16, 8], strides = [1, 1]} : vector<16x96xbf16> to vector<16x8xbf16>
    %24 = vector.shape_cast %23 : vector<16x8xbf16> to vector<2x8x8xbf16>
    %25 = vector.extract_strided_slice %20 {offsets = [0, 64], sizes = [16, 8], strides = [1, 1]} : vector<16x96xbf16> to vector<16x8xbf16>
    %26 = vector.shape_cast %25 : vector<16x8xbf16> to vector<2x8x8xbf16>
    "tpu.trace_start"() <{level = 10 : i32, message = "bqd,bkd->bqk"}> : () -> ()
    %cst_8 = arith.constant dense<0.000000e+00> : vector<2x8x8xf32>
    %27 = tpu.matmul %22, %24, %cst_8 {dimension_numbers = #tpu.dot_dimension_numbers<[2], [2], [1], [1], [0, 0, 0, 1, 1, 1], [0], [0]>} : vector<2x8x8xbf16>, vector<2x8x8xbf16>, vector<2x8x8xf32> -> vector<2x8x8xf32>
    "tpu.trace_stop"() : () -> ()
    %cst_9 = arith.constant 0.353553385 : f32
    %28 = vector.broadcast %cst_9 : f32 to vector<2x8x8xf32>
    %29 = arith.mulf %27, %28 : vector<2x8x8xf32>
    %cst_10 = arith.constant dense<0xFF800000> : vector<2x8xf32>
    %30 = vector.multi_reduction <maximumf>, %29, %cst_10 [2] : vector<2x8x8xf32> to vector<2x8xf32>
    %31 = vector.shape_cast %30 : vector<2x8xf32> to vector<2x8x1xf32>
    %32 = vector.broadcast %31 : vector<2x8x1xf32> to vector<2x8x8xf32>
    %33 = arith.subf %29, %32 : vector<2x8x8xf32>
    %34 = math.exp %33 : vector<2x8x8xf32>
    %cst_11 = arith.constant dense<0.000000e+00> : vector<2x8xf32>
    %35 = vector.multi_reduction <add>, %34, %cst_11 [2] : vector<2x8x8xf32> to vector<2x8xf32>
    %36 = vector.shape_cast %35 : vector<2x8xf32> to vector<2x8x1xf32>
    %37 = tpu.reciprocal %36 {approx = true} : vector<2x8x1xf32> -> vector<2x8x1xf32>
    %38 = vector.broadcast %37 : vector<2x8x1xf32> to vector<2x8x8xf32>
    %39 = arith.mulf %34, %38 : vector<2x8x8xf32>
    %40 = arith.truncf %39 : vector<2x8x8xf32> to vector<2x8x8xbf16>
    "tpu.trace_start"() <{level = 10 : i32, message = "bqk,bkd->bqd"}> : () -> ()
    %cst_12 = arith.constant dense<0.000000e+00> : vector<2x8x8xf32>
    %41 = tpu.matmul %40, %26, %cst_12 {dimension_numbers = #tpu.dot_dimension_numbers<[2], [1], [1], [2], [0, 0, 0, 1, 1, 2], [0], [0]>} : vector<2x8x8xbf16>, vector<2x8x8xbf16>, vector<2x8x8xf32> -> vector<2x8x8xf32>
    "tpu.trace_stop"() : () -> ()
    %42 = vector.shape_cast %41 : vector<2x8x8xf32> to vector<16x8xf32>
    %43 = vector.extract_strided_slice %20 {offsets = [0, 8], sizes = [16, 8], strides = [1, 1]} : vector<16x96xbf16> to vector<16x8xbf16>
    %44 = vector.shape_cast %43 : vector<16x8xbf16> to vector<2x8x8xbf16>
    %45 = vector.extract_strided_slice %20 {offsets = [0, 40], sizes = [16, 8], strides = [1, 1]} : vector<16x96xbf16> to vector<16x8xbf16>
    %46 = vector.shape_cast %45 : vector<16x8xbf16> to vector<2x8x8xbf16>
    %47 = vector.extract_strided_slice %20 {offsets = [0, 72], sizes = [16, 8], strides = [1, 1]} : vector<16x96xbf16> to vector<16x8xbf16>
    %48 = vector.shape_cast %47 : vector<16x8xbf16> to vector<2x8x8xbf16>
    "tpu.trace_start"() <{level = 10 : i32, message = "bqd,bkd->bqk"}> : () -> ()
    %cst_13 = arith.constant dense<0.000000e+00> : vector<2x8x8xf32>
    %49 = tpu.matmul %44, %46, %cst_13 {dimension_numbers = #tpu.dot_dimension_numbers<[2], [2], [1], [1], [0, 0, 0, 1, 1, 1], [0], [0]>} : vector<2x8x8xbf16>, vector<2x8x8xbf16>, vector<2x8x8xf32> -> vector<2x8x8xf32>
    "tpu.trace_stop"() : () -> ()
    %cst_14 = arith.constant 0.353553385 : f32
    %50 = vector.broadcast %cst_14 : f32 to vector<2x8x8xf32>
    %51 = arith.mulf %49, %50 : vector<2x8x8xf32>
    %cst_15 = arith.constant dense<0xFF800000> : vector<2x8xf32>
    %52 = vector.multi_reduction <maximumf>, %51, %cst_15 [2] : vector<2x8x8xf32> to vector<2x8xf32>
    %53 = vector.shape_cast %52 : vector<2x8xf32> to vector<2x8x1xf32>
    %54 = vector.broadcast %53 : vector<2x8x1xf32> to vector<2x8x8xf32>
    %55 = arith.subf %51, %54 : vector<2x8x8xf32>
    %56 = math.exp %55 : vector<2x8x8xf32>
    %cst_16 = arith.constant dense<0.000000e+00> : vector<2x8xf32>
    %57 = vector.multi_reduction <add>, %56, %cst_16 [2] : vector<2x8x8xf32> to vector<2x8xf32>
    %58 = vector.shape_cast %57 : vector<2x8xf32> to vector<2x8x1xf32>
    %59 = tpu.reciprocal %58 {approx = true} : vector<2x8x1xf32> -> vector<2x8x1xf32>
    %60 = vector.broadcast %59 : vector<2x8x1xf32> to vector<2x8x8xf32>
    %61 = arith.mulf %56, %60 : vector<2x8x8xf32>
    %62 = arith.truncf %61 : vector<2x8x8xf32> to vector<2x8x8xbf16>
    "tpu.trace_start"() <{level = 10 : i32, message = "bqk,bkd->bqd"}> : () -> ()
    %cst_17 = arith.constant dense<0.000000e+00> : vector<2x8x8xf32>
    %63 = tpu.matmul %62, %48, %cst_17 {dimension_numbers = #tpu.dot_dimension_numbers<[2], [1], [1], [2], [0, 0, 0, 1, 1, 2], [0], [0]>} : vector<2x8x8xbf16>, vector<2x8x8xbf16>, vector<2x8x8xf32> -> vector<2x8x8xf32>
    "tpu.trace_stop"() : () -> ()
    %64 = vector.shape_cast %63 : vector<2x8x8xf32> to vector<16x8xf32>
    %65 = vector.extract_strided_slice %20 {offsets = [0, 16], sizes = [16, 8], strides = [1, 1]} : vector<16x96xbf16> to vector<16x8xbf16>
    %66 = vector.shape_cast %65 : vector<16x8xbf16> to vector<2x8x8xbf16>
    %67 = vector.extract_strided_slice %20 {offsets = [0, 48], sizes = [16, 8], strides = [1, 1]} : vector<16x96xbf16> to vector<16x8xbf16>
    %68 = vector.shape_cast %67 : vector<16x8xbf16> to vector<2x8x8xbf16>
    %69 = vector.extract_strided_slice %20 {offsets = [0, 80], sizes = [16, 8], strides = [1, 1]} : vector<16x96xbf16> to vector<16x8xbf16>
    %70 = vector.shape_cast %69 : vector<16x8xbf16> to vector<2x8x8xbf16>
    "tpu.trace_start"() <{level = 10 : i32, message = "bqd,bkd->bqk"}> : () -> ()
    %cst_18 = arith.constant dense<0.000000e+00> : vector<2x8x8xf32>
    %71 = tpu.matmul %66, %68, %cst_18 {dimension_numbers = #tpu.dot_dimension_numbers<[2], [2], [1], [1], [0, 0, 0, 1, 1, 1], [0], [0]>} : vector<2x8x8xbf16>, vector<2x8x8xbf16>, vector<2x8x8xf32> -> vector<2x8x8xf32>
    "tpu.trace_stop"() : () -> ()
    %cst_19 = arith.constant 0.353553385 : f32
    %72 = vector.broadcast %cst_19 : f32 to vector<2x8x8xf32>
    %73 = arith.mulf %71, %72 : vector<2x8x8xf32>
    %cst_20 = arith.constant dense<0xFF800000> : vector<2x8xf32>
    %74 = vector.multi_reduction <maximumf>, %73, %cst_20 [2] : vector<2x8x8xf32> to vector<2x8xf32>
    %75 = vector.shape_cast %74 : vector<2x8xf32> to vector<2x8x1xf32>
    %76 = vector.broadcast %75 : vector<2x8x1xf32> to vector<2x8x8xf32>
    %77 = arith.subf %73, %76 : vector<2x8x8xf32>
    %78 = math.exp %77 : vector<2x8x8xf32>
    %cst_21 = arith.constant dense<0.000000e+00> : vector<2x8xf32>
    %79 = vector.multi_reduction <add>, %78, %cst_21 [2] : vector<2x8x8xf32> to vector<2x8xf32>
    %80 = vector.shape_cast %79 : vector<2x8xf32> to vector<2x8x1xf32>
    %81 = tpu.reciprocal %80 {approx = true} : vector<2x8x1xf32> -> vector<2x8x1xf32>
    %82 = vector.broadcast %81 : vector<2x8x1xf32> to vector<2x8x8xf32>
    %83 = arith.mulf %78, %82 : vector<2x8x8xf32>
    %84 = arith.truncf %83 : vector<2x8x8xf32> to vector<2x8x8xbf16>
    "tpu.trace_start"() <{level = 10 : i32, message = "bqk,bkd->bqd"}> : () -> ()
    %cst_22 = arith.constant dense<0.000000e+00> : vector<2x8x8xf32>
    %85 = tpu.matmul %84, %70, %cst_22 {dimension_numbers = #tpu.dot_dimension_numbers<[2], [1], [1], [2], [0, 0, 0, 1, 1, 2], [0], [0]>} : vector<2x8x8xbf16>, vector<2x8x8xbf16>, vector<2x8x8xf32> -> vector<2x8x8xf32>
    "tpu.trace_stop"() : () -> ()
    %86 = vector.shape_cast %85 : vector<2x8x8xf32> to vector<16x8xf32>
    %87 = vector.extract_strided_slice %20 {offsets = [0, 24], sizes = [16, 8], strides = [1, 1]} : vector<16x96xbf16> to vector<16x8xbf16>
    %88 = vector.shape_cast %87 : vector<16x8xbf16> to vector<2x8x8xbf16>
    %89 = vector.extract_strided_slice %20 {offsets = [0, 56], sizes = [16, 8], strides = [1, 1]} : vector<16x96xbf16> to vector<16x8xbf16>
    %90 = vector.shape_cast %89 : vector<16x8xbf16> to vector<2x8x8xbf16>
    %91 = vector.extract_strided_slice %20 {offsets = [0, 88], sizes = [16, 8], strides = [1, 1]} : vector<16x96xbf16> to vector<16x8xbf16>
    %92 = vector.shape_cast %91 : vector<16x8xbf16> to vector<2x8x8xbf16>
    "tpu.trace_start"() <{level = 10 : i32, message = "bqd,bkd->bqk"}> : () -> ()
    %cst_23 = arith.constant dense<0.000000e+00> : vector<2x8x8xf32>
    %93 = tpu.matmul %88, %90, %cst_23 {dimension_numbers = #tpu.dot_dimension_numbers<[2], [2], [1], [1], [0, 0, 0, 1, 1, 1], [0], [0]>} : vector<2x8x8xbf16>, vector<2x8x8xbf16>, vector<2x8x8xf32> -> vector<2x8x8xf32>
    "tpu.trace_stop"() : () -> ()
    %cst_24 = arith.constant 0.353553385 : f32
    %94 = vector.broadcast %cst_24 : f32 to vector<2x8x8xf32>
    %95 = arith.mulf %93, %94 : vector<2x8x8xf32>
    %cst_25 = arith.constant dense<0xFF800000> : vector<2x8xf32>
    %96 = vector.multi_reduction <maximumf>, %95, %cst_25 [2] : vector<2x8x8xf32> to vector<2x8xf32>
    %97 = vector.shape_cast %96 : vector<2x8xf32> to vector<2x8x1xf32>
    %98 = vector.broadcast %97 : vector<2x8x1xf32> to vector<2x8x8xf32>
    %99 = arith.subf %95, %98 : vector<2x8x8xf32>
    %100 = math.exp %99 : vector<2x8x8xf32>
    %cst_26 = arith.constant dense<0.000000e+00> : vector<2x8xf32>
    %101 = vector.multi_reduction <add>, %100, %cst_26 [2] : vector<2x8x8xf32> to vector<2x8xf32>
    %102 = vector.shape_cast %101 : vector<2x8xf32> to vector<2x8x1xf32>
    %103 = tpu.reciprocal %102 {approx = true} : vector<2x8x1xf32> -> vector<2x8x1xf32>
    %104 = vector.broadcast %103 : vector<2x8x1xf32> to vector<2x8x8xf32>
    %105 = arith.mulf %100, %104 : vector<2x8x8xf32>
    %106 = arith.truncf %105 : vector<2x8x8xf32> to vector<2x8x8xbf16>
    "tpu.trace_start"() <{level = 10 : i32, message = "bqk,bkd->bqd"}> : () -> ()
    %cst_27 = arith.constant dense<0.000000e+00> : vector<2x8x8xf32>
    %107 = tpu.matmul %106, %92, %cst_27 {dimension_numbers = #tpu.dot_dimension_numbers<[2], [1], [1], [2], [0, 0, 0, 1, 1, 2], [0], [0]>} : vector<2x8x8xbf16>, vector<2x8x8xbf16>, vector<2x8x8xf32> -> vector<2x8x8xf32>
    "tpu.trace_stop"() : () -> ()
    %108 = vector.shape_cast %107 : vector<2x8x8xf32> to vector<16x8xf32>
    %109 = tpu.concatenate %42, %64, %86, %108 in 1 : vector<16x8xf32>, vector<16x8xf32>, vector<16x8xf32>, vector<16x8xf32> -> vector<16x32xf32>
    %110 = arith.truncf %109 : vector<16x32xf32> to vector<16x32xbf16>
    %c0_28 = arith.constant 0 : index
    %c0_29 = arith.constant 0 : index
    %c0_30 = arith.constant 0 : index
    %111 = vector.load %arg7[%c0_28, %c0_29, %c0_30] : memref<1x32x32xbf16, #tpu.memory_space<vmem>>, vector<1x32x32xbf16>
    %112 = vector.shape_cast %111 : vector<1x32x32xbf16> to vector<32x32xbf16>
    %cst_31 = arith.constant dense<0.000000e+00> : vector<16x32xf32>
    %113 = tpu.matmul %110, %112, %cst_31 {dimension_numbers = #tpu.dot_dimension_numbers<[1], [0], [0], [1], [0, 0, 1, 1], [], []>} : vector<16x32xbf16>, vector<32x32xbf16>, vector<16x32xf32> -> vector<16x32xf32>
    %114 = vector.broadcast %8 : vector<1x32xf32> to vector<16x32xf32>
    %115 = arith.addf %113, %114 : vector<16x32xf32>
    %116 = arith.addf %3, %115 : vector<16x32xf32>
    %cst_32 = arith.constant dense<0.000000e+00> : vector<16xf32>
    %117 = vector.multi_reduction <add>, %116, %cst_32 [1] : vector<16x32xf32> to vector<16xf32>
    %118 = vector.shape_cast %117 : vector<16xf32> to vector<16x1xf32>
    %cst_33 = arith.constant 3.200000e+01 : f32
    %119 = vector.broadcast %cst_33 : f32 to vector<16x1xf32>
    %120 = arith.divf %118, %119 : vector<16x1xf32>
    %121 = vector.broadcast %120 : vector<16x1xf32> to vector<16x32xf32>
    %122 = arith.subf %116, %121 : vector<16x32xf32>
    %123 = arith.mulf %122, %122 : vector<16x32xf32>
    %cst_34 = arith.constant dense<0.000000e+00> : vector<16xf32>
    %124 = vector.multi_reduction <add>, %123, %cst_34 [1] : vector<16x32xf32> to vector<16xf32>
    %125 = vector.shape_cast %124 : vector<16xf32> to vector<16x1xf32>
    %cst_35 = arith.constant 3.200000e+01 : f32
    %126 = vector.broadcast %cst_35 : f32 to vector<16x1xf32>
    %127 = arith.divf %125, %126 : vector<16x1xf32>
    %128 = vector.broadcast %120 : vector<16x1xf32> to vector<16x32xf32>
    %129 = arith.subf %116, %128 : vector<16x32xf32>
    %cst_36 = arith.constant 9.99999974E-6 : f32
    %130 = vector.broadcast %cst_36 : f32 to vector<16x1xf32>
    %131 = arith.addf %127, %130 : vector<16x1xf32>
    %132 = math.rsqrt %131 : vector<16x1xf32>
    %133 = vector.broadcast %132 : vector<16x1xf32> to vector<16x32xf32>
    %134 = arith.mulf %129, %133 : vector<16x32xf32>
    %135 = vector.broadcast %9 : vector<1x32xf32> to vector<16x32xf32>
    %136 = arith.mulf %134, %135 : vector<16x32xf32>
    %137 = vector.broadcast %10 : vector<1x32xf32> to vector<16x32xf32>
    %138 = arith.addf %136, %137 : vector<16x32xf32>
    %139 = arith.truncf %138 : vector<16x32xf32> to vector<16x32xbf16>
    %c0_37 = arith.constant 0 : index
    %c0_38 = arith.constant 0 : index
    %c0_39 = arith.constant 0 : index
    %140 = vector.load %arg8[%c0_37, %c0_38, %c0_39] : memref<1x32x64xbf16, #tpu.memory_space<vmem>>, vector<1x32x64xbf16>
    %141 = vector.shape_cast %140 : vector<1x32x64xbf16> to vector<32x64xbf16>
    %cst_40 = arith.constant dense<0.000000e+00> : vector<16x64xf32>
    %142 = tpu.matmul %139, %141, %cst_40 {dimension_numbers = #tpu.dot_dimension_numbers<[1], [0], [0], [1], [0, 0, 1, 1], [], []>} : vector<16x32xbf16>, vector<32x64xbf16>, vector<16x64xf32> -> vector<16x64xf32>
    %143 = vector.broadcast %11 : vector<1x64xf32> to vector<16x64xf32>
    %144 = arith.addf %142, %143 : vector<16x64xf32>
    %cst_41 = arith.constant 0.000000e+00 : f32
    %145 = vector.broadcast %cst_41 : f32 to vector<16x64xf32>
    %146 = arith.maximumf %144, %145 : vector<16x64xf32>
    %147 = arith.truncf %146 : vector<16x64xf32> to vector<16x64xbf16>
    %c0_42 = arith.constant 0 : index
    %c0_43 = arith.constant 0 : index
    %c0_44 = arith.constant 0 : index
    %148 = vector.load %arg9[%c0_42, %c0_43, %c0_44] : memref<1x64x32xbf16, #tpu.memory_space<vmem>>, vector<1x64x32xbf16>
    %149 = vector.shape_cast %148 : vector<1x64x32xbf16> to vector<64x32xbf16>
    %cst_45 = arith.constant dense<0.000000e+00> : vector<16x32xf32>
    %150 = tpu.matmul %147, %149, %cst_45 {dimension_numbers = #tpu.dot_dimension_numbers<[1], [0], [0], [1], [0, 0, 1, 1], [], []>} : vector<16x64xbf16>, vector<64x32xbf16>, vector<16x32xf32> -> vector<16x32xf32>
    %151 = vector.broadcast %12 : vector<1x32xf32> to vector<16x32xf32>
    %152 = arith.addf %150, %151 : vector<16x32xf32>
    %153 = arith.addf %138, %152 : vector<16x32xf32>
    %cst_46 = arith.constant dense<0.000000e+00> : vector<16xf32>
    %154 = vector.multi_reduction <add>, %153, %cst_46 [1] : vector<16x32xf32> to vector<16xf32>
    %155 = vector.shape_cast %154 : vector<16xf32> to vector<16x1xf32>
    %cst_47 = arith.constant 3.200000e+01 : f32
    %156 = vector.broadcast %cst_47 : f32 to vector<16x1xf32>
    %157 = arith.divf %155, %156 : vector<16x1xf32>
    %158 = vector.broadcast %157 : vector<16x1xf32> to vector<16x32xf32>
    %159 = arith.subf %153, %158 : vector<16x32xf32>
    %160 = arith.mulf %159, %159 : vector<16x32xf32>
    %cst_48 = arith.constant dense<0.000000e+00> : vector<16xf32>
    %161 = vector.multi_reduction <add>, %160, %cst_48 [1] : vector<16x32xf32> to vector<16xf32>
    %162 = vector.shape_cast %161 : vector<16xf32> to vector<16x1xf32>
    %cst_49 = arith.constant 3.200000e+01 : f32
    %163 = vector.broadcast %cst_49 : f32 to vector<16x1xf32>
    %164 = arith.divf %162, %163 : vector<16x1xf32>
    %165 = vector.broadcast %157 : vector<16x1xf32> to vector<16x32xf32>
    %166 = arith.subf %153, %165 : vector<16x32xf32>
    %cst_50 = arith.constant 9.99999974E-6 : f32
    %167 = vector.broadcast %cst_50 : f32 to vector<16x1xf32>
    %168 = arith.addf %164, %167 : vector<16x1xf32>
    %169 = math.rsqrt %168 : vector<16x1xf32>
    %170 = vector.broadcast %169 : vector<16x1xf32> to vector<16x32xf32>
    %171 = arith.mulf %166, %170 : vector<16x32xf32>
    %172 = vector.broadcast %13 : vector<1x32xf32> to vector<16x32xf32>
    %173 = arith.mulf %171, %172 : vector<16x32xf32>
    %174 = vector.broadcast %14 : vector<1x32xf32> to vector<16x32xf32>
    %175 = arith.addf %173, %174 : vector<16x32xf32>
    %c0_51 = arith.constant 0 : index
    %c0_52 = arith.constant 0 : index
    %176 = vector.load %arg12[%c0_51, %c0_52] : memref<16x32xf32, #tpu.memory_space<vmem>>, vector<16x32xf32>
    tpu.vector_store %arg12[%c0_51, %c0_52], %175 {strides = array<i32>} : memref<16x32xf32, #tpu.memory_space<vmem>>, vector<16x32xf32>,
    %c1_i32 = arith.constant 1 : i32
    %177 = arith.cmpi eq, %arg1, %c1_i32 : i32
    %178 = arith.extui %177 : i1 to i32
    %c0_i32_53 = arith.constant 0 : i32
    %179 = arith.cmpi ne, %178, %c0_i32_53 : i32
    scf.if %179 {
      %180 = vector.shape_cast %175 : vector<16x32xf32> to vector<2x8x32xf32>
      %cst_54 = arith.constant dense<0.000000e+00> : vector<2x32xf32>
      %181 = vector.multi_reduction <add>, %180, %cst_54 [1] : vector<2x8x32xf32> to vector<2x32xf32>
      %182 = vector.shape_cast %181 : vector<2x32xf32> to vector<2x1x32xf32>
      %cst_55 = arith.constant 8.000000e+00 : f32
      %183 = vector.broadcast %cst_55 : f32 to vector<2x1x32xf32>
      %184 = arith.divf %182, %183 : vector<2x1x32xf32>
      %c0_56 = arith.constant 0 : index
      %c0_57 = arith.constant 0 : index
      %c0_58 = arith.constant 0 : index
      %185 = vector.load %arg11[%c0_56, %c0_57, %c0_58] : memref<2x1x32xf32, #tpu.memory_space<vmem>>, vector<2x1x32xf32>
      tpu.vector_store %arg11[%c0_56, %c0_57, %c0_58], %184 {strides = array<i32>} : memref<2x1x32xf32, #tpu.memory_space<vmem>>, vector<2x1x32xf32>,
    } else {
    }
    return
  }
  func.func @transform_0(%arg0: i32, %arg1: i32) -> (i32, i32, i32) {
    %c0_i32 = arith.constant 0 : i32
    %c0_i32_0 = arith.constant 0 : i32
    %c0_i32_1 = arith.constant 0 : i32
    return %arg0, %c0_i32, %c0_i32_0 : i32, i32, i32
  }
  func.func @transform_1(%arg0: i32, %arg1: i32) -> (i32, i32) {
    %c0_i32 = arith.constant 0 : i32
    %c0_i32_0 = arith.constant 0 : i32
    %c0_i32_1 = arith.constant 0 : i32
    return %c0_i32, %c0_i32_0 : i32, i32
  }
  func.func @transform_2(%arg0: i32, %arg1: i32) -> (i32, i32) {
    %c0_i32 = arith.constant 0 : i32
    %c0_i32_0 = arith.constant 0 : i32
    %c0_i32_1 = arith.constant 0 : i32
    return %c0_i32, %c0_i32_0 : i32, i32
  }
  func.func @transform_3(%arg0: i32, %arg1: i32) -> (i32, i32) {
    %c0_i32 = arith.constant 0 : i32
    %c0_i32_0 = arith.constant 0 : i32
    %c0_i32_1 = arith.constant 0 : i32
    return %c0_i32, %c0_i32_0 : i32, i32
  }
  func.func @transform_4(%arg0: i32, %arg1: i32) -> (i32, i32, i32) {
    %c0_i32 = arith.constant 0 : i32
    %c0_i32_0 = arith.constant 0 : i32
    %c0_i32_1 = arith.constant 0 : i32
    return %arg1, %c0_i32, %c0_i32_0 : i32, i32, i32
  }
  func.func @transform_5(%arg0: i32, %arg1: i32) -> (i32, i32, i32) {
    %c0_i32 = arith.constant 0 : i32
    %c0_i32_0 = arith.constant 0 : i32
    %c0_i32_1 = arith.constant 0 : i32
    return %arg1, %c0_i32, %c0_i32_0 : i32, i32, i32
  }
  func.func @transform_6(%arg0: i32, %arg1: i32) -> (i32, i32, i32) {
    %c0_i32 = arith.constant 0 : i32
    %c0_i32_0 = arith.constant 0 : i32
    %c0_i32_1 = arith.constant 0 : i32
    return %arg1, %c0_i32, %c0_i32_0 : i32, i32, i32
  }
  func.func @transform_7(%arg0: i32, %arg1: i32) -> (i32, i32, i32) {
    %c0_i32 = arith.constant 0 : i32
    %c0_i32_0 = arith.constant 0 : i32
    %c0_i32_1 = arith.constant 0 : i32
    return %arg1, %c0_i32, %c0_i32_0 : i32, i32, i32
  }
  func.func @transform_8(%arg0: i32, %arg1: i32) -> (i32, i32, i32) {
    %c0_i32 = arith.constant 0 : i32
    %c0_i32_0 = arith.constant 0 : i32
    %c0_i32_1 = arith.constant 0 : i32
    return %arg1, %c0_i32, %c0_i32_0 : i32, i32, i32
  }
  func.func @transform_9(%arg0: i32, %arg1: i32) -> (i32, i32, i32) {
    %c0_i32 = arith.constant 0 : i32
    %c0_i32_0 = arith.constant 0 : i32
    %c0_i32_1 = arith.constant 0 : i32
    return %arg0, %c0_i32, %c0_i32_0 : i32, i32, i32
  }
}

</mosaic_0001>

<llo_original>
// kernel: tpu_custom_call.1
$region0: #{tpu_custom_call.1}
  #allocation0 [shape = 'u32[]', space=smem, size = 0x4, offset = 0x4, fixed_abs, tag = 'smem constant byte address 0x4 - core index']
  #allocation1 [shape = 'u32[144,128]{1,0:T(1,128)}', space=vmem, size = 0x12000, scoped, tag = 'internal scratch']
  #allocation2 [shape = 'f32[16,32]{1,0:T(8,128)}', space=vmem, size = 0x2000, scoped, tag = 'scratch operand']
  %s0 = inlined_call_operand.hbm [shape: f32[2,8,16], index: 0, kind: input, shape index: {}]
  %s1 = inlined_call_operand.hbm [shape: bf16[16,32], index: 1, kind: input, shape index: {}]
  %s2 = inlined_call_operand.vmem [shape: f32[1,32], index: 2, kind: input, shape index: {}]
  %s3 = inlined_call_operand.hbm [shape: f32[8,32], index: 3, kind: input, shape index: {}]
  %s4 = inlined_call_operand.vmem [shape: bf16[2,32,96], index: 4, kind: input, shape index: {}]
  %s5 = inlined_call_operand.vmem [shape: bf16[2,32,32], index: 5, kind: input, shape index: {}]
  %s6 = inlined_call_operand.vmem [shape: bf16[2,32,64], index: 6, kind: input, shape index: {}]
  %s7 = inlined_call_operand.vmem [shape: bf16[2,64,32], index: 7, kind: input, shape index: {}]
  %s8 = inlined_call_operand.vmem [shape: f32[2,8,96], index: 8, kind: input, shape index: {}]
  %s9 = inlined_call_operand.hbm [shape: f32[2,1,32], index: 9, kind: output, shape index: {}]
  %s10 = sld [smem:[#allocation0]]
  $region89: #{tpu_custom_call.1} parent=0
    _
  %s12 = ssub.s32 1, %s10
  %s13 = scalar_select 0, %s12, %s10
  $region1: #{tpu_custom_call.1} parent=0
    #allocation3 [shape = 'u8[8192]{0}', space=vmem, size = 0x2000, scoped, tag = 'input window, operand 0, single buffered']
    #allocation4 [shape = 's32[2]{0}', space=sflag, size = 0x8, scoped, tag = 'scoped memory for tpu_custom_call.1']
    #allocation5 [shape = 's32[2]{0}', space=sflag, size = 0x8, scoped, tag = 'scoped memory for tpu_custom_call.1']
    #allocation6 [shape = 'u8[4096]{0}', space=vmem, size = 0x1000, scoped, tag = 'input window, operand 1, single buffered']
    #allocation7 [shape = 's32[1]{0}', space=sflag, size = 0x4, scoped, tag = 'scoped memory for tpu_custom_call.1']
    #allocation8 [shape = 'u8[4096]{0}', space=vmem, size = 0x1000, scoped, tag = 'input window, operand 3, single buffered']
    #allocation9 [shape = 'u8[1024]{0}', space=vmem, size = 0x400, scoped, tag = 'output window, operand 0, single buffered']
    %14 = vsyncpa [#allocation4], 0
    %15 = vsyncpa [#allocation7], 0
    %16 = vsyncpa [#allocation5], 0
    loop: start=0, step=1, limit=4
    $region2: #{tpu_custom_call.1} parent=1 // loop_pre_header
      _
    $region3: #{tpu_custom_call.1} parent=1 // loop_header
      %s18 = sphi 0, %s22
      %p19 = scmp.ge.s32.totalorder %s18, 4
      %s25 = sphi 0, %s37
      %s26 = sphi 0, %s33
      %s27 = sphi 0, %s25
      %s28 = sphi 0, %s26
      %s29 = sphi 0, %s27
      %s30 = sphi 0, %s28
      %s40 = sphi 0, %s42
      %s43 = sphi 0, %s40
      %s44 = sphi 0, %s43
      %s60 = sphi 0, %s44
      %s64 = sphi 0, %s64
      %s66 = sphi 0, %s64
      %s67 = sphi 0, %s66
      %s81 = sphi 0, %s67
      %s85 = sphi 0, %s85
      %s87 = sphi 0, %s85
      %s88 = sphi 0, %s87
      %s102 = sphi 0, %s88
      %s106 = sphi 0, %s106
      %s108 = sphi 0, %s106
      %s109 = sphi 0, %s108
      %s123 = sphi 0, %s109
      %s129 = sphi 0, %s131
      %s132 = sphi 0, %s129
      %s133 = sphi 0, %s132
      %s149 = sphi 0, %s133
      %s155 = sphi 0, %s157
      %s158 = sphi 0, %s155
      %s159 = sphi 0, %s158
      %s175 = sphi 0, %s159
      %s181 = sphi 0, %s183
      %s184 = sphi 0, %s181
      %s185 = sphi 0, %s184
      %s201 = sphi 0, %s185
      %s207 = sphi 0, %s209
      %s210 = sphi 0, %s207
      %s211 = sphi 0, %s210
      %s227 = sphi 0, %s211
      %s233 = sphi 0, %s235
      %s236 = sphi 0, %s233
      %s237 = sphi 0, %s236
      %s253 = sphi 0, %s237
      %s259 = sphi 0, %s261
      %s262 = sphi 0, %s259
      %s263 = sphi 0, %s262
      %s279 = sphi 0, %s263
    $region4: #{tpu_custom_call.1} parent=1 // loop_header_branch
      %21 = sbr.rel (%p19) target = $region8
    $region5: #{tpu_custom_call.1} parent=1 // loop_body
      %s23 = ssub.s32 %s18, 1
      %s24 = ssub.s32 %s18, 2
      %s31 = sadd.s32 1, %s26
      %p32 = scmp.ge.s32.totalorder %s31, 2
      %s33 = scalar_select %p32, 0, %s31
      %s34 = sadd.s32 1, %s25
      %s35 = scalar_select %p32, %s34, %s25
      %p36 = scmp.ge.s32.totalorder %s35, 1
      %s37 = scalar_select %p36, 0, %s35
      %s38 = ssub.s32 %s25, %s37
      %p39 = scmp.eq.s32.totalorder %s38, 0
      %s41 = sadd.s32 %s40, 1
      %s42 = scalar_select %p39, %s40, %s41
      %p45 = pneg %p39
      %p46 = scmp.eq.s32.totalorder %s18, 1
      %p47 = por %p45, %p46
      %p48 = scmp.ne.s32.totalorder %s40, %s43
      %p49 = scmp.eq.s32.totalorder %s18, 0
      %p50 = por %p48, %p49
      %p51 = scmp.ne.s32.totalorder %s40, %s43
      %p52 = scmp.eq.s32.totalorder %s23, 1
      %p53 = por %p51, %p52
      %p54 = scmp.ne.s32.totalorder %s43, %s44
      %p55 = scmp.eq.s32.totalorder %s23, 0
      %p56 = por %p54, %p55
      %p57 = scmp.ne.s32.totalorder %s43, %s44
      %p58 = scmp.eq.s32.totalorder %s24, 1
      %p59 = por %p57, %p58
      %p61 = scmp.ne.s32.totalorder %s44, %s60
      %p62 = scmp.eq.s32.totalorder %s24, 0
      %p63 = por %p61, %p62
      %s65 = sadd.s32 %s64, 1
      %p68 = scmp.eq.s32.totalorder %s18, 1
      %p69 = scmp.ne.s32.totalorder %s64, %s66
      %p70 = scmp.eq.s32.totalorder %s18, 0
      %p71 = por %p69, %p70
      %p72 = scmp.ne.s32.totalorder %s64, %s66
      %p73 = scmp.eq.s32.totalorder %s23, 1
      %p74 = por %p72, %p73
      %p75 = scmp.ne.s32.totalorder %s66, %s67
      %p76 = scmp.eq.s32.totalorder %s23, 0
      %p77 = por %p75, %p76
      %p78 = scmp.ne.s32.totalorder %s66, %s67
      %p79 = scmp.eq.s32.totalorder %s24, 1
      %p80 = por %p78, %p79
      %p82 = scmp.ne.s32.totalorder %s67, %s81
      %p83 = scmp.eq.s32.totalorder %s24, 0
      %p84 = por %p82, %p83
      %s86 = sadd.s32 %s85, 1
      %p89 = scmp.eq.s32.totalorder %s18, 1
      %p90 = scmp.ne.s32.totalorder %s85, %s87
      %p91 = scmp.eq.s32.totalorder %s18, 0
      %p92 = por %p90, %p91
      %p93 = scmp.ne.s32.totalorder %s85, %s87
      %p94 = scmp.eq.s32.totalorder %s23, 1
      %p95 = por %p93, %p94
      %p96 = scmp.ne.s32.totalorder %s87, %s88
      %p97 = scmp.eq.s32.totalorder %s23, 0
      %p98 = por %p96, %p97
      %p99 = scmp.ne.s32.totalorder %s87, %s88
      %p100 = scmp.eq.s32.totalorder %s24, 1
      %p101 = por %p99, %p100
      %p103 = scmp.ne.s32.totalorder %s88, %s102
      %p104 = scmp.eq.s32.totalorder %s24, 0
      %p105 = por %p103, %p104
      %s107 = sadd.s32 %s106, 1
      %p110 = scmp.eq.s32.totalorder %s18, 1
      %p111 = scmp.ne.s32.totalorder %s106, %s108
      %p112 = scmp.eq.s32.totalorder %s18, 0
      %p113 = por %p111, %p112
      %p114 = scmp.ne.s32.totalorder %s106, %s108
      %p115 = scmp.eq.s32.totalorder %s23, 1
      %p116 = por %p114, %p115
      %p117 = scmp.ne.s32.totalorder %s108, %s109
      %p118 = scmp.eq.s32.totalorder %s23, 0
      %p119 = por %p117, %p118
      %p120 = scmp.ne.s32.totalorder %s108, %s109
      %p121 = scmp.eq.s32.totalorder %s24, 1
      %p122 = por %p120, %p121
      %p124 = scmp.ne.s32.totalorder %s109, %s123
      %p125 = scmp.eq.s32.totalorder %s24, 0
      %p126 = por %p124, %p125
      %s127 = ssub.s32 %s26, %s33
      %p128 = scmp.eq.s32.totalorder %s127, 0
      %s130 = sadd.s32 %s129, 1
      %s131 = scalar_select %p128, %s129, %s130
      %p134 = pneg %p128
      %p135 = scmp.eq.s32.totalorder %s18, 1
      %p136 = por %p134, %p135
      %p137 = scmp.ne.s32.totalorder %s129, %s132
      %p138 = scmp.eq.s32.totalorder %s18, 0
      %p139 = por %p137, %p138
      %p140 = scmp.ne.s32.totalorder %s129, %s132
      %p141 = scmp.eq.s32.totalorder %s23, 1
      %p142 = por %p140, %p141
      %p143 = scmp.ne.s32.totalorder %s132, %s133
      %p144 = scmp.eq.s32.totalorder %s23, 0
      %p145 = por %p143, %p144
      %p146 = scmp.ne.s32.totalorder %s132, %s133
      %p147 = scmp.eq.s32.totalorder %s24, 1
      %p148 = por %p146, %p147
      %p150 = scmp.ne.s32.totalorder %s133, %s149
      %p151 = scmp.eq.s32.totalorder %s24, 0
      %p152 = por %p150, %p151
      %s153 = ssub.s32 %s26, %s33
      %p154 = scmp.eq.s32.totalorder %s153, 0
      %s156 = sadd.s32 %s155, 1
      %s157 = scalar_select %p154, %s155, %s156
      %p160 = pneg %p154
      %p161 = scmp.eq.s32.totalorder %s18, 1
      %p162 = por %p160, %p161
      %p163 = scmp.ne.s32.totalorder %s155, %s158
      %p164 = scmp.eq.s32.totalorder %s18, 0
      %p165 = por %p163, %p164
      %p166 = scmp.ne.s32.totalorder %s155, %s158
      %p167 = scmp.eq.s32.totalorder %s23, 1
      %p168 = por %p166, %p167
      %p169 = scmp.ne.s32.totalorder %s158, %s159
      %p170 = scmp.eq.s32.totalorder %s23, 0
      %p171 = por %p169, %p170
      %p172 = scmp.ne.s32.totalorder %s158, %s159
      %p173 = scmp.eq.s32.totalorder %s24, 1
      %p174 = por %p172, %p173
      %p176 = scmp.ne.s32.totalorder %s159, %s175
      %p177 = scmp.eq.s32.totalorder %s24, 0
      %p178 = por %p176, %p177
      %s179 = ssub.s32 %s26, %s33
      %p180 = scmp.eq.s32.totalorder %s179, 0
      %s182 = sadd.s32 %s181, 1
      %s183 = scalar_select %p180, %s181, %s182
      %p186 = pneg %p180
      %p187 = scmp.eq.s32.totalorder %s18, 1
      %p188 = por %p186, %p187
      %p189 = scmp.ne.s32.totalorder %s181, %s184
      %p190 = scmp.eq.s32.totalorder %s18, 0
      %p191 = por %p189, %p190
      %p192 = scmp.ne.s32.totalorder %s181, %s184
      %p193 = scmp.eq.s32.totalorder %s23, 1
      %p194 = por %p192, %p193
      %p195 = scmp.ne.s32.totalorder %s184, %s185
      %p196 = scmp.eq.s32.totalorder %s23, 0
      %p197 = por %p195, %p196
      %p198 = scmp.ne.s32.totalorder %s184, %s185
      %p199 = scmp.eq.s32.totalorder %s24, 1
      %p200 = por %p198, %p199
      %p202 = scmp.ne.s32.totalorder %s185, %s201
      %p203 = scmp.eq.s32.totalorder %s24, 0
      %p204 = por %p202, %p203
      %s205 = ssub.s32 %s26, %s33
      %p206 = scmp.eq.s32.totalorder %s205, 0
      %s208 = sadd.s32 %s207, 1
      %s209 = scalar_select %p206, %s207, %s208
      %p212 = pneg %p206
      %p213 = scmp.eq.s32.totalorder %s18, 1
      %p214 = por %p212, %p213
      %p215 = scmp.ne.s32.totalorder %s207, %s210
      %p216 = scmp.eq.s32.totalorder %s18, 0
      %p217 = por %p215, %p216
      %p218 = scmp.ne.s32.totalorder %s207, %s210
      %p219 = scmp.eq.s32.totalorder %s23, 1
      %p220 = por %p218, %p219
      %p221 = scmp.ne.s32.totalorder %s210, %s211
      %p222 = scmp.eq.s32.totalorder %s23, 0
      %p223 = por %p221, %p222
      %p224 = scmp.ne.s32.totalorder %s210, %s211
      %p225 = scmp.eq.s32.totalorder %s24, 1
      %p226 = por %p224, %p225
      %p228 = scmp.ne.s32.totalorder %s211, %s227
      %p229 = scmp.eq.s32.totalorder %s24, 0
      %p230 = por %p228, %p229
      %s231 = ssub.s32 %s26, %s33
      %p232 = scmp.eq.s32.totalorder %s231, 0
      %s234 = sadd.s32 %s233, 1
      %s235 = scalar_select %p232, %s233, %s234
      %p238 = pneg %p232
      %p239 = scmp.eq.s32.totalorder %s18, 1
      %p240 = por %p238, %p239
      %p241 = scmp.ne.s32.totalorder %s233, %s236
      %p242 = scmp.eq.s32.totalorder %s18, 0
      %p243 = por %p241, %p242
      %p244 = scmp.ne.s32.totalorder %s233, %s236
      %p245 = scmp.eq.s32.totalorder %s23, 1
      %p246 = por %p244, %p245
      %p247 = scmp.ne.s32.totalorder %s236, %s237
      %p248 = scmp.eq.s32.totalorder %s23, 0
      %p249 = por %p247, %p248
      %p250 = scmp.ne.s32.totalorder %s236, %s237
      %p251 = scmp.eq.s32.totalorder %s24, 1
      %p252 = por %p250, %p251
      %p254 = scmp.ne.s32.totalorder %s237, %s253
      %p255 = scmp.eq.s32.totalorder %s24, 0
      %p256 = por %p254, %p255
      %s257 = ssub.s32 %s25, %s37
      %p258 = scmp.eq.s32.totalorder %s257, 0
      %s260 = sadd.s32 %s259, 1
      %s261 = scalar_select %p258, %s259, %s260
      %p264 = pneg %p258
      %p265 = scmp.eq.s32.totalorder %s18, 1
      %p266 = por %p264, %p265
      %p267 = scmp.ne.s32.totalorder %s259, %s262
      %p268 = scmp.eq.s32.totalorder %s18, 0
      %p269 = por %p267, %p268
      %p270 = scmp.ne.s32.totalorder %s259, %s262
      %p271 = scmp.eq.s32.totalorder %s23, 1
      %p272 = por %p270, %p271
      %p273 = scmp.ne.s32.totalorder %s262, %s263
      %p274 = scmp.eq.s32.totalorder %s23, 0
      %p275 = por %p273, %p274
      %p276 = scmp.ne.s32.totalorder %s262, %s263
      %p277 = scmp.eq.s32.totalorder %s24, 1
      %p278 = por %p276, %p277
      %p280 = scmp.ne.s32.totalorder %s263, %s279
      %p281 = scmp.eq.s32.totalorder %s24, 0
      %p282 = por %p280, %p281
      %p283 = scmp.le.s32.totalorder 1, %s18
      %p284 = scmp.lt.s32.totalorder %s18, 3
      %p285 = pnand %p283, %p284
      %p286 = pneg %p285
      // Predicated region
      $region9: #{tpu_custom_call.1} parent=5 // pred_check
        _
      $region10: #{tpu_custom_call.1} parent=5 // pred_check_branch
        %288 = sbr.rel (%p285) target = $region12
      $region11: #{tpu_custom_call.1} parent=5 // pred_region
        %s289 = ssub.s32 %s18, 1
        // Predicated region
        $region13: #{tpu_custom_call.1} parent=11 // pred_check
          %p290 = pneg %p56
        $region14: #{tpu_custom_call.1} parent=11 // pred_check_branch
          %292 = sbr.rel (%p290) target = $region16
        $region15: #{tpu_custom_call.1} parent=11 // pred_region
          %s293 = smul.u32 2, %s27
          %s295 = ssub.s32 256, 256
          %296 = vsyncadd [#allocation4], %s295
          %s297 = smul.addr %s293, 128
          %s298 = scalar_lea.hbm %s0, %s297
          %s299 = sshll.u32 [#allocation3], 4
          %s300 = int_to_ptr.vmem [resolvable:$true] %s299
          %305 = dma.hbm_to_vmem [thread:$0]  %s298, 256, %s300, [#allocation4], 128, 128, 8
        $region16: #{tpu_custom_call.1} parent=11 // pred_fallthru
          _
        // Predicated region
        $region17: #{tpu_custom_call.1} parent=11 // pred_check
          %p306 = pneg %p77
        $region18: #{tpu_custom_call.1} parent=11 // pred_check_branch
          %308 = sbr.rel (%p306) target = $region20
        $region19: #{tpu_custom_call.1} parent=11 // pred_region
          %s310 = ssub.s32 128, 128
          %311 = vsyncadd [#allocation7], %s310
          %s312 = sshll.u32 [#allocation6], 4
          %s313 = int_to_ptr.vmem [resolvable:$true] %s312
          %318 = dma.hbm_to_vmem [thread:$0]  %s1, 128, %s313, [#allocation7], 64, 64, 4
        $region20: #{tpu_custom_call.1} parent=11 // pred_fallthru
          _
        // Predicated region
        $region21: #{tpu_custom_call.1} parent=11 // pred_check
          %p319 = pneg %p98
        $region22: #{tpu_custom_call.1} parent=11 // pred_check_branch
          %321 = sbr.rel (%p319) target = $region24
        $region23: #{tpu_custom_call.1} parent=11 // pred_region
          _
        $region24: #{tpu_custom_call.1} parent=11 // pred_fallthru
          _
        // Predicated region
        $region25: #{tpu_custom_call.1} parent=11 // pred_check
          %p322 = pneg %p119
        $region26: #{tpu_custom_call.1} parent=11 // pred_check_branch
          %324 = sbr.rel (%p322) target = $region28
        $region27: #{tpu_custom_call.1} parent=11 // pred_region
          %s326 = ssub.s32 128, 128
          %327 = vsyncadd [#allocation7], %s326
          %s329 = sshll.u32 [#allocation8], 4
          %s330 = int_to_ptr.vmem [resolvable:$true] %s329
          %332 = dma.hbm_to_vmem [thread:$0]  %s3, 128, %s330, [#allocation7]
        $region28: #{tpu_custom_call.1} parent=11 // pred_fallthru
          _
      $region12: #{tpu_custom_call.1} parent=5 // pred_fallthru
        _
      %p333 = scmp.lt.s32.totalorder %s18, 2
      // Predicated region
      $region29: #{tpu_custom_call.1} parent=5 // pred_check
        %p334 = pneg %p333
      $region30: #{tpu_custom_call.1} parent=5 // pred_check_branch
        %336 = sbr.rel (%p334) target = $region32
      $region31: #{tpu_custom_call.1} parent=5 // pred_region
        // Predicated region
        $region33: #{tpu_custom_call.1} parent=31 // pred_check
          %p337 = pneg %p139
        $region34: #{tpu_custom_call.1} parent=31 // pred_check_branch
          %339 = sbr.rel (%p337) target = $region36
        $region35: #{tpu_custom_call.1} parent=31 // pred_region
          %p340 = scmp.lt.s32.totalorder %s26, 1
          %s341 = scalar_select %p340, %s26, 1
          %s342 = smul.addr %s341, 4
          %s343 = smul.addr %s342, 4
          %s344 = scalar_lea.vmem %s4, %s343
        $region36: #{tpu_custom_call.1} parent=31 // pred_fallthru
          _
        // Predicated region
        $region37: #{tpu_custom_call.1} parent=31 // pred_check
          %p345 = pneg %p165
        $region38: #{tpu_custom_call.1} parent=31 // pred_check_branch
          %347 = sbr.rel (%p345) target = $region40
        $region39: #{tpu_custom_call.1} parent=31 // pred_region
          %p348 = scmp.lt.s32.totalorder %s26, 1
          %s349 = scalar_select %p348, %s26, 1
          %s350 = smul.addr %s349, 4
          %s351 = smul.addr %s350, 4
          %s352 = scalar_lea.vmem %s5, %s351
        $region40: #{tpu_custom_call.1} parent=31 // pred_fallthru
          _
        // Predicated region
        $region41: #{tpu_custom_call.1} parent=31 // pred_check
          %p353 = pneg %p191
        $region42: #{tpu_custom_call.1} parent=31 // pred_check_branch
          %355 = sbr.rel (%p353) target = $region44
        $region43: #{tpu_custom_call.1} parent=31 // pred_region
          %p356 = scmp.lt.s32.totalorder %s26, 1
          %s357 = scalar_select %p356, %s26, 1
          %s358 = smul.addr %s357, 4
          %s359 = smul.addr %s358, 4
          %s360 = scalar_lea.vmem %s6, %s359
        $region44: #{tpu_custom_call.1} parent=31 // pred_fallthru
          _
        // Predicated region
        $region45: #{tpu_custom_call.1} parent=31 // pred_check
          %p361 = pneg %p217
        $region46: #{tpu_custom_call.1} parent=31 // pred_check_branch
          %363 = sbr.rel (%p361) target = $region48
        $region47: #{tpu_custom_call.1} parent=31 // pred_region
          %p364 = scmp.lt.s32.totalorder %s26, 1
          %s365 = scalar_select %p364, %s26, 1
          %s366 = smul.addr %s365, 8
          %s367 = smul.addr %s366, 4
          %s368 = scalar_lea.vmem %s7, %s367
        $region48: #{tpu_custom_call.1} parent=31 // pred_fallthru
          _
        // Predicated region
        $region49: #{tpu_custom_call.1} parent=31 // pred_check
          %p369 = pneg %p243
        $region50: #{tpu_custom_call.1} parent=31 // pred_check_branch
          %371 = sbr.rel (%p369) target = $region52
        $region51: #{tpu_custom_call.1} parent=31 // pred_region
          %p372 = scmp.lt.s32.totalorder %s26, 1
          %s373 = scalar_select %p372, %s26, 1
          %s374 = smul.addr %s373, 8
          %s375 = scalar_lea.vmem %s8, %s374
        $region52: #{tpu_custom_call.1} parent=31 // pred_fallthru
          _
      $region32: #{tpu_custom_call.1} parent=5 // pred_fallthru
        _
      %p376 = scmp.le.s32.totalorder 1, %s18
      %p377 = scmp.lt.s32.totalorder %s18, 3
      %p378 = pnand %p376, %p377
      %p379 = pneg %p378
      // Predicated region
      $region53: #{tpu_custom_call.1} parent=5 // pred_check
        _
      $region54: #{tpu_custom_call.1} parent=5 // pred_check_branch
        %381 = sbr.rel (%p378) target = $region56
      $region55: #{tpu_custom_call.1} parent=5 // pred_region
        %s382 = ssub.s32 %s18, 1
        // Predicated region
        $region57: #{tpu_custom_call.1} parent=55 // pred_check
          %p383 = pneg %p56
        $region58: #{tpu_custom_call.1} parent=55 // pred_check_branch
          %385 = sbr.rel (%p383) target = $region60
        $region59: #{tpu_custom_call.1} parent=55 // pred_region
          %386 = dma.done [#allocation4], 256
        $region60: #{tpu_custom_call.1} parent=55 // pred_fallthru
          _
        // Predicated region
        $region61: #{tpu_custom_call.1} parent=55 // pred_check
          %p387 = pneg %p77
        $region62: #{tpu_custom_call.1} parent=55 // pred_check_branch
          %389 = sbr.rel (%p387) target = $region64
        $region63: #{tpu_custom_call.1} parent=55 // pred_region
          %390 = dma.done [#allocation7], 128
        $region64: #{tpu_custom_call.1} parent=55 // pred_fallthru
          _
        // Predicated region
        $region65: #{tpu_custom_call.1} parent=55 // pred_check
          %p391 = pneg %p119
        $region66: #{tpu_custom_call.1} parent=55 // pred_check_branch
          %393 = sbr.rel (%p391) target = $region68
        $region67: #{tpu_custom_call.1} parent=55 // pred_region
          %394 = dma.done [#allocation7], 128
        $region68: #{tpu_custom_call.1} parent=55 // pred_fallthru
          _
        %p395 = pneg %p56
        %p396 = pneg %p53
        %p397 = pneg %p77
        %p398 = pneg %p74
        %p399 = pneg %p98
        %p400 = pneg %p95
        %p401 = pneg %p119
        %p402 = pneg %p116
        %p403 = scmp.lt.s32.totalorder %s28, 1
        %s404 = scalar_select %p403, %s28, 1
        %s405 = smul.addr %s404, 4
        %s406 = smul.addr %s405, 4
        %s407 = scalar_lea.vmem %s4, %s406
        %p408 = pneg %p145
        %p409 = pneg %p142
        %p410 = scmp.lt.s32.totalorder %s28, 1
        %s411 = scalar_select %p410, %s28, 1
        %s412 = smul.addr %s411, 4
        %s413 = smul.addr %s412, 4
        %s414 = scalar_lea.vmem %s5, %s413
        %p415 = pneg %p171
        %p416 = pneg %p168
        %p417 = scmp.lt.s32.totalorder %s28, 1
        %s418 = scalar_select %p417, %s28, 1
        %s419 = smul.addr %s418, 4
        %s420 = smul.addr %s419, 4
        %s421 = scalar_lea.vmem %s6, %s420
        %p422 = pneg %p197
        %p423 = pneg %p194
        %p424 = scmp.lt.s32.totalorder %s28, 1
        %s425 = scalar_select %p424, %s28, 1
        %s426 = smul.addr %s425, 8
        %s427 = smul.addr %s426, 4
        %s428 = scalar_lea.vmem %s7, %s427
        %p429 = pneg %p223
        %p430 = pneg %p220
        %p431 = scmp.lt.s32.totalorder %s28, 1
        %s432 = scalar_select %p431, %s28, 1
        %s433 = smul.addr %s432, 8
        %s434 = scalar_lea.vmem %s8, %s433
        %p435 = pneg %p249
        %p436 = pneg %p246
        %p437 = pneg %p275
        %p438 = pneg %p272
        %s439 = smul.u32 2, %s27
        %p440 = scmp.lt.s32.totalorder %s28, 1
        %s441 = scalar_select %p440, %s28, 1
        %s442 = smul.addr %s441, 4
        %s443 = smul.addr %s442, 4
        %s444 = scalar_lea.vmem %s4, %s443
        %p445 = scmp.lt.s32.totalorder %s28, 1
        %s446 = scalar_select %p445, %s28, 1
        %s447 = smul.addr %s446, 4
        %s448 = smul.addr %s447, 4
        %s449 = scalar_lea.vmem %s5, %s448
        %p450 = scmp.lt.s32.totalorder %s28, 1
        %s451 = scalar_select %p450, %s28, 1
        %s452 = smul.addr %s451, 4
        %s453 = smul.addr %s452, 4
        %s454 = scalar_lea.vmem %s6, %s453
        %p455 = scmp.lt.s32.totalorder %s28, 1
        %s456 = scalar_select %p455, %s28, 1
        %s457 = smul.addr %s456, 8
        %s458 = smul.addr %s457, 4
        %s459 = scalar_lea.vmem %s7, %s458
        %p460 = scmp.lt.s32.totalorder %s28, 1
        %s461 = scalar_select %p460, %s28, 1
        %s462 = smul.addr %s461, 8
        %s463 = scalar_lea.vmem %s8, %s462
        %s464 = smul.u32 2, %s27
        %p466 = scmp.eq.s32.totalorder %s28, 0
        // Predicated region
        $region69: #{tpu_custom_call.1} parent=55 // pred_check
          %p467 = pneg %p466
        $region70: #{tpu_custom_call.1} parent=55 // pred_check_branch
          %469 = sbr.rel (%p467) target = $region72
        $region71: #{tpu_custom_call.1} parent=55 // pred_region
          %v470 = vld [vmem:[#allocation3] sm:$0xff]
          %v471 = vld [vmem:[#allocation3 + $0x8] sm:$0xff]
          %v472 = vpack.c.bf16 %v471, %v470
          %v473 = vld [vmem:[#allocation6] sm:$0xf]
          %v474 = vld [vmem:[#allocation6 + $0x4] sm:$0xf]
          %v475 = vld [vmem:[%s2] sm:$0x1]
          %v477 = vlaneseq
          %v478 = vshrl.u32 %v477, 7
          %v479 = vsub.s32 0, %v478
          %v480 = vrot.slane %v475, %v479
          %v484 = vunpack.c.l.b16 %v473
          %v485 = vunpack.c.l.b16 %v474
          %v486 = vpack.c.b16 %v485, %v484
          %vm488 = vcmask 130048
          %v490 = vsel %vm488, %v472, 0
          %492 = vmatprep.subr.bf16.mxu0 0
          %493 = vmatpush1.bf16.msra.mxu0 %v486
          %494 = vmatprep.subr.bf16.mxu0 0
          %495 = vmatpush1.bf16.msra.mxu0 0
          %496 = vmatprep.subr.bf16.mxu0 0
          %497 = vmatpush1.bf16.msra.mxu0 0
          %498 = vmatprep.subr.bf16.mxu0 0
          %499 = vmatpush1.bf16.msra.mxu0 0
          %500 = vmatprep.subr.bf16.mxu0 0
          %501 = vmatpush1.bf16.msra.mxu0 0
          %502 = vmatprep.subr.bf16.mxu0 0
          %503 = vmatpush1.bf16.msra.mxu0 0
          %504 = vmatprep.subr.bf16.mxu0 0
          %505 = vmatpush1.bf16.msra.mxu0 0
          %506 = vmatprep.subr.bf16.mxu0 0
          %507 = vmatpush1.bf16.msra.mxu0 0
          %508 = vmatprep.subr.bf16.mxu0 0
          %509 = vmatpush1.bf16.msra.mxu0 0
          %510 = vmatprep.subr.bf16.mxu0 0
          %511 = vmatpush1.bf16.msra.mxu0 0
          %512 = vmatprep.subr.bf16.mxu0 0
          %513 = vmatpush1.bf16.msra.mxu0 0
          %514 = vmatprep.subr.bf16.mxu0 0
          %515 = vmatpush1.bf16.msra.mxu0 0
          %516 = vmatprep.subr.bf16.mxu0 0
          %517 = vmatpush1.bf16.msra.mxu0 0
          %518 = vmatprep.subr.bf16.mxu0 0
          %519 = vmatpush1.bf16.msra.mxu0 0
          %520 = vmatprep.subr.bf16.mxu0 0
          %521 = vmatpush1.bf16.msra.mxu0 0
          %522 = vmatprep.subr.bf16.mxu0 0
          %523 = vmatpush1.bf16.msra.mxu0 0
          %524 = vmatprep.mubr.bf16.mxu0 0
          %525 = vmatmul.mubr.bf16.gmra.mrb[0].mxu0 %v490
          %v526 = vpop.f32.mrb[0].mxu0
          %v527 = vadd.f32 %v480, %v526
          %v528 = vpop.f32.mrb[0].mxu0
          %v529 = vpop.f32.mrb[0].mxu0
          %v530 = vadd.f32 %v480, %v529
          %v531 = vpop.f32.mrb[0].mxu0
          %532 = vdwg.mxu0
          %v533 = vld [vmem:[#allocation8] sm:$0xff]
          %v534 = vadd.f32 %v527, %v533
          %v535 = vadd.f32 %v530, %v533
          %vm536 = vcmask 261120
          %537 = vst.msk [vmem:[#allocation2] sm:$0xff] %vm536, %v534
          %538 = vst.msk [vmem:[#allocation2 + $0x8] sm:$0xff] %vm536, %v535
        $region72: #{tpu_custom_call.1} parent=55 // pred_fallthru
          _
        %v539 = vld [vmem:[#allocation2] sm:$0xff]
        %v540 = vld [vmem:[#allocation2 + $0x8] sm:$0xff]
        %v541 = vpack.c.bf16 %v540, %v539
        %v542 = vld [vmem:[%s463] sm:$0xff]
        %v543 = vld [vmem:[%s444] sm:$0xf]
        %v544 = vld [vmem:[%s444 + $0x4] sm:$0xf]
        %v545 = vld [vmem:[%s444 + $0x8] sm:$0xf]
        %v546 = vld [vmem:[%s444 + $0xc] sm:$0xf]
        %v547 = vlaneseq
        %v548 = vshrl.u32 %v547, 7
        %v549 = vsub.s32 0, %v548
        %v550 = vrot.slane %v542, %v549
        %v555 = vunpack.c.l.b16 %v543
        %v556 = vunpack.c.l.b16 %v544
        %v557 = vunpack.c.l.b16 %v545
        %v558 = vunpack.c.l.b16 %v546
        %v559 = vpack.c.b16 %v556, %v555
        %v560 = vpack.c.b16 %v558, %v557
        %vm563 = vcmask 261120
        %v565 = vsel %vm563, %v541, 0
        %567 = vmatprep.subr.bf16.mxu0 0
        %568 = vmatpush1.bf16.msra.mxu0 %v559
        %569 = vmatprep.subr.bf16.mxu0 0
        %570 = vmatpush1.bf16.msra.mxu0 %v560
        %571 = vmatprep.subr.bf16.mxu0 0
        %572 = vmatpush1.bf16.msra.mxu0 0
        %573 = vmatprep.subr.bf16.mxu0 0
        %574 = vmatpush1.bf16.msra.mxu0 0
        %575 = vmatprep.subr.bf16.mxu0 0
        %576 = vmatpush1.bf16.msra.mxu0 0
        %577 = vmatprep.subr.bf16.mxu0 0
        %578 = vmatpush1.bf16.msra.mxu0 0
        %579 = vmatprep.subr.bf16.mxu0 0
        %580 = vmatpush1.bf16.msra.mxu0 0
        %581 = vmatprep.subr.bf16.mxu0 0
        %582 = vmatpush1.bf16.msra.mxu0 0
        %583 = vmatprep.subr.bf16.mxu0 0
        %584 = vmatpush1.bf16.msra.mxu0 0
        %585 = vmatprep.subr.bf16.mxu0 0
        %586 = vmatpush1.bf16.msra.mxu0 0
        %587 = vmatprep.subr.bf16.mxu0 0
        %588 = vmatpush1.bf16.msra.mxu0 0
        %589 = vmatprep.subr.bf16.mxu0 0
        %590 = vmatpush1.bf16.msra.mxu0 0
        %591 = vmatprep.subr.bf16.mxu0 0
        %592 = vmatpush1.bf16.msra.mxu0 0
        %593 = vmatprep.subr.bf16.mxu0 0
        %594 = vmatpush1.bf16.msra.mxu0 0
        %595 = vmatprep.subr.bf16.mxu0 0
        %596 = vmatpush1.bf16.msra.mxu0 0
        %597 = vmatprep.subr.bf16.mxu0 0
        %598 = vmatpush1.bf16.msra.mxu0 0
        %599 = vmatprep.mubr.bf16.mxu0 0
        %600 = vmatmul.mubr.bf16.gmra.mrb[0].mxu0 %v565
        %v601 = vpop.f32.mrb[0].mxu0
        %v602 = vadd.f32 %v550, %v601
        %v603 = vpop.f32.mrb[0].mxu0
        %v604 = vpop.f32.mrb[0].mxu0
        %v605 = vadd.f32 %v550, %v604
        %v606 = vpop.f32.mrb[0].mxu0
        %607 = vdwg.mxu0
        %v608 = vpack.c.bf16 %v605, %v602
        %v610 = vunpack.c.l.b16 %v608
        %v611 = vunpack.c.h.b16 %v608
        %v612 = vpack.c.b16 %v610, %v610
        %v613 = vpack.c.b16 %v611, %v611
        %614 = vrot.lane.b32.xlu0 %v612, 96
        %v615 = vpop.permute.xlu0 %614
        %vm616 = vcmask 64512
        %v618 = vsel %vm616, %v612, 0
        %v621 = vsel %vm616, %v615, 0
        %623 = vmatprep.subr.bf16.mxu0 0
        %624 = vmatpush1.bf16.xpose.msra.mxu0 %v621
        %625 = vmatprep.subr.bf16.mxu0 0
        %626 = vmatpush1.bf16.xpose.msra.mxu0 0
        %627 = vmatprep.subr.bf16.mxu0 0
        %628 = vmatpush1.bf16.xpose.msra.mxu0 0
        %629 = vmatprep.subr.bf16.mxu0 0
        %630 = vmatpush1.bf16.xpose.msra.mxu0 0
        %631 = vmatprep.subr.bf16.mxu0 0
        %632 = vmatpush1.bf16.xpose.msra.mxu0 0
        %633 = vmatprep.subr.bf16.mxu0 0
        %634 = vmatpush1.bf16.xpose.msra.mxu0 0
        %635 = vmatprep.subr.bf16.mxu0 0
        %636 = vmatpush1.bf16.xpose.msra.mxu0 0
        %637 = vmatprep.subr.bf16.mxu0 0
        %638 = vmatpush1.bf16.xpose.msra.mxu0 0
        %639 = vmatprep.subr.bf16.mxu0 0
        %640 = vmatpush1.bf16.xpose.msra.mxu0 0
        %641 = vmatprep.subr.bf16.mxu0 0
        %642 = vmatpush1.bf16.xpose.msra.mxu0 0
        %643 = vmatprep.subr.bf16.mxu0 0
        %644 = vmatpush1.bf16.xpose.msra.mxu0 0
        %645 = vmatprep.subr.bf16.mxu0 0
        %646 = vmatpush1.bf16.xpose.msra.mxu0 0
        %647 = vmatprep.subr.bf16.mxu0 0
        %648 = vmatpush1.bf16.xpose.msra.mxu0 0
        %649 = vmatprep.subr.bf16.mxu0 0
        %650 = vmatpush1.bf16.xpose.msra.mxu0 0
        %651 = vmatprep.subr.bf16.mxu0 0
        %652 = vmatpush1.bf16.xpose.msra.mxu0 0
        %653 = vmatprep.subr.bf16.mxu0 0
        %654 = vmatpush1.bf16.xpose.msra.mxu0 0
        %655 = vmatprep.mubr.bf16.mxu0 0
        %656 = vmatmul.mubr.bf16.gmra.mrb[0].mxu0 %v618
        %v657 = vpop.f32.mrb[0].mxu0
        %v658 = vadd.f32 0.0, %v657
        %v659 = vpop.f32.mrb[0].mxu0
        %v660 = vpop.f32.mrb[0].mxu0
        %v661 = vpop.f32.mrb[0].mxu0
        %662 = vdwg.mxu0
        %663 = vrot.lane.b32.xlu0 %v613, 96
        %v664 = vpop.permute.xlu0 %663
        %v666 = vsel %vm616, %v613, 0
        %v669 = vsel %vm616, %v664, 0
        %671 = vmatprep.subr.bf16.mxu0 0
        %672 = vmatpush1.bf16.xpose.msra.mxu0 %v669
        %673 = vmatprep.subr.bf16.mxu0 0
        %674 = vmatpush1.bf16.xpose.msra.mxu0 0
        %675 = vmatprep.subr.bf16.mxu0 0
        %676 = vmatpush1.bf16.xpose.msra.mxu0 0
        %677 = vmatprep.subr.bf16.mxu0 0
        %678 = vmatpush1.bf16.xpose.msra.mxu0 0
        %679 = vmatprep.subr.bf16.mxu0 0
        %680 = vmatpush1.bf16.xpose.msra.mxu0 0
        %681 = vmatprep.subr.bf16.mxu0 0
        %682 = vmatpush1.bf16.xpose.msra.mxu0 0
        %683 = vmatprep.subr.bf16.mxu0 0
        %684 = vmatpush1.bf16.xpose.msra.mxu0 0
        %685 = vmatprep.subr.bf16.mxu0 0
        %686 = vmatpush1.bf16.xpose.msra.mxu0 0
        %687 = vmatprep.subr.bf16.mxu0 0
        %688 = vmatpush1.bf16.xpose.msra.mxu0 0
        %689 = vmatprep.subr.bf16.mxu0 0
        %690 = vmatpush1.bf16.xpose.msra.mxu0 0
        %691 = vmatprep.subr.bf16.mxu0 0
        %692 = vmatpush1.bf16.xpose.msra.mxu0 0
        %693 = vmatprep.subr.bf16.mxu0 0
        %694 = vmatpush1.bf16.xpose.msra.mxu0 0
        %695 = vmatprep.subr.bf16.mxu0 0
        %696 = vmatpush1.bf16.xpose.msra.mxu0 0
        %697 = vmatprep.subr.bf16.mxu0 0
        %698 = vmatpush1.bf16.xpose.msra.mxu0 0
        %699 = vmatprep.subr.bf16.mxu0 0
        %700 = vmatpush1.bf16.xpose.msra.mxu0 0
        %701 = vmatprep.subr.bf16.mxu0 0
        %702 = vmatpush1.bf16.xpose.msra.mxu0 0
        %703 = vmatprep.mubr.bf16.mxu0 0
        %704 = vmatmul.mubr.bf16.gmra.mrb[0].mxu0 %v666
        %v705 = vpop.f32.mrb[0].mxu0
        %v706 = vadd.f32 0.0, %v705
        %v707 = vpop.f32.mrb[0].mxu0
        %v708 = vpop.f32.mrb[0].mxu0
        %v709 = vpop.f32.mrb[0].mxu0
        %710 = vdwg.mxu0
        %v711 = vmul.f32 %v658, 0.35355338
        %v712 = vmul.f32 %v706, 0.35355338
        %v713 = vsel %vm616, %v711, -inf
        %714 = vmax.xlane.f32.xlu0 %v713
        %v715 = vpop.xlane.xlu0 %714
        %v716 = vsel %vm616, %v712, -inf
        %717 = vmax.xlane.f32.xlu0 %v716
        %v718 = vpop.xlane.xlu0 %717
        %v719 = vsub.f32 %v711, %v715
        %v720 = vsub.f32 %v712, %v718
        %v721 = vmul.f32 %v719, 1.442695
        %v722 = vpow.pop %v721
        %v723 = vmul.f32 %v720, 1.442695
        %v724 = vpow.pop %v723
        %v725 = vsel %vm616, %v722, 0.0
        %726 = vadd.xlane.f32.xlu0 %v725
        %v727 = vpop.xlane.xlu0 %726
        %v728 = vsel %vm616, %v724, 0.0
        %729 = vadd.xlane.f32.xlu0 %v728
        %v730 = vpop.xlane.xlu0 %729
        %v731 = vrcp.pop %v727
        %v732 = vrcp.pop %v730
        %v733 = vmul.f32 %v722, %v731
        %v734 = vmul.f32 %v724, %v732
        %v735 = vpack.c.bf16 %v733, %v733
        %v736 = vpack.c.bf16 %v734, %v734
        %737 = vrot.lane.b32.xlu0 %v612, 64
        %v738 = vpop.permute.xlu0 %737
        %v740 = vsel %vm616, %v735, 0
        %vm742 = vcmask 1043456
        %v744 = vsel %vm742, %v738, 0
        %746 = vmatprep.subr.bf16.mxu0 0
        %747 = vmatpush1.bf16.msra.mxu0 %v744
        %748 = vmatprep.subr.bf16.mxu0 0
        %749 = vmatpush1.bf16.msra.mxu0 0
        %750 = vmatprep.subr.bf16.mxu0 0
        %751 = vmatpush1.bf16.msra.mxu0 0
        %752 = vmatprep.subr.bf16.mxu0 0
        %753 = vmatpush1.bf16.msra.mxu0 0
        %754 = vmatprep.subr.bf16.mxu0 0
        %755 = vmatpush1.bf16.msra.mxu0 0
        %756 = vmatprep.subr.bf16.mxu0 0
        %757 = vmatpush1.bf16.msra.mxu0 0
        %758 = vmatprep.subr.bf16.mxu0 0
        %759 = vmatpush1.bf16.msra.mxu0 0
        %760 = vmatprep.subr.bf16.mxu0 0
        %761 = vmatpush1.bf16.msra.mxu0 0
        %762 = vmatprep.subr.bf16.mxu0 0
        %763 = vmatpush1.bf16.msra.mxu0 0
        %764 = vmatprep.subr.bf16.mxu0 0
        %765 = vmatpush1.bf16.msra.mxu0 0
        %766 = vmatprep.subr.bf16.mxu0 0
        %767 = vmatpush1.bf16.msra.mxu0 0
        %768 = vmatprep.subr.bf16.mxu0 0
        %769 = vmatpush1.bf16.msra.mxu0 0
        %770 = vmatprep.subr.bf16.mxu0 0
        %771 = vmatpush1.bf16.msra.mxu0 0
        %772 = vmatprep.subr.bf16.mxu0 0
        %773 = vmatpush1.bf16.msra.mxu0 0
        %774 = vmatprep.subr.bf16.mxu0 0
        %775 = vmatpush1.bf16.msra.mxu0 0
        %776 = vmatprep.subr.bf16.mxu0 0
        %777 = vmatpush1.bf16.msra.mxu0 0
        %778 = vmatprep.mubr.bf16.mxu0 0
        %779 = vmatmul.mubr.bf16.gmra.mrb[0].mxu0 %v740
        %v780 = vpop.f32.mrb[0].mxu0
        %v781 = vadd.f32 0.0, %v780
        %v782 = vpop.f32.mrb[0].mxu0
        %v783 = vpop.f32.mrb[0].mxu0
        %v784 = vpop.f32.mrb[0].mxu0
        %785 = vdwg.mxu0
        %786 = vrot.lane.b32.xlu0 %v613, 64
        %v787 = vpop.permute.xlu0 %786
        %v789 = vsel %vm616, %v736, 0
        %v792 = vsel %vm742, %v787, 0
        %794 = vmatprep.subr.bf16.mxu0 0
        %795 = vmatpush1.bf16.msra.mxu0 %v792
        %796 = vmatprep.subr.bf16.mxu0 0
        %797 = vmatpush1.bf16.msra.mxu0 0
        %798 = vmatprep.subr.bf16.mxu0 0
        %799 = vmatpush1.bf16.msra.mxu0 0
        %800 = vmatprep.subr.bf16.mxu0 0
        %801 = vmatpush1.bf16.msra.mxu0 0
        %802 = vmatprep.subr.bf16.mxu0 0
        %803 = vmatpush1.bf16.msra.mxu0 0
        %804 = vmatprep.subr.bf16.mxu0 0
        %805 = vmatpush1.bf16.msra.mxu0 0
        %806 = vmatprep.subr.bf16.mxu0 0
        %807 = vmatpush1.bf16.msra.mxu0 0
        %808 = vmatprep.subr.bf16.mxu0 0
        %809 = vmatpush1.bf16.msra.mxu0 0
        %810 = vmatprep.subr.bf16.mxu0 0
        %811 = vmatpush1.bf16.msra.mxu0 0
        %812 = vmatprep.subr.bf16.mxu0 0
        %813 = vmatpush1.bf16.msra.mxu0 0
        %814 = vmatprep.subr.bf16.mxu0 0
        %815 = vmatpush1.bf16.msra.mxu0 0
        %816 = vmatprep.subr.bf16.mxu0 0
        %817 = vmatpush1.bf16.msra.mxu0 0
        %818 = vmatprep.subr.bf16.mxu0 0
        %819 = vmatpush1.bf16.msra.mxu0 0
        %820 = vmatprep.subr.bf16.mxu0 0
        %821 = vmatpush1.bf16.msra.mxu0 0
        %822 = vmatprep.subr.bf16.mxu0 0
        %823 = vmatpush1.bf16.msra.mxu0 0
        %824 = vmatprep.subr.bf16.mxu0 0
        %825 = vmatpush1.bf16.msra.mxu0 0
        %826 = vmatprep.mubr.bf16.mxu0 0
        %827 = vmatmul.mubr.bf16.gmra.mrb[0].mxu0 %v789
        %v828 = vpop.f32.mrb[0].mxu0
        %v829 = vadd.f32 0.0, %v828
        %v830 = vpop.f32.mrb[0].mxu0
        %v831 = vpop.f32.mrb[0].mxu0
        %v832 = vpop.f32.mrb[0].mxu0
        %833 = vdwg.mxu0
        %834 = vrot.lane.b32.xlu0 %v612, 120
        %v835 = vpop.permute.xlu0 %834
        %836 = vrot.lane.b32.xlu0 %v612, 88
        %v837 = vpop.permute.xlu0 %836
        %v839 = vsel %vm616, %v835, 0
        %v842 = vsel %vm616, %v837, 0
        %844 = vmatprep.subr.bf16.mxu0 0
        %845 = vmatpush1.bf16.xpose.msra.mxu0 %v842
        %846 = vmatprep.subr.bf16.mxu0 0
        %847 = vmatpush1.bf16.xpose.msra.mxu0 0
        %848 = vmatprep.subr.bf16.mxu0 0
        %849 = vmatpush1.bf16.xpose.msra.mxu0 0
        %850 = vmatprep.subr.bf16.mxu0 0
        %851 = vmatpush1.bf16.xpose.msra.mxu0 0
        %852 = vmatprep.subr.bf16.mxu0 0
        %853 = vmatpush1.bf16.xpose.msra.mxu0 0
        %854 = vmatprep.subr.bf16.mxu0 0
        %855 = vmatpush1.bf16.xpose.msra.mxu0 0
        %856 = vmatprep.subr.bf16.mxu0 0
        %857 = vmatpush1.bf16.xpose.msra.mxu0 0
        %858 = vmatprep.subr.bf16.mxu0 0
        %859 = vmatpush1.bf16.xpose.msra.mxu0 0
        %860 = vmatprep.subr.bf16.mxu0 0
        %861 = vmatpush1.bf16.xpose.msra.mxu0 0
        %862 = vmatprep.subr.bf16.mxu0 0
        %863 = vmatpush1.bf16.xpose.msra.mxu0 0
        %864 = vmatprep.subr.bf16.mxu0 0
        %865 = vmatpush1.bf16.xpose.msra.mxu0 0
        %866 = vmatprep.subr.bf16.mxu0 0
        %867 = vmatpush1.bf16.xpose.msra.mxu0 0
        %868 = vmatprep.subr.bf16.mxu0 0
        %869 = vmatpush1.bf16.xpose.msra.mxu0 0
        %870 = vmatprep.subr.bf16.mxu0 0
        %871 = vmatpush1.bf16.xpose.msra.mxu0 0
        %872 = vmatprep.subr.bf16.mxu0 0
        %873 = vmatpush1.bf16.xpose.msra.mxu0 0
        %874 = vmatprep.subr.bf16.mxu0 0
        %875 = vmatpush1.bf16.xpose.msra.mxu0 0
        %876 = vmatprep.mubr.bf16.mxu0 0
        %877 = vmatmul.mubr.bf16.gmra.mrb[0].mxu0 %v839
        %v878 = vpop.f32.mrb[0].mxu0
        %v879 = vadd.f32 0.0, %v878
        %v880 = vpop.f32.mrb[0].mxu0
        %v881 = vpop.f32.mrb[0].mxu0
        %v882 = vpop.f32.mrb[0].mxu0
        %883 = vdwg.mxu0
        %884 = vrot.lane.b32.xlu0 %v613, 120
        %v885 = vpop.permute.xlu0 %884
        %886 = vrot.lane.b32.xlu0 %v613, 88
        %v887 = vpop.permute.xlu0 %886
        %v889 = vsel %vm616, %v885, 0
        %v892 = vsel %vm616, %v887, 0
        %894 = vmatprep.subr.bf16.mxu0 0
        %895 = vmatpush1.bf16.xpose.msra.mxu0 %v892
        %896 = vmatprep.subr.bf16.mxu0 0
        %897 = vmatpush1.bf16.xpose.msra.mxu0 0
        %898 = vmatprep.subr.bf16.mxu0 0
        %899 = vmatpush1.bf16.xpose.msra.mxu0 0
        %900 = vmatprep.subr.bf16.mxu0 0
        %901 = vmatpush1.bf16.xpose.msra.mxu0 0
        %902 = vmatprep.subr.bf16.mxu0 0
        %903 = vmatpush1.bf16.xpose.msra.mxu0 0
        %904 = vmatprep.subr.bf16.mxu0 0
        %905 = vmatpush1.bf16.xpose.msra.mxu0 0
        %906 = vmatprep.subr.bf16.mxu0 0
        %907 = vmatpush1.bf16.xpose.msra.mxu0 0
        %908 = vmatprep.subr.bf16.mxu0 0
        %909 = vmatpush1.bf16.xpose.msra.mxu0 0
        %910 = vmatprep.subr.bf16.mxu0 0
        %911 = vmatpush1.bf16.xpose.msra.mxu0 0
        %912 = vmatprep.subr.bf16.mxu0 0
        %913 = vmatpush1.bf16.xpose.msra.mxu0 0
        %914 = vmatprep.subr.bf16.mxu0 0
        %915 = vmatpush1.bf16.xpose.msra.mxu0 0
        %916 = vmatprep.subr.bf16.mxu0 0
        %917 = vmatpush1.bf16.xpose.msra.mxu0 0
        %918 = vmatprep.subr.bf16.mxu0 0
        %919 = vmatpush1.bf16.xpose.msra.mxu0 0
        %920 = vmatprep.subr.bf16.mxu0 0
        %921 = vmatpush1.bf16.xpose.msra.mxu0 0
        %922 = vmatprep.subr.bf16.mxu0 0
        %923 = vmatpush1.bf16.xpose.msra.mxu0 0
        %924 = vmatprep.subr.bf16.mxu0 0
        %925 = vmatpush1.bf16.xpose.msra.mxu0 0
        %926 = vmatprep.mubr.bf16.mxu0 0
        %927 = vmatmul.mubr.bf16.gmra.mrb[0].mxu0 %v889
        %v928 = vpop.f32.mrb[0].mxu0
        %v929 = vadd.f32 0.0, %v928
        %v930 = vpop.f32.mrb[0].mxu0
        %v931 = vpop.f32.mrb[0].mxu0
        %v932 = vpop.f32.mrb[0].mxu0
        %933 = vdwg.mxu0
        %v934 = vmul.f32 %v879, 0.35355338
        %v935 = vmul.f32 %v929, 0.35355338
        %v936 = vsel %vm616, %v934, -inf
        %937 = vmax.xlane.f32.xlu0 %v936
        %v938 = vpop.xlane.xlu0 %937
        %v939 = vsel %vm616, %v935, -inf
        %940 = vmax.xlane.f32.xlu0 %v939
        %v941 = vpop.xlane.xlu0 %940
        %v942 = vsub.f32 %v934, %v938
        %v943 = vsub.f32 %v935, %v941
        %v944 = vmul.f32 %v942, 1.442695
        %v945 = vpow.pop %v944
        %v946 = vmul.f32 %v943, 1.442695
        %v947 = vpow.pop %v946
        %v948 = vsel %vm616, %v945, 0.0
        %949 = vadd.xlane.f32.xlu0 %v948
        %v950 = vpop.xlane.xlu0 %949
        %v951 = vsel %vm616, %v947, 0.0
        %952 = vadd.xlane.f32.xlu0 %v951
        %v953 = vpop.xlane.xlu0 %952
        %v954 = vrcp.pop %v950
        %v955 = vrcp.pop %v953
        %v956 = vmul.f32 %v945, %v954
        %v957 = vmul.f32 %v947, %v955
        %v958 = vpack.c.bf16 %v956, %v956
        %v959 = vpack.c.bf16 %v957, %v957
        %960 = vrot.lane.b32.xlu0 %v612, 56
        %v961 = vpop.permute.xlu0 %960
        %v963 = vsel %vm616, %v958, 0
        %v966 = vsel %vm742, %v961, 0
        %968 = vmatprep.subr.bf16.mxu0 0
        %969 = vmatpush1.bf16.msra.mxu0 %v966
        %970 = vmatprep.subr.bf16.mxu0 0
        %971 = vmatpush1.bf16.msra.mxu0 0
        %972 = vmatprep.subr.bf16.mxu0 0
        %973 = vmatpush1.bf16.msra.mxu0 0
        %974 = vmatprep.subr.bf16.mxu0 0
        %975 = vmatpush1.bf16.msra.mxu0 0
        %976 = vmatprep.subr.bf16.mxu0 0
        %977 = vmatpush1.bf16.msra.mxu0 0
        %978 = vmatprep.subr.bf16.mxu0 0
        %979 = vmatpush1.bf16.msra.mxu0 0
        %980 = vmatprep.subr.bf16.mxu0 0
        %981 = vmatpush1.bf16.msra.mxu0 0
        %982 = vmatprep.subr.bf16.mxu0 0
        %983 = vmatpush1.bf16.msra.mxu0 0
        %984 = vmatprep.subr.bf16.mxu0 0
        %985 = vmatpush1.bf16.msra.mxu0 0
        %986 = vmatprep.subr.bf16.mxu0 0
        %987 = vmatpush1.bf16.msra.mxu0 0
        %988 = vmatprep.subr.bf16.mxu0 0
        %989 = vmatpush1.bf16.msra.mxu0 0
        %990 = vmatprep.subr.bf16.mxu0 0
        %991 = vmatpush1.bf16.msra.mxu0 0
        %992 = vmatprep.subr.bf16.mxu0 0
        %993 = vmatpush1.bf16.msra.mxu0 0
        %994 = vmatprep.subr.bf16.mxu0 0
        %995 = vmatpush1.bf16.msra.mxu0 0
        %996 = vmatprep.subr.bf16.mxu0 0
        %997 = vmatpush1.bf16.msra.mxu0 0
        %998 = vmatprep.subr.bf16.mxu0 0
        %999 = vmatpush1.bf16.msra.mxu0 0
        %1000 = vmatprep.mubr.bf16.mxu0 0
        %1001 = vmatmul.mubr.bf16.gmra.mrb[0].mxu0 %v963
        %v1002 = vpop.f32.mrb[0].mxu0
        %v1003 = vadd.f32 0.0, %v1002
        %v1004 = vpop.f32.mrb[0].mxu0
        %v1005 = vpop.f32.mrb[0].mxu0
        %v1006 = vpop.f32.mrb[0].mxu0
        %1007 = vdwg.mxu0
        %1008 = vrot.lane.b32.xlu0 %v613, 56
        %v1009 = vpop.permute.xlu0 %1008
        %v1011 = vsel %vm616, %v959, 0
        %v1014 = vsel %vm742, %v1009, 0
        %1016 = vmatprep.subr.bf16.mxu0 0
        %1017 = vmatpush1.bf16.msra.mxu0 %v1014
        %1018 = vmatprep.subr.bf16.mxu0 0
        %1019 = vmatpush1.bf16.msra.mxu0 0
        %1020 = vmatprep.subr.bf16.mxu0 0
        %1021 = vmatpush1.bf16.msra.mxu0 0
        %1022 = vmatprep.subr.bf16.mxu0 0
        %1023 = vmatpush1.bf16.msra.mxu0 0
        %1024 = vmatprep.subr.bf16.mxu0 0
        %1025 = vmatpush1.bf16.msra.mxu0 0
        %1026 = vmatprep.subr.bf16.mxu0 0
        %1027 = vmatpush1.bf16.msra.mxu0 0
        %1028 = vmatprep.subr.bf16.mxu0 0
        %1029 = vmatpush1.bf16.msra.mxu0 0
        %1030 = vmatprep.subr.bf16.mxu0 0
        %1031 = vmatpush1.bf16.msra.mxu0 0
        %1032 = vmatprep.subr.bf16.mxu0 0
        %1033 = vmatpush1.bf16.msra.mxu0 0
        %1034 = vmatprep.subr.bf16.mxu0 0
        %1035 = vmatpush1.bf16.msra.mxu0 0
        %1036 = vmatprep.subr.bf16.mxu0 0
        %1037 = vmatpush1.bf16.msra.mxu0 0
        %1038 = vmatprep.subr.bf16.mxu0 0
        %1039 = vmatpush1.bf16.msra.mxu0 0
        %1040 = vmatprep.subr.bf16.mxu0 0
        %1041 = vmatpush1.bf16.msra.mxu0 0
        %1042 = vmatprep.subr.bf16.mxu0 0
        %1043 = vmatpush1.bf16.msra.mxu0 0
        %1044 = vmatprep.subr.bf16.mxu0 0
        %1045 = vmatpush1.bf16.msra.mxu0 0
        %1046 = vmatprep.subr.bf16.mxu0 0
        %1047 = vmatpush1.bf16.msra.mxu0 0
        %1048 = vmatprep.mubr.bf16.mxu0 0
        %1049 = vmatmul.mubr.bf16.gmra.mrb[0].mxu0 %v1011
        %v1050 = vpop.f32.mrb[0].mxu0
        %v1051 = vadd.f32 0.0, %v1050
        %v1052 = vpop.f32.mrb[0].mxu0
        %v1053 = vpop.f32.mrb[0].mxu0
        %v1054 = vpop.f32.mrb[0].mxu0
        %1055 = vdwg.mxu0
        %1056 = vrot.lane.b32.xlu0 %v612, 112
        %v1057 = vpop.permute.xlu0 %1056
        %1058 = vrot.lane.b32.xlu0 %v612, 80
        %v1059 = vpop.permute.xlu0 %1058
        %v1061 = vsel %vm616, %v1057, 0
        %v1064 = vsel %vm616, %v1059, 0
        %1066 = vmatprep.subr.bf16.mxu0 0
        %1067 = vmatpush1.bf16.xpose.msra.mxu0 %v1064
        %1068 = vmatprep.subr.bf16.mxu0 0
        %1069 = vmatpush1.bf16.xpose.msra.mxu0 0
        %1070 = vmatprep.subr.bf16.mxu0 0
        %1071 = vmatpush1.bf16.xpose.msra.mxu0 0
        %1072 = vmatprep.subr.bf16.mxu0 0
        %1073 = vmatpush1.bf16.xpose.msra.mxu0 0
        %1074 = vmatprep.subr.bf16.mxu0 0
        %1075 = vmatpush1.bf16.xpose.msra.mxu0 0
        %1076 = vmatprep.subr.bf16.mxu0 0
        %1077 = vmatpush1.bf16.xpose.msra.mxu0 0
        %1078 = vmatprep.subr.bf16.mxu0 0
        %1079 = vmatpush1.bf16.xpose.msra.mxu0 0
        %1080 = vmatprep.subr.bf16.mxu0 0
        %1081 = vmatpush1.bf16.xpose.msra.mxu0 0
        %1082 = vmatprep.subr.bf16.mxu0 0
        %1083 = vmatpush1.bf16.xpose.msra.mxu0 0
        %1084 = vmatprep.subr.bf16.mxu0 0
        %1085 = vmatpush1.bf16.xpose.msra.mxu0 0
        %1086 = vmatprep.subr.bf16.mxu0 0
        %1087 = vmatpush1.bf16.xpose.msra.mxu0 0
        %1088 = vmatprep.subr.bf16.mxu0 0
        %1089 = vmatpush1.bf16.xpose.msra.mxu0 0
        %1090 = vmatprep.subr.bf16.mxu0 0
        %1091 = vmatpush1.bf16.xpose.msra.mxu0 0
        %1092 = vmatprep.subr.bf16.mxu0 0
        %1093 = vmatpush1.bf16.xpose.msra.mxu0 0
        %1094 = vmatprep.subr.bf16.mxu0 0
        %1095 = vmatpush1.bf16.xpose.msra.mxu0 0
        %1096 = vmatprep.subr.bf16.mxu0 0
        %1097 = vmatpush1.bf16.xpose.msra.mxu0 0
        %1098 = vmatprep.mubr.bf16.mxu0 0
        %1099 = vmatmul.mubr.bf16.gmra.mrb[0].mxu0 %v1061
        %v1100 = vpop.f32.mrb[0].mxu0
        %v1101 = vadd.f32 0.0, %v1100
        %v1102 = vpop.f32.mrb[0].mxu0
        %v1103 = vpop.f32.mrb[0].mxu0
        %v1104 = vpop.f32.mrb[0].mxu0
        %1105 = vdwg.mxu0
        %1106 = vrot.lane.b32.xlu0 %v613, 112
        %v1107 = vpop.permute.xlu0 %1106
        %1108 = vrot.lane.b32.xlu0 %v613, 80
        %v1109 = vpop.permute.xlu0 %1108
        %v1111 = vsel %vm616, %v1107, 0
        %v1114 = vsel %vm616, %v1109, 0
        %1116 = vmatprep.subr.bf16.mxu0 0
        %1117 = vmatpush1.bf16.xpose.msra.mxu0 %v1114
        %1118 = vmatprep.subr.bf16.mxu0 0
        %1119 = vmatpush1.bf16.xpose.msra.mxu0 0
        %1120 = vmatprep.subr.bf16.mxu0 0
        %1121 = vmatpush1.bf16.xpose.msra.mxu0 0
        %1122 = vmatprep.subr.bf16.mxu0 0
        %1123 = vmatpush1.bf16.xpose.msra.mxu0 0
        %1124 = vmatprep.subr.bf16.mxu0 0
        %1125 = vmatpush1.bf16.xpose.msra.mxu0 0
        %1126 = vmatprep.subr.bf16.mxu0 0
        %1127 = vmatpush1.bf16.xpose.msra.mxu0 0
        %1128 = vmatprep.subr.bf16.mxu0 0
        %1129 = vmatpush1.bf16.xpose.msra.mxu0 0
        %1130 = vmatprep.subr.bf16.mxu0 0
        %1131 = vmatpush1.bf16.xpose.msra.mxu0 0
        %1132 = vmatprep.subr.bf16.mxu0 0
        %1133 = vmatpush1.bf16.xpose.msra.mxu0 0
        %1134 = vmatprep.subr.bf16.mxu0 0
        %1135 = vmatpush1.bf16.xpose.msra.mxu0 0
        %1136 = vmatprep.subr.bf16.mxu0 0
        %1137 = vmatpush1.bf16.xpose.msra.mxu0 0
        %1138 = vmatprep.subr.bf16.mxu0 0
        %1139 = vmatpush1.bf16.xpose.msra.mxu0 0
        %1140 = vmatprep.subr.bf16.mxu0 0
        %1141 = vmatpush1.bf16.xpose.msra.mxu0 0
        %1142 = vmatprep.subr.bf16.mxu0 0
        %1143 = vmatpush1.bf16.xpose.msra.mxu0 0
        %1144 = vmatprep.subr.bf16.mxu0 0
        %1145 = vmatpush1.bf16.xpose.msra.mxu0 0
        %1146 = vmatprep.subr.bf16.mxu0 0
        %1147 = vmatpush1.bf16.xpose.msra.mxu0 0
        %1148 = vmatprep.mubr.bf16.mxu0 0
        %1149 = vmatmul.mubr.bf16.gmra.mrb[0].mxu0 %v1111
        %v1150 = vpop.f32.mrb[0].mxu0
        %v1151 = vadd.f32 0.0, %v1150
        %v1152 = vpop.f32.mrb[0].mxu0
        %v1153 = vpop.f32.mrb[0].mxu0
        %v1154 = vpop.f32.mrb[0].mxu0
        %1155 = vdwg.mxu0
        %v1156 = vmul.f32 %v1101, 0.35355338
        %v1157 = vmul.f32 %v1151, 0.35355338
        %v1158 = vsel %vm616, %v1156, -inf
        %1159 = vmax.xlane.f32.xlu0 %v1158
        %v1160 = vpop.xlane.xlu0 %1159
        %v1161 = vsel %vm616, %v1157, -inf
        %1162 = vmax.xlane.f32.xlu0 %v1161
        %v1163 = vpop.xlane.xlu0 %1162
        %v1164 = vsub.f32 %v1156, %v1160
        %v1165 = vsub.f32 %v1157, %v1163
        %v1166 = vmul.f32 %v1164, 1.442695
        %v1167 = vpow.pop %v1166
        %v1168 = vmul.f32 %v1165, 1.442695
        %v1169 = vpow.pop %v1168
        %v1170 = vsel %vm616, %v1167, 0.0
        %1171 = vadd.xlane.f32.xlu0 %v1170
        %v1172 = vpop.xlane.xlu0 %1171
        %v1173 = vsel %vm616, %v1169, 0.0
        %1174 = vadd.xlane.f32.xlu0 %v1173
        %v1175 = vpop.xlane.xlu0 %1174
        %v1176 = vrcp.pop %v1172
        %v1177 = vrcp.pop %v1175
        %v1178 = vmul.f32 %v1167, %v1176
        %v1179 = vmul.f32 %v1169, %v1177
        %v1180 = vpack.c.bf16 %v1178, %v1178
        %v1181 = vpack.c.bf16 %v1179, %v1179
        %1182 = vrot.lane.b32.xlu0 %v612, 48
        %v1183 = vpop.permute.xlu0 %1182
        %v1185 = vsel %vm616, %v1180, 0
        %v1188 = vsel %vm742, %v1183, 0
        %1190 = vmatprep.subr.bf16.mxu0 0
        %1191 = vmatpush1.bf16.msra.mxu0 %v1188
        %1192 = vmatprep.subr.bf16.mxu0 0
        %1193 = vmatpush1.bf16.msra.mxu0 0
        %1194 = vmatprep.subr.bf16.mxu0 0
        %1195 = vmatpush1.bf16.msra.mxu0 0
        %1196 = vmatprep.subr.bf16.mxu0 0
        %1197 = vmatpush1.bf16.msra.mxu0 0
        %1198 = vmatprep.subr.bf16.mxu0 0
        %1199 = vmatpush1.bf16.msra.mxu0 0
        %1200 = vmatprep.subr.bf16.mxu0 0
        %1201 = vmatpush1.bf16.msra.mxu0 0
        %1202 = vmatprep.subr.bf16.mxu0 0
        %1203 = vmatpush1.bf16.msra.mxu0 0
        %1204 = vmatprep.subr.bf16.mxu0 0
        %1205 = vmatpush1.bf16.msra.mxu0 0
        %1206 = vmatprep.subr.bf16.mxu0 0
        %1207 = vmatpush1.bf16.msra.mxu0 0
        %1208 = vmatprep.subr.bf16.mxu0 0
        %1209 = vmatpush1.bf16.msra.mxu0 0
        %1210 = vmatprep.subr.bf16.mxu0 0
        %1211 = vmatpush1.bf16.msra.mxu0 0
        %1212 = vmatprep.subr.bf16.mxu0 0
        %1213 = vmatpush1.bf16.msra.mxu0 0
        %1214 = vmatprep.subr.bf16.mxu0 0
        %1215 = vmatpush1.bf16.msra.mxu0 0
        %1216 = vmatprep.subr.bf16.mxu0 0
        %1217 = vmatpush1.bf16.msra.mxu0 0
        %1218 = vmatprep.subr.bf16.mxu0 0
        %1219 = vmatpush1.bf16.msra.mxu0 0
        %1220 = vmatprep.subr.bf16.mxu0 0
        %1221 = vmatpush1.bf16.msra.mxu0 0
        %1222 = vmatprep.mubr.bf16.mxu0 0
        %1223 = vmatmul.mubr.bf16.gmra.mrb[0].mxu0 %v1185
        %v1224 = vpop.f32.mrb[0].mxu0
        %v1225 = vadd.f32 0.0, %v1224
        %v1226 = vpop.f32.mrb[0].mxu0
        %v1227 = vpop.f32.mrb[0].mxu0
        %v1228 = vpop.f32.mrb[0].mxu0
        %1229 = vdwg.mxu0
        %1230 = vrot.lane.b32.xlu0 %v613, 48
        %v1231 = vpop.permute.xlu0 %1230
        %v1233 = vsel %vm616, %v1181, 0
        %v1236 = vsel %vm742, %v1231, 0
        %1238 = vmatprep.subr.bf16.mxu0 0
        %1239 = vmatpush1.bf16.msra.mxu0 %v1236
        %1240 = vmatprep.subr.bf16.mxu0 0
        %1241 = vmatpush1.bf16.msra.mxu0 0
        %1242 = vmatprep.subr.bf16.mxu0 0
        %1243 = vmatpush1.bf16.msra.mxu0 0
        %1244 = vmatprep.subr.bf16.mxu0 0
        %1245 = vmatpush1.bf16.msra.mxu0 0
        %1246 = vmatprep.subr.bf16.mxu0 0
        %1247 = vmatpush1.bf16.msra.mxu0 0
        %1248 = vmatprep.subr.bf16.mxu0 0
        %1249 = vmatpush1.bf16.msra.mxu0 0
        %1250 = vmatprep.subr.bf16.mxu0 0
        %1251 = vmatpush1.bf16.msra.mxu0 0
        %1252 = vmatprep.subr.bf16.mxu0 0
        %1253 = vmatpush1.bf16.msra.mxu0 0
        %1254 = vmatprep.subr.bf16.mxu0 0
        %1255 = vmatpush1.bf16.msra.mxu0 0
        %1256 = vmatprep.subr.bf16.mxu0 0
        %1257 = vmatpush1.bf16.msra.mxu0 0
        %1258 = vmatprep.subr.bf16.mxu0 0
        %1259 = vmatpush1.bf16.msra.mxu0 0
        %1260 = vmatprep.subr.bf16.mxu0 0
        %1261 = vmatpush1.bf16.msra.mxu0 0
        %1262 = vmatprep.subr.bf16.mxu0 0
        %1263 = vmatpush1.bf16.msra.mxu0 0
        %1264 = vmatprep.subr.bf16.mxu0 0
        %1265 = vmatpush1.bf16.msra.mxu0 0
        %1266 = vmatprep.subr.bf16.mxu0 0
        %1267 = vmatpush1.bf16.msra.mxu0 0
        %1268 = vmatprep.subr.bf16.mxu0 0
        %1269 = vmatpush1.bf16.msra.mxu0 0
        %1270 = vmatprep.mubr.bf16.mxu0 0
        %1271 = vmatmul.mubr.bf16.gmra.mrb[0].mxu0 %v1233
        %v1272 = vpop.f32.mrb[0].mxu0
        %v1273 = vadd.f32 0.0, %v1272
        %v1274 = vpop.f32.mrb[0].mxu0
        %v1275 = vpop.f32.mrb[0].mxu0
        %v1276 = vpop.f32.mrb[0].mxu0
        %1277 = vdwg.mxu0
        %1278 = vrot.lane.b32.xlu0 %v612, 104
        %v1279 = vpop.permute.xlu0 %1278
        %1280 = vrot.lane.b32.xlu0 %v612, 72
        %v1281 = vpop.permute.xlu0 %1280
        %v1283 = vsel %vm616, %v1279, 0
        %v1286 = vsel %vm616, %v1281, 0
        %1288 = vmatprep.subr.bf16.mxu0 0
        %1289 = vmatpush1.bf16.xpose.msra.mxu0 %v1286
        %1290 = vmatprep.subr.bf16.mxu0 0
        %1291 = vmatpush1.bf16.xpose.msra.mxu0 0
        %1292 = vmatprep.subr.bf16.mxu0 0
        %1293 = vmatpush1.bf16.xpose.msra.mxu0 0
        %1294 = vmatprep.subr.bf16.mxu0 0
        %1295 = vmatpush1.bf16.xpose.msra.mxu0 0
        %1296 = vmatprep.subr.bf16.mxu0 0
        %1297 = vmatpush1.bf16.xpose.msra.mxu0 0
        %1298 = vmatprep.subr.bf16.mxu0 0
        %1299 = vmatpush1.bf16.xpose.msra.mxu0 0
        %1300 = vmatprep.subr.bf16.mxu0 0
        %1301 = vmatpush1.bf16.xpose.msra.mxu0 0
        %1302 = vmatprep.subr.bf16.mxu0 0
        %1303 = vmatpush1.bf16.xpose.msra.mxu0 0
        %1304 = vmatprep.subr.bf16.mxu0 0
        %1305 = vmatpush1.bf16.xpose.msra.mxu0 0
        %1306 = vmatprep.subr.bf16.mxu0 0
        %1307 = vmatpush1.bf16.xpose.msra.mxu0 0
        %1308 = vmatprep.subr.bf16.mxu0 0
        %1309 = vmatpush1.bf16.xpose.msra.mxu0 0
        %1310 = vmatprep.subr.bf16.mxu0 0
        %1311 = vmatpush1.bf16.xpose.msra.mxu0 0
        %1312 = vmatprep.subr.bf16.mxu0 0
        %1313 = vmatpush1.bf16.xpose.msra.mxu0 0
        %1314 = vmatprep.subr.bf16.mxu0 0
        %1315 = vmatpush1.bf16.xpose.msra.mxu0 0
        %1316 = vmatprep.subr.bf16.mxu0 0
        %1317 = vmatpush1.bf16.xpose.msra.mxu0 0
        %1318 = vmatprep.subr.bf16.mxu0 0
        %1319 = vmatpush1.bf16.xpose.msra.mxu0 0
        %1320 = vmatprep.mubr.bf16.mxu0 0
        %1321 = vmatmul.mubr.bf16.gmra.mrb[0].mxu0 %v1283
        %v1322 = vpop.f32.mrb[0].mxu0
        %v1323 = vadd.f32 0.0, %v1322
        %v1324 = vpop.f32.mrb[0].mxu0
        %v1325 = vpop.f32.mrb[0].mxu0
        %v1326 = vpop.f32.mrb[0].mxu0
        %1327 = vdwg.mxu0
        %1328 = vrot.lane.b32.xlu0 %v613, 104
        %v1329 = vpop.permute.xlu0 %1328
        %1330 = vrot.lane.b32.xlu0 %v613, 72
        %v1331 = vpop.permute.xlu0 %1330
        %v1333 = vsel %vm616, %v1329, 0
        %v1336 = vsel %vm616, %v1331, 0
        %1338 = vmatprep.subr.bf16.mxu0 0
        %1339 = vmatpush1.bf16.xpose.msra.mxu0 %v1336
        %1340 = vmatprep.subr.bf16.mxu0 0
        %1341 = vmatpush1.bf16.xpose.msra.mxu0 0
        %1342 = vmatprep.subr.bf16.mxu0 0
        %1343 = vmatpush1.bf16.xpose.msra.mxu0 0
        %1344 = vmatprep.subr.bf16.mxu0 0
        %1345 = vmatpush1.bf16.xpose.msra.mxu0 0
        %1346 = vmatprep.subr.bf16.mxu0 0
        %1347 = vmatpush1.bf16.xpose.msra.mxu0 0
        %1348 = vmatprep.subr.bf16.mxu0 0
        %1349 = vmatpush1.bf16.xpose.msra.mxu0 0
        %1350 = vmatprep.subr.bf16.mxu0 0
        %1351 = vmatpush1.bf16.xpose.msra.mxu0 0
        %1352 = vmatprep.subr.bf16.mxu0 0
        %1353 = vmatpush1.bf16.xpose.msra.mxu0 0
        %1354 = vmatprep.subr.bf16.mxu0 0
        %1355 = vmatpush1.bf16.xpose.msra.mxu0 0
        %1356 = vmatprep.subr.bf16.mxu0 0
        %1357 = vmatpush1.bf16.xpose.msra.mxu0 0
        %1358 = vmatprep.subr.bf16.mxu0 0
        %1359 = vmatpush1.bf16.xpose.msra.mxu0 0
        %1360 = vmatprep.subr.bf16.mxu0 0
        %1361 = vmatpush1.bf16.xpose.msra.mxu0 0
        %1362 = vmatprep.subr.bf16.mxu0 0
        %1363 = vmatpush1.bf16.xpose.msra.mxu0 0
        %1364 = vmatprep.subr.bf16.mxu0 0
        %1365 = vmatpush1.bf16.xpose.msra.mxu0 0
        %1366 = vmatprep.subr.bf16.mxu0 0
        %1367 = vmatpush1.bf16.xpose.msra.mxu0 0
        %1368 = vmatprep.subr.bf16.mxu0 0
        %1369 = vmatpush1.bf16.xpose.msra.mxu0 0
        %1370 = vmatprep.mubr.bf16.mxu0 0
        %1371 = vmatmul.mubr.bf16.gmra.mrb[0].mxu0 %v1333
        %v1372 = vpop.f32.mrb[0].mxu0
        %v1373 = vadd.f32 0.0, %v1372
        %v1374 = vpop.f32.mrb[0].mxu0
        %v1375 = vpop.f32.mrb[0].mxu0
        %v1376 = vpop.f32.mrb[0].mxu0
        %1377 = vdwg.mxu0
        %v1378 = vmul.f32 %v1323, 0.35355338
        %v1379 = vmul.f32 %v1373, 0.35355338
        %v1380 = vsel %vm616, %v1378, -inf
        %1381 = vmax.xlane.f32.xlu0 %v1380
        %v1382 = vpop.xlane.xlu0 %1381
        %v1383 = vsel %vm616, %v1379, -inf
        %1384 = vmax.xlane.f32.xlu0 %v1383
        %v1385 = vpop.xlane.xlu0 %1384
        %v1386 = vsub.f32 %v1378, %v1382
        %v1387 = vsub.f32 %v1379, %v1385
        %v1388 = vmul.f32 %v1386, 1.442695
        %v1389 = vpow.pop %v1388
        %v1390 = vmul.f32 %v1387, 1.442695
        %v1391 = vpow.pop %v1390
        %v1392 = vsel %vm616, %v1389, 0.0
        %1393 = vadd.xlane.f32.xlu0 %v1392
        %v1394 = vpop.xlane.xlu0 %1393
        %v1395 = vsel %vm616, %v1391, 0.0
        %1396 = vadd.xlane.f32.xlu0 %v1395
        %v1397 = vpop.xlane.xlu0 %1396
        %v1398 = vrcp.pop %v1394
        %v1399 = vrcp.pop %v1397
        %v1400 = vmul.f32 %v1389, %v1398
        %v1401 = vmul.f32 %v1391, %v1399
        %v1402 = vpack.c.bf16 %v1400, %v1400
        %v1403 = vpack.c.bf16 %v1401, %v1401
        %1404 = vrot.lane.b32.xlu0 %v612, 40
        %v1405 = vpop.permute.xlu0 %1404
        %v1407 = vsel %vm616, %v1402, 0
        %v1410 = vsel %vm742, %v1405, 0
        %1412 = vmatprep.subr.bf16.mxu0 0
        %1413 = vmatpush1.bf16.msra.mxu0 %v1410
        %1414 = vmatprep.subr.bf16.mxu0 0
        %1415 = vmatpush1.bf16.msra.mxu0 0
        %1416 = vmatprep.subr.bf16.mxu0 0
        %1417 = vmatpush1.bf16.msra.mxu0 0
        %1418 = vmatprep.subr.bf16.mxu0 0
        %1419 = vmatpush1.bf16.msra.mxu0 0
        %1420 = vmatprep.subr.bf16.mxu0 0
        %1421 = vmatpush1.bf16.msra.mxu0 0
        %1422 = vmatprep.subr.bf16.mxu0 0
        %1423 = vmatpush1.bf16.msra.mxu0 0
        %1424 = vmatprep.subr.bf16.mxu0 0
        %1425 = vmatpush1.bf16.msra.mxu0 0
        %1426 = vmatprep.subr.bf16.mxu0 0
        %1427 = vmatpush1.bf16.msra.mxu0 0
        %1428 = vmatprep.subr.bf16.mxu0 0
        %1429 = vmatpush1.bf16.msra.mxu0 0
        %1430 = vmatprep.subr.bf16.mxu0 0
        %1431 = vmatpush1.bf16.msra.mxu0 0
        %1432 = vmatprep.subr.bf16.mxu0 0
        %1433 = vmatpush1.bf16.msra.mxu0 0
        %1434 = vmatprep.subr.bf16.mxu0 0
        %1435 = vmatpush1.bf16.msra.mxu0 0
        %1436 = vmatprep.subr.bf16.mxu0 0
        %1437 = vmatpush1.bf16.msra.mxu0 0
        %1438 = vmatprep.subr.bf16.mxu0 0
        %1439 = vmatpush1.bf16.msra.mxu0 0
        %1440 = vmatprep.subr.bf16.mxu0 0
        %1441 = vmatpush1.bf16.msra.mxu0 0
        %1442 = vmatprep.subr.bf16.mxu0 0
        %1443 = vmatpush1.bf16.msra.mxu0 0
        %1444 = vmatprep.mubr.bf16.mxu0 0
        %1445 = vmatmul.mubr.bf16.gmra.mrb[0].mxu0 %v1407
        %v1446 = vpop.f32.mrb[0].mxu0
        %v1447 = vadd.f32 0.0, %v1446
        %v1448 = vpop.f32.mrb[0].mxu0
        %v1449 = vpop.f32.mrb[0].mxu0
        %v1450 = vpop.f32.mrb[0].mxu0
        %1451 = vdwg.mxu0
        %1452 = vrot.lane.b32.xlu0 %v613, 40
        %v1453 = vpop.permute.xlu0 %1452
        %v1455 = vsel %vm616, %v1403, 0
        %v1458 = vsel %vm742, %v1453, 0
        %1460 = vmatprep.subr.bf16.mxu0 0
        %1461 = vmatpush1.bf16.msra.mxu0 %v1458
        %1462 = vmatprep.subr.bf16.mxu0 0
        %1463 = vmatpush1.bf16.msra.mxu0 0
        %1464 = vmatprep.subr.bf16.mxu0 0
        %1465 = vmatpush1.bf16.msra.mxu0 0
        %1466 = vmatprep.subr.bf16.mxu0 0
        %1467 = vmatpush1.bf16.msra.mxu0 0
        %1468 = vmatprep.subr.bf16.mxu0 0
        %1469 = vmatpush1.bf16.msra.mxu0 0
        %1470 = vmatprep.subr.bf16.mxu0 0
        %1471 = vmatpush1.bf16.msra.mxu0 0
        %1472 = vmatprep.subr.bf16.mxu0 0
        %1473 = vmatpush1.bf16.msra.mxu0 0
        %1474 = vmatprep.subr.bf16.mxu0 0
        %1475 = vmatpush1.bf16.msra.mxu0 0
        %1476 = vmatprep.subr.bf16.mxu0 0
        %1477 = vmatpush1.bf16.msra.mxu0 0
        %1478 = vmatprep.subr.bf16.mxu0 0
        %1479 = vmatpush1.bf16.msra.mxu0 0
        %1480 = vmatprep.subr.bf16.mxu0 0
        %1481 = vmatpush1.bf16.msra.mxu0 0
        %1482 = vmatprep.subr.bf16.mxu0 0
        %1483 = vmatpush1.bf16.msra.mxu0 0
        %1484 = vmatprep.subr.bf16.mxu0 0
        %1485 = vmatpush1.bf16.msra.mxu0 0
        %1486 = vmatprep.subr.bf16.mxu0 0
        %1487 = vmatpush1.bf16.msra.mxu0 0
        %1488 = vmatprep.subr.bf16.mxu0 0
        %1489 = vmatpush1.bf16.msra.mxu0 0
        %1490 = vmatprep.subr.bf16.mxu0 0
        %1491 = vmatpush1.bf16.msra.mxu0 0
        %1492 = vmatprep.mubr.bf16.mxu0 0
        %1493 = vmatmul.mubr.bf16.gmra.mrb[0].mxu0 %v1455
        %v1494 = vpop.f32.mrb[0].mxu0
        %v1495 = vadd.f32 0.0, %v1494
        %v1496 = vpop.f32.mrb[0].mxu0
        %v1497 = vpop.f32.mrb[0].mxu0
        %v1498 = vpop.f32.mrb[0].mxu0
        %1499 = vdwg.mxu0
        %1502 = vrot.lane.b32.xlu0 %v1003, 8
        %v1503 = vpop.permute.xlu0 %1502
        %1504 = vrot.lane.b32.xlu0 %v1051, 8
        %v1505 = vpop.permute.xlu0 %1504
        %1510 = vrot.lane.b32.xlu0 %v1225, 16
        %v1511 = vpop.permute.xlu0 %1510
        %1512 = vrot.lane.b32.xlu0 %v1273, 16
        %v1513 = vpop.permute.xlu0 %1512
        %1518 = vrot.lane.b32.xlu0 %v1447, 24
        %v1519 = vpop.permute.xlu0 %1518
        %1520 = vrot.lane.b32.xlu0 %v1495, 24
        %v1521 = vpop.permute.xlu0 %1520
        %v1524 = vsel %vm616, %v781, %v1503
        %v1525 = vsel %vm616, %v829, %v1505
        %vm1526 = vcmask 130048
        %v1527 = vsel %vm1526, %v1524, %v1511
        %v1528 = vsel %vm1526, %v1525, %v1513
        %vm1529 = vcmask 195584
        %v1530 = vsel %vm1529, %v1527, %v1519
        %v1531 = vsel %vm1529, %v1528, %v1521
        %v1532 = vpack.c.bf16 %v1531, %v1530
        %v1533 = vld [vmem:[%s449] sm:$0xf]
        %v1534 = vld [vmem:[%s449 + $0x4] sm:$0xf]
        %v1535 = vld [vmem:[%s449 + $0x8] sm:$0xf]
        %v1536 = vld [vmem:[%s449 + $0xc] sm:$0xf]
        %v1537 = vlaneseq
        %v1538 = vshrl.u32 %v1537, 7
        %v1539 = vsub.s32 1, %v1538
        %v1540 = vrot.slane %v542, %v1539
        %v1545 = vunpack.c.l.b16 %v1533
        %v1546 = vunpack.c.l.b16 %v1534
        %v1547 = vunpack.c.l.b16 %v1535
        %v1548 = vunpack.c.l.b16 %v1536
        %v1549 = vpack.c.b16 %v1546, %v1545
        %v1550 = vpack.c.b16 %v1548, %v1547
        %v1554 = vsel %vm563, %v1532, 0
        %1556 = vmatprep.subr.bf16.mxu0 0
        %1557 = vmatpush1.bf16.msra.mxu0 %v1549
        %1558 = vmatprep.subr.bf16.mxu0 0
        %1559 = vmatpush1.bf16.msra.mxu0 %v1550
        %1560 = vmatprep.subr.bf16.mxu0 0
        %1561 = vmatpush1.bf16.msra.mxu0 0
        %1562 = vmatprep.subr.bf16.mxu0 0
        %1563 = vmatpush1.bf16.msra.mxu0 0
        %1564 = vmatprep.subr.bf16.mxu0 0
        %1565 = vmatpush1.bf16.msra.mxu0 0
        %1566 = vmatprep.subr.bf16.mxu0 0
        %1567 = vmatpush1.bf16.msra.mxu0 0
        %1568 = vmatprep.subr.bf16.mxu0 0
        %1569 = vmatpush1.bf16.msra.mxu0 0
        %1570 = vmatprep.subr.bf16.mxu0 0
        %1571 = vmatpush1.bf16.msra.mxu0 0
        %1572 = vmatprep.subr.bf16.mxu0 0
        %1573 = vmatpush1.bf16.msra.mxu0 0
        %1574 = vmatprep.subr.bf16.mxu0 0
        %1575 = vmatpush1.bf16.msra.mxu0 0
        %1576 = vmatprep.subr.bf16.mxu0 0
        %1577 = vmatpush1.bf16.msra.mxu0 0
        %1578 = vmatprep.subr.bf16.mxu0 0
        %1579 = vmatpush1.bf16.msra.mxu0 0
        %1580 = vmatprep.subr.bf16.mxu0 0
        %1581 = vmatpush1.bf16.msra.mxu0 0
        %1582 = vmatprep.subr.bf16.mxu0 0
        %1583 = vmatpush1.bf16.msra.mxu0 0
        %1584 = vmatprep.subr.bf16.mxu0 0
        %1585 = vmatpush1.bf16.msra.mxu0 0
        %1586 = vmatprep.subr.bf16.mxu0 0
        %1587 = vmatpush1.bf16.msra.mxu0 0
        %1588 = vmatprep.mubr.bf16.mxu0 0
        %1589 = vmatmul.mubr.bf16.gmra.mrb[0].mxu0 %v1554
        %v1590 = vpop.f32.mrb[0].mxu0
        %v1591 = vadd.f32 %v1540, %v1590
        %v1592 = vpop.f32.mrb[0].mxu0
        %v1593 = vpop.f32.mrb[0].mxu0
        %v1594 = vadd.f32 %v1540, %v1593
        %v1595 = vpop.f32.mrb[0].mxu0
        %1596 = vdwg.mxu0
        %v1597 = vadd.f32 %v539, %v1591
        %v1598 = vadd.f32 %v540, %v1594
        %v1599 = vsel %vm563, %v1597, 0.0
        %1600 = vadd.xlane.f32.xlu0 %v1599
        %v1601 = vpop.xlane.xlu0 %1600
        %v1602 = vsel %vm563, %v1598, 0.0
        %1603 = vadd.xlane.f32.xlu0 %v1602
        %v1604 = vpop.xlane.xlu0 %1603
        %v1605 = vrcp.pop 32.0
        %v1606 = vmul.f32 %v1601, %v1605
        %v1607 = vmul.f32 %v1604, %v1605
        %v1608 = vsub.f32 %v1597, %v1606
        %v1609 = vsub.f32 %v1598, %v1607
        %v1610 = vmul.f32 %v1608, %v1608
        %v1611 = vmul.f32 %v1609, %v1609
        %v1612 = vsel %vm563, %v1610, 0.0
        %1613 = vadd.xlane.f32.xlu0 %v1612
        %v1614 = vpop.xlane.xlu0 %1613
        %v1615 = vsel %vm563, %v1611, 0.0
        %1616 = vadd.xlane.f32.xlu0 %v1615
        %v1617 = vpop.xlane.xlu0 %1616
        %v1618 = vmul.f32 %v1614, %v1605
        %v1619 = vmul.f32 %v1617, %v1605
        %v1620 = vadd.f32 %v1618, 1e-05
        %v1621 = vadd.f32 %v1619, 1e-05
        %v1622 = vrsqrt.pop %v1620
        %v1623 = vrsqrt.pop %v1621
        %v1624 = vmul.f32 %v1608, %v1622
        %v1625 = vmul.f32 %v1609, %v1623
        %v1626 = vlaneseq
        %v1627 = vshrl.u32 %v1626, 7
        %v1628 = vsub.s32 2, %v1627
        %v1629 = vrot.slane %v542, %v1628
        %v1630 = vmul.f32 %v1624, %v1629
        %v1631 = vmul.f32 %v1625, %v1629
        %v1632 = vlaneseq
        %v1633 = vshrl.u32 %v1632, 7
        %v1634 = vsub.s32 3, %v1633
        %v1635 = vrot.slane %v542, %v1634
        %v1636 = vadd.f32 %v1630, %v1635
        %v1637 = vadd.f32 %v1631, %v1635
        %v1638 = vpack.c.bf16 %v1637, %v1636
        %v1639 = vld [vmem:[%s454] sm:$0xf]
        %v1640 = vld [vmem:[%s454 + $0x4] sm:$0xf]
        %v1641 = vld [vmem:[%s454 + $0x8] sm:$0xf]
        %v1642 = vld [vmem:[%s454 + $0xc] sm:$0xf]
        %v1643 = vlaneseq
        %v1644 = vshrl.u32 %v1643, 7
        %v1645 = vsub.s32 4, %v1644
        %v1646 = vrot.slane %v542, %v1645
        %v1651 = vunpack.c.l.b16 %v1639
        %v1652 = vunpack.c.l.b16 %v1640
        %v1653 = vunpack.c.l.b16 %v1641
        %v1654 = vunpack.c.l.b16 %v1642
        %v1655 = vpack.c.b16 %v1652, %v1651
        %v1656 = vpack.c.b16 %v1654, %v1653
        %v1660 = vsel %vm563, %v1638, 0
        %1662 = vmatprep.subr.bf16.mxu0 0
        %1663 = vmatpush1.bf16.msra.mxu0 %v1655
        %1664 = vmatprep.subr.bf16.mxu0 0
        %1665 = vmatpush1.bf16.msra.mxu0 %v1656
        %1666 = vmatprep.subr.bf16.mxu0 0
        %1667 = vmatpush1.bf16.msra.mxu0 0
        %1668 = vmatprep.subr.bf16.mxu0 0
        %1669 = vmatpush1.bf16.msra.mxu0 0
        %1670 = vmatprep.subr.bf16.mxu0 0
        %1671 = vmatpush1.bf16.msra.mxu0 0
        %1672 = vmatprep.subr.bf16.mxu0 0
        %1673 = vmatpush1.bf16.msra.mxu0 0
        %1674 = vmatprep.subr.bf16.mxu0 0
        %1675 = vmatpush1.bf16.msra.mxu0 0
        %1676 = vmatprep.subr.bf16.mxu0 0
        %1677 = vmatpush1.bf16.msra.mxu0 0
        %1678 = vmatprep.subr.bf16.mxu0 0
        %1679 = vmatpush1.bf16.msra.mxu0 0
        %1680 = vmatprep.subr.bf16.mxu0 0
        %1681 = vmatpush1.bf16.msra.mxu0 0
        %1682 = vmatprep.subr.bf16.mxu0 0
        %1683 = vmatpush1.bf16.msra.mxu0 0
        %1684 = vmatprep.subr.bf16.mxu0 0
        %1685 = vmatpush1.bf16.msra.mxu0 0
        %1686 = vmatprep.subr.bf16.mxu0 0
        %1687 = vmatpush1.bf16.msra.mxu0 0
        %1688 = vmatprep.subr.bf16.mxu0 0
        %1689 = vmatpush1.bf16.msra.mxu0 0
        %1690 = vmatprep.subr.bf16.mxu0 0
        %1691 = vmatpush1.bf16.msra.mxu0 0
        %1692 = vmatprep.subr.bf16.mxu0 0
        %1693 = vmatpush1.bf16.msra.mxu0 0
        %1694 = vmatprep.mubr.bf16.mxu0 0
        %1695 = vmatmul.mubr.bf16.gmra.mrb[0].mxu0 %v1660
        %v1696 = vpop.f32.mrb[0].mxu0
        %v1697 = vadd.f32 %v1646, %v1696
        %v1698 = vpop.f32.mrb[0].mxu0
        %v1699 = vpop.f32.mrb[0].mxu0
        %v1700 = vadd.f32 %v1646, %v1699
        %v1701 = vpop.f32.mrb[0].mxu0
        %1702 = vdwg.mxu0
        %v1703 = vmax.f32 %v1697, 0.0
        %v1704 = vmax.f32 %v1700, 0.0
        %v1705 = vpack.c.bf16 %v1704, %v1703
        %v1706 = vld [vmem:[%s459] sm:$0xf]
        %v1707 = vld [vmem:[%s459 + $0x4] sm:$0xf]
        %v1708 = vld [vmem:[%s459 + $0x8] sm:$0xf]
        %v1709 = vld [vmem:[%s459 + $0xc] sm:$0xf]
        %v1710 = vld [vmem:[%s459 + $0x10] sm:$0xf]
        %v1711 = vld [vmem:[%s459 + $0x14] sm:$0xf]
        %v1712 = vld [vmem:[%s459 + $0x18] sm:$0xf]
        %v1713 = vld [vmem:[%s459 + $0x1c] sm:$0xf]
        %v1714 = vlaneseq
        %v1715 = vshrl.u32 %v1714, 7
        %v1716 = vsub.s32 5, %v1715
        %v1717 = vrot.slane %v542, %v1716
        %v1726 = vunpack.c.l.b16 %v1706
        %v1727 = vunpack.c.l.b16 %v1707
        %v1728 = vunpack.c.l.b16 %v1708
        %v1729 = vunpack.c.l.b16 %v1709
        %v1730 = vunpack.c.l.b16 %v1710
        %v1731 = vunpack.c.l.b16 %v1711
        %v1732 = vunpack.c.l.b16 %v1712
        %v1733 = vunpack.c.l.b16 %v1713
        %v1734 = vpack.c.b16 %v1727, %v1726
        %v1735 = vpack.c.b16 %v1729, %v1728
        %v1736 = vpack.c.b16 %v1731, %v1730
        %v1737 = vpack.c.b16 %v1733, %v1732
        %vm1742 = vcmask 523264
        %v1744 = vsel %vm1742, %v1705, 0
        %1746 = vmatprep.subr.bf16.mxu0 0
        %1747 = vmatpush1.bf16.msra.mxu0 %v1734
        %1748 = vmatprep.subr.bf16.mxu0 0
        %1749 = vmatpush1.bf16.msra.mxu0 %v1735
        %1750 = vmatprep.subr.bf16.mxu0 0
        %1751 = vmatpush1.bf16.msra.mxu0 %v1736
        %1752 = vmatprep.subr.bf16.mxu0 0
        %1753 = vmatpush1.bf16.msra.mxu0 %v1737
        %1754 = vmatprep.subr.bf16.mxu0 0
        %1755 = vmatpush1.bf16.msra.mxu0 0
        %1756 = vmatprep.subr.bf16.mxu0 0
        %1757 = vmatpush1.bf16.msra.mxu0 0
        %1758 = vmatprep.subr.bf16.mxu0 0
        %1759 = vmatpush1.bf16.msra.mxu0 0
        %1760 = vmatprep.subr.bf16.mxu0 0
        %1761 = vmatpush1.bf16.msra.mxu0 0
        %1762 = vmatprep.subr.bf16.mxu0 0
        %1763 = vmatpush1.bf16.msra.mxu0 0
        %1764 = vmatprep.subr.bf16.mxu0 0
        %1765 = vmatpush1.bf16.msra.mxu0 0
        %1766 = vmatprep.subr.bf16.mxu0 0
        %1767 = vmatpush1.bf16.msra.mxu0 0
        %1768 = vmatprep.subr.bf16.mxu0 0
        %1769 = vmatpush1.bf16.msra.mxu0 0
        %1770 = vmatprep.subr.bf16.mxu0 0
        %1771 = vmatpush1.bf16.msra.mxu0 0
        %1772 = vmatprep.subr.bf16.mxu0 0
        %1773 = vmatpush1.bf16.msra.mxu0 0
        %1774 = vmatprep.subr.bf16.mxu0 0
        %1775 = vmatpush1.bf16.msra.mxu0 0
        %1776 = vmatprep.subr.bf16.mxu0 0
        %1777 = vmatpush1.bf16.msra.mxu0 0
        %1778 = vmatprep.mubr.bf16.mxu0 0
        %1779 = vmatmul.mubr.bf16.gmra.mrb[0].mxu0 %v1744
        %v1780 = vpop.f32.mrb[0].mxu0
        %v1781 = vadd.f32 %v1717, %v1780
        %v1782 = vpop.f32.mrb[0].mxu0
        %v1783 = vpop.f32.mrb[0].mxu0
        %v1784 = vadd.f32 %v1717, %v1783
        %v1785 = vpop.f32.mrb[0].mxu0
        %1786 = vdwg.mxu0
        %v1787 = vadd.f32 %v1636, %v1781
        %v1788 = vadd.f32 %v1637, %v1784
        %v1789 = vsel %vm563, %v1787, 0.0
        %1790 = vadd.xlane.f32.xlu0 %v1789
        %v1791 = vpop.xlane.xlu0 %1790
        %v1792 = vsel %vm563, %v1788, 0.0
        %1793 = vadd.xlane.f32.xlu0 %v1792
        %v1794 = vpop.xlane.xlu0 %1793
        %v1795 = vmul.f32 %v1791, %v1605
        %v1796 = vmul.f32 %v1794, %v1605
        %v1797 = vsub.f32 %v1787, %v1795
        %v1798 = vsub.f32 %v1788, %v1796
        %v1799 = vmul.f32 %v1797, %v1797
        %v1800 = vmul.f32 %v1798, %v1798
        %v1801 = vsel %vm563, %v1799, 0.0
        %1802 = vadd.xlane.f32.xlu0 %v1801
        %v1803 = vpop.xlane.xlu0 %1802
        %v1804 = vsel %vm563, %v1800, 0.0
        %1805 = vadd.xlane.f32.xlu0 %v1804
        %v1806 = vpop.xlane.xlu0 %1805
        %v1807 = vmul.f32 %v1803, %v1605
        %v1808 = vmul.f32 %v1806, %v1605
        %v1809 = vadd.f32 %v1807, 1e-05
        %v1810 = vadd.f32 %v1808, 1e-05
        %v1811 = vrsqrt.pop %v1809
        %v1812 = vrsqrt.pop %v1810
        %v1813 = vmul.f32 %v1797, %v1811
        %v1814 = vmul.f32 %v1798, %v1812
        %v1815 = vlaneseq
        %v1816 = vshrl.u32 %v1815, 7
        %v1817 = vsub.s32 6, %v1816
        %v1818 = vrot.slane %v542, %v1817
        %v1819 = vmul.f32 %v1813, %v1818
        %v1820 = vmul.f32 %v1814, %v1818
        %v1821 = vlaneseq
        %v1822 = vshrl.u32 %v1821, 7
        %v1823 = vsub.s32 7, %v1822
        %v1824 = vrot.slane %v542, %v1823
        %v1825 = vadd.f32 %v1819, %v1824
        %v1826 = vadd.f32 %v1820, %v1824
        %1827 = vst.msk [vmem:[#allocation2] sm:$0xff] %vm563, %v1825
        %1828 = vst.msk [vmem:[#allocation2 + $0x8] sm:$0xff] %vm563, %v1826
        %p1829 = scmp.eq.s32.totalorder %s28, 1
        // Predicated region
        $region73: #{tpu_custom_call.1} parent=55 // pred_check
          %p1830 = pneg %p1829
        $region74: #{tpu_custom_call.1} parent=55 // pred_check_branch
          %1832 = sbr.rel (%p1830) target = $region76
        $region75: #{tpu_custom_call.1} parent=55 // pred_region
          %v1833 = vsel %vm563, %v1825, 0.0
          %v1834 = vrot.slane %v1833, 4
          %v1835 = vadd.f32 %v1833, %v1834
          %v1836 = vrot.slane %v1835, 2
          %v1837 = vadd.f32 %v1835, %v1836
          %v1838 = vrot.slane %v1837, 1
          %v1839 = vadd.f32 %v1837, %v1838
          %v1840 = vsel %vm563, %v1826, 0.0
          %v1841 = vrot.slane %v1840, 4
          %v1842 = vadd.f32 %v1840, %v1841
          %v1843 = vrot.slane %v1842, 2
          %v1844 = vadd.f32 %v1842, %v1843
          %v1845 = vrot.slane %v1844, 1
          %v1846 = vadd.f32 %v1844, %v1845
          %v1847 = vrcp.pop 8.0
          %v1848 = vmul.f32 %v1839, %v1847
          %v1849 = vmul.f32 %v1846, %v1847
          %vm1850 = vcmask 253952
          %1851 = vst.msk [vmem:[#allocation9] sm:$0x1] %vm1850, %v1848
          %1852 = vst.msk [vmem:[#allocation9 + $0x1] sm:$0x1] %vm1850, %v1849
        $region76: #{tpu_custom_call.1} parent=55 // pred_fallthru
          _
        // Predicated region
        $region77: #{tpu_custom_call.1} parent=55 // pred_check
          %p1853 = pneg %p272
        $region78: #{tpu_custom_call.1} parent=55 // pred_check_branch
          %1855 = sbr.rel (%p1853) target = $region80
        $region79: #{tpu_custom_call.1} parent=55 // pred_region
          %s1856 = smul.u32 2, %s27
          %s1858 = ssub.s32 32, 32
          %1859 = vsyncadd [#allocation5], %s1858
          %s1860 = smul.addr %s1856, 16
          %s1861 = scalar_lea.hbm %s9, %s1860
          %s1862 = sshll.u32 [#allocation9], 4
          %s1863 = int_to_ptr.vmem [resolvable:$true] %s1862
          %1868 = dma.vmem_to_hbm [thread:$0]  %s1863, 32, %s1861, [#allocation5], 16, 16, 1
        $region80: #{tpu_custom_call.1} parent=55 // pred_fallthru
          _
        // Predicated region
        $region81: #{tpu_custom_call.1} parent=55 // pred_check
          %p1869 = pneg %p272
        $region82: #{tpu_custom_call.1} parent=55 // pred_check_branch
          %1871 = sbr.rel (%p1869) target = $region84
        $region83: #{tpu_custom_call.1} parent=55 // pred_region
          %1872 = dma.done [#allocation5], 32
        $region84: #{tpu_custom_call.1} parent=55 // pred_fallthru
          _
      $region56: #{tpu_custom_call.1} parent=5 // pred_fallthru
        _
      %p1873 = scmp.le.s32.totalorder 2, %s18
      // Predicated region
      $region85: #{tpu_custom_call.1} parent=5 // pred_check
        %p1874 = pneg %p1873
      $region86: #{tpu_custom_call.1} parent=5 // pred_check_branch
        %1876 = sbr.rel (%p1874) target = $region88
      $region87: #{tpu_custom_call.1} parent=5 // pred_region
        %s1877 = ssub.s32 %s18, 2
      $region88: #{tpu_custom_call.1} parent=5 // pred_fallthru
        _
    $region6: #{tpu_custom_call.1} parent=1 // loop_footer
      %s22 = sadd.s32 1, %s18
    $region7: #{tpu_custom_call.1} parent=1 // loop_footer_branch
      %17 = sbr.rel target = $region3
    $region8: #{tpu_custom_call.1} parent=1 // loop_exit
      _
    %1878 = vsyncpa [#allocation4], 1
    %s1879 = scalar_lea.sflag [#allocation4], 1
    %1880 = vsyncpa %s1879, 1
    %1881 = vsyncpa [#allocation7], 1
    %1882 = vsyncpa [#allocation5], 1
    %s1883 = scalar_lea.sflag [#allocation5], 1
    %1884 = vsyncpa %s1883, 1

// kernel: tpu_custom_call.1
$region0: #{tpu_custom_call.1}
  #allocation0 [shape = 'u32[]', space=smem, size = 0x4, offset = 0x4, fixed_abs, tag = 'smem constant byte address 0x4 - core index']
  #allocation1 [shape = 'u32[144,128]{1,0:T(1,128)}', space=vmem, size = 0x12000, scoped, tag = 'internal scratch']
  #allocation2 [shape = 'f32[16,32]{1,0:T(8,128)}', space=vmem, size = 0x2000, scoped, tag = 'scratch operand']
  %s0 = inlined_call_operand.hbm [shape: f32[2,8,16], index: 0, kind: input, shape index: {}]
  %s1 = inlined_call_operand.hbm [shape: bf16[16,32], index: 1, kind: input, shape index: {}]
  %s2 = inlined_call_operand.vmem [shape: f32[1,32], index: 2, kind: input, shape index: {}]
  %s3 = inlined_call_operand.hbm [shape: f32[8,32], index: 3, kind: input, shape index: {}]
  %s4 = inlined_call_operand.vmem [shape: bf16[2,32,96], index: 4, kind: input, shape index: {}]
  %s5 = inlined_call_operand.vmem [shape: bf16[2,32,32], index: 5, kind: input, shape index: {}]
  %s6 = inlined_call_operand.vmem [shape: bf16[2,32,64], index: 6, kind: input, shape index: {}]
  %s7 = inlined_call_operand.vmem [shape: bf16[2,64,32], index: 7, kind: input, shape index: {}]
  %s8 = inlined_call_operand.vmem [shape: f32[2,8,96], index: 8, kind: input, shape index: {}]
  %s9 = inlined_call_operand.hbm [shape: f32[2,1,32], index: 9, kind: output, shape index: {}]
  %s10 = sld [smem:[#allocation0]]
  $region89: #{tpu_custom_call.1} parent=0
    _
  %s12 = ssub.s32 1, %s10
  %s13 = scalar_select 0, %s12, %s10
  $region1: #{tpu_custom_call.1} parent=0
    #allocation3 [shape = 'u8[8192]{0}', space=vmem, size = 0x2000, scoped, tag = 'input window, operand 0, single buffered']
    #allocation4 [shape = 's32[2]{0}', space=sflag, size = 0x8, scoped, tag = 'scoped memory for tpu_custom_call.1']
    #allocation5 [shape = 's32[2]{0}', space=sflag, size = 0x8, scoped, tag = 'scoped memory for tpu_custom_call.1']
    #allocation6 [shape = 'u8[4096]{0}', space=vmem, size = 0x1000, scoped, tag = 'input window, operand 1, single buffered']
    #allocation7 [shape = 's32[1]{0}', space=sflag, size = 0x4, scoped, tag = 'scoped memory for tpu_custom_call.1']
    #allocation8 [shape = 'u8[4096]{0}', space=vmem, size = 0x1000, scoped, tag = 'input window, operand 3, single buffered']
    #allocation9 [shape = 'u8[1024]{0}', space=vmem, size = 0x400, scoped, tag = 'output window, operand 0, single buffered']
    %14 = vsyncpa [#allocation4], 0
    %15 = vsyncpa [#allocation7], 0
    %16 = vsyncpa [#allocation5], 0
    loop: start=0, step=1, limit=4
    $region2: #{tpu_custom_call.1} parent=1 // loop_pre_header
      _
    $region3: #{tpu_custom_call.1} parent=1 // loop_header
      %s18 = sphi 0, %s22
      %p19 = scmp.ge.s32.totalorder %s18, 4
      %s25 = sphi 0, %s37
      %s26 = sphi 0, %s33
      %s27 = sphi 0, %s25
      %s28 = sphi 0, %s26
      %s29 = sphi 0, %s27
      %s30 = sphi 0, %s28
      %s40 = sphi 0, %s42
      %s43 = sphi 0, %s40
      %s44 = sphi 0, %s43
      %s60 = sphi 0, %s44
      %s64 = sphi 0, %s64
      %s66 = sphi 0, %s64
      %s67 = sphi 0, %s66
      %s81 = sphi 0, %s67
      %s85 = sphi 0, %s85
      %s87 = sphi 0, %s85
      %s88 = sphi 0, %s87
      %s102 = sphi 0, %s88
      %s106 = sphi 0, %s106
      %s108 = sphi 0, %s106
      %s109 = sphi 0, %s108
      %s123 = sphi 0, %s109
      %s129 = sphi 0, %s131
      %s132 = sphi 0, %s129
      %s133 = sphi 0, %s132
      %s149 = sphi 0, %s133
      %s155 = sphi 0, %s157
      %s158 = sphi 0, %s155
      %s159 = sphi 0, %s158
      %s175 = sphi 0, %s159
      %s181 = sphi 0, %s183
      %s184 = sphi 0, %s181
      %s185 = sphi 0, %s184
      %s201 = sphi 0, %s185
      %s207 = sphi 0, %s209
      %s210 = sphi 0, %s207
      %s211 = sphi 0, %s210
      %s227 = sphi 0, %s211
      %s233 = sphi 0, %s235
      %s236 = sphi 0, %s233
      %s237 = sphi 0, %s236
      %s253 = sphi 0, %s237
      %s259 = sphi 0, %s261
      %s262 = sphi 0, %s259
      %s263 = sphi 0, %s262
      %s279 = sphi 0, %s263
    $region4: #{tpu_custom_call.1} parent=1 // loop_header_branch
      %21 = sbr.rel (%p19) target = $region8
    $region5: #{tpu_custom_call.1} parent=1 // loop_body
      %s23 = ssub.s32 %s18, 1
      %s24 = ssub.s32 %s18, 2
      %s31 = sadd.s32 1, %s26
      %p32 = scmp.ge.s32.totalorder %s31, 2
      %s33 = scalar_select %p32, 0, %s31
      %s34 = sadd.s32 1, %s25
      %s35 = scalar_select %p32, %s34, %s25
      %p36 = scmp.ge.s32.totalorder %s35, 1
      %s37 = scalar_select %p36, 0, %s35
      %s38 = ssub.s32 %s25, %s37
      %p39 = scmp.eq.s32.totalorder %s38, 0
      %s41 = sadd.s32 %s40, 1
      %s42 = scalar_select %p39, %s40, %s41
      %p45 = pneg %p39
      %p46 = scmp.eq.s32.totalorder %s18, 1
      %p47 = por %p45, %p46
      %p48 = scmp.ne.s32.totalorder %s40, %s43
      %p49 = scmp.eq.s32.totalorder %s18, 0
      %p50 = por %p48, %p49
      %p51 = scmp.ne.s32.totalorder %s40, %s43
      %p52 = scmp.eq.s32.totalorder %s23, 1
      %p53 = por %p51, %p52
      %p54 = scmp.ne.s32.totalorder %s43, %s44
      %p55 = scmp.eq.s32.totalorder %s23, 0
      %p56 = por %p54, %p55
      %p57 = scmp.ne.s32.totalorder %s43, %s44
      %p58 = scmp.eq.s32.totalorder %s24, 1
      %p59 = por %p57, %p58
      %p61 = scmp.ne.s32.totalorder %s44, %s60
      %p62 = scmp.eq.s32.totalorder %s24, 0
      %p63 = por %p61, %p62
      %s65 = sadd.s32 %s64, 1
      %p68 = scmp.eq.s32.totalorder %s18, 1
      %p69 = scmp.ne.s32.totalorder %s64, %s66
      %p70 = scmp.eq.s32.totalorder %s18, 0
      %p71 = por %p69, %p70
      %p72 = scmp.ne.s32.totalorder %s64, %s66
      %p73 = scmp.eq.s32.totalorder %s23, 1
      %p74 = por %p72, %p73
      %p75 = scmp.ne.s32.totalorder %s66, %s67
      %p76 = scmp.eq.s32.totalorder %s23, 0
      %p77 = por %p75, %p76
      %p78 = scmp.ne.s32.totalorder %s66, %s67
      %p79 = scmp.eq.s32.totalorder %s24, 1
      %p80 = por %p78, %p79
      %p82 = scmp.ne.s32.totalorder %s67, %s81
      %p83 = scmp.eq.s32.totalorder %s24, 0
      %p84 = por %p82, %p83
      %s86 = sadd.s32 %s85, 1
      %p89 = scmp.eq.s32.totalorder %s18, 1
      %p90 = scmp.ne.s32.totalorder %s85, %s87
      %p91 = scmp.eq.s32.totalorder %s18, 0
      %p92 = por %p90, %p91
      %p93 = scmp.ne.s32.totalorder %s85, %s87
      %p94 = scmp.eq.s32.totalorder %s23, 1
      %p95 = por %p93, %p94
      %p96 = scmp.ne.s32.totalorder %s87, %s88
      %p97 = scmp.eq.s32.totalorder %s23, 0
      %p98 = por %p96, %p97
      %p99 = scmp.ne.s32.totalorder %s87, %s88
      %p100 = scmp.eq.s32.totalorder %s24, 1
      %p101 = por %p99, %p100
      %p103 = scmp.ne.s32.totalorder %s88, %s102
      %p104 = scmp.eq.s32.totalorder %s24, 0
      %p105 = por %p103, %p104
      %s107 = sadd.s32 %s106, 1
      %p110 = scmp.eq.s32.totalorder %s18, 1
      %p111 = scmp.ne.s32.totalorder %s106, %s108
      %p112 = scmp.eq.s32.totalorder %s18, 0
      %p113 = por %p111, %p112
      %p114 = scmp.ne.s32.totalorder %s106, %s108
      %p115 = scmp.eq.s32.totalorder %s23, 1
      %p116 = por %p114, %p115
      %p117 = scmp.ne.s32.totalorder %s108, %s109
      %p118 = scmp.eq.s32.totalorder %s23, 0
      %p119 = por %p117, %p118
      %p120 = scmp.ne.s32.totalorder %s108, %s109
      %p121 = scmp.eq.s32.totalorder %s24, 1
      %p122 = por %p120, %p121
      %p124 = scmp.ne.s32.totalorder %s109, %s123
      %p125 = scmp.eq.s32.totalorder %s24, 0
      %p126 = por %p124, %p125
      %s127 = ssub.s32 %s26, %s33
      %p128 = scmp.eq.s32.totalorder %s127, 0
      %s130 = sadd.s32 %s129, 1
      %s131 = scalar_select %p128, %s129, %s130
      %p134 = pneg %p128
      %p135 = scmp.eq.s32.totalorder %s18, 1
      %p136 = por %p134, %p135
      %p137 = scmp.ne.s32.totalorder %s129, %s132
      %p138 = scmp.eq.s32.totalorder %s18, 0
      %p139 = por %p137, %p138
      %p140 = scmp.ne.s32.totalorder %s129, %s132
      %p141 = scmp.eq.s32.totalorder %s23, 1
      %p142 = por %p140, %p141
      %p143 = scmp.ne.s32.totalorder %s132, %s133
      %p144 = scmp.eq.s32.totalorder %s23, 0
      %p145 = por %p143, %p144
      %p146 = scmp.ne.s32.totalorder %s132, %s133
      %p147 = scmp.eq.s32.totalorder %s24, 1
      %p148 = por %p146, %p147
      %p150 = scmp.ne.s32.totalorder %s133, %s149
      %p151 = scmp.eq.s32.totalorder %s24, 0
      %p152 = por %p150, %p151
      %s153 = ssub.s32 %s26, %s33
      %p154 = scmp.eq.s32.totalorder %s153, 0
      %s156 = sadd.s32 %s155, 1
      %s157 = scalar_select %p154, %s155, %s156
      %p160 = pneg %p154
      %p161 = scmp.eq.s32.totalorder %s18, 1
      %p162 = por %p160, %p161
      %p163 = scmp.ne.s32.totalorder %s155, %s158
      %p164 = scmp.eq.s32.totalorder %s18, 0
      %p165 = por %p163, %p164
      %p166 = scmp.ne.s32.totalorder %s155, %s158
      %p167 = scmp.eq.s32.totalorder %s23, 1
      %p168 = por %p166, %p167
      %p169 = scmp.ne.s32.totalorder %s158, %s159
      %p170 = scmp.eq.s32.totalorder %s23, 0
      %p171 = por %p169, %p170
      %p172 = scmp.ne.s32.totalorder %s158, %s159
      %p173 = scmp.eq.s32.totalorder %s24, 1
      %p174 = por %p172, %p173
      %p176 = scmp.ne.s32.totalorder %s159, %s175
      %p177 = scmp.eq.s32.totalorder %s24, 0
      %p178 = por %p176, %p177
      %s179 = ssub.s32 %s26, %s33
      %p180 = scmp.eq.s32.totalorder %s179, 0
      %s182 = sadd.s32 %s181, 1
      %s183 = scalar_select %p180, %s181, %s182
      %p186 = pneg %p180
      %p187 = scmp.eq.s32.totalorder %s18, 1
      %p188 = por %p186, %p187
      %p189 = scmp.ne.s32.totalorder %s181, %s184
      %p190 = scmp.eq.s32.totalorder %s18, 0
      %p191 = por %p189, %p190
      %p192 = scmp.ne.s32.totalorder %s181, %s184
      %p193 = scmp.eq.s32.totalorder %s23, 1
      %p194 = por %p192, %p193
      %p195 = scmp.ne.s32.totalorder %s184, %s185
      %p196 = scmp.eq.s32.totalorder %s23, 0
      %p197 = por %p195, %p196
      %p198 = scmp.ne.s32.totalorder %s184, %s185
      %p199 = scmp.eq.s32.totalorder %s24, 1
      %p200 = por %p198, %p199
      %p202 = scmp.ne.s32.totalorder %s185, %s201
      %p203 = scmp.eq.s32.totalorder %s24, 0
      %p204 = por %p202, %p203
      %s205 = ssub.s32 %s26, %s33
      %p206 = scmp.eq.s32.totalorder %s205, 0
      %s208 = sadd.s32 %s207, 1
      %s209 = scalar_select %p206, %s207, %s208
      %p212 = pneg %p206
      %p213 = scmp.eq.s32.totalorder %s18, 1
      %p214 = por %p212, %p213
      %p215 = scmp.ne.s32.totalorder %s207, %s210
      %p216 = scmp.eq.s32.totalorder %s18, 0
      %p217 = por %p215, %p216
      %p218 = scmp.ne.s32.totalorder %s207, %s210
      %p219 = scmp.eq.s32.totalorder %s23, 1
      %p220 = por %p218, %p219
      %p221 = scmp.ne.s32.totalorder %s210, %s211
      %p222 = scmp.eq.s32.totalorder %s23, 0
      %p223 = por %p221, %p222
      %p224 = scmp.ne.s32.totalorder %s210, %s211
      %p225 = scmp.eq.s32.totalorder %s24, 1
      %p226 = por %p224, %p225
      %p228 = scmp.ne.s32.totalorder %s211, %s227
      %p229 = scmp.eq.s32.totalorder %s24, 0
      %p230 = por %p228, %p229
      %s231 = ssub.s32 %s26, %s33
      %p232 = scmp.eq.s32.totalorder %s231, 0
      %s234 = sadd.s32 %s233, 1
      %s235 = scalar_select %p232, %s233, %s234
      %p238 = pneg %p232
      %p239 = scmp.eq.s32.totalorder %s18, 1
      %p240 = por %p238, %p239
      %p241 = scmp.ne.s32.totalorder %s233, %s236
      %p242 = scmp.eq.s32.totalorder %s18, 0
      %p243 = por %p241, %p242
      %p244 = scmp.ne.s32.totalorder %s233, %s236
      %p245 = scmp.eq.s32.totalorder %s23, 1
      %p246 = por %p244, %p245
      %p247 = scmp.ne.s32.totalorder %s236, %s237
      %p248 = scmp.eq.s32.totalorder %s23, 0
      %p249 = por %p247, %p248
      %p250 = scmp.ne.s32.totalorder %s236, %s237
      %p251 = scmp.eq.s32.totalorder %s24, 1
      %p252 = por %p250, %p251
      %p254 = scmp.ne.s32.totalorder %s237, %s253
      %p255 = scmp.eq.s32.totalorder %s24, 0
      %p256 = por %p254, %p255
      %s257 = ssub.s32 %s25, %s37
      %p258 = scmp.eq.s32.totalorder %s257, 0
      %s260 = sadd.s32 %s259, 1
      %s261 = scalar_select %p258, %s259, %s260
      %p264 = pneg %p258
      %p265 = scmp.eq.s32.totalorder %s18, 1
      %p266 = por %p264, %p265
      %p267 = scmp.ne.s32.totalorder %s259, %s262
      %p268 = scmp.eq.s32.totalorder %s18, 0
      %p269 = por %p267, %p268
      %p270 = scmp.ne.s32.totalorder %s259, %s262
      %p271 = scmp.eq.s32.totalorder %s23, 1
      %p272 = por %p270, %p271
      %p273 = scmp.ne.s32.totalorder %s262, %s263
      %p274 = scmp.eq.s32.totalorder %s23, 0
      %p275 = por %p273, %p274
      %p276 = scmp.ne.s32.totalorder %s262, %s263
      %p277 = scmp.eq.s32.totalorder %s24, 1
      %p278 = por %p276, %p277
      %p280 = scmp.ne.s32.totalorder %s263, %s279
      %p281 = scmp.eq.s32.totalorder %s24, 0
      %p282 = por %p280, %p281
      %p283 = scmp.le.s32.totalorder 1, %s18
      %p284 = scmp.lt.s32.totalorder %s18, 3
      %p285 = pnand %p283, %p284
      %p286 = pneg %p285
      // Predicated region
      $region9: #{tpu_custom_call.1} parent=5 // pred_check
        _
      $region10: #{tpu_custom_call.1} parent=5 // pred_check_branch
        %288 = sbr.rel (%p285) target = $region12
      $region11: #{tpu_custom_call.1} parent=5 // pred_region
        %s289 = ssub.s32 %s18, 1
        // Predicated region
        $region13: #{tpu_custom_call.1} parent=11 // pred_check
          %p290 = pneg %p56
        $region14: #{tpu_custom_call.1} parent=11 // pred_check_branch
          %292 = sbr.rel (%p290) target = $region16
        $region15: #{tpu_custom_call.1} parent=11 // pred_region
          %s293 = smul.u32 2, %s27
          %s295 = ssub.s32 256, 256
          %296 = vsyncadd [#allocation4], %s295
          %s297 = smul.addr %s293, 128
          %s298 = scalar_lea.hbm %s0, %s297
          %s299 = sshll.u32 [#allocation3], 4
          %s300 = int_to_ptr.vmem [resolvable:$true] %s299
          %305 = dma.hbm_to_vmem [thread:$0]  %s298, 256, %s300, [#allocation4], 128, 128, 8
        $region16: #{tpu_custom_call.1} parent=11 // pred_fallthru
          _
        // Predicated region
        $region17: #{tpu_custom_call.1} parent=11 // pred_check
          %p306 = pneg %p77
        $region18: #{tpu_custom_call.1} parent=11 // pred_check_branch
          %308 = sbr.rel (%p306) target = $region20
        $region19: #{tpu_custom_call.1} parent=11 // pred_region
          %s310 = ssub.s32 128, 128
          %311 = vsyncadd [#allocation7], %s310
          %s312 = sshll.u32 [#allocation6], 4
          %s313 = int_to_ptr.vmem [resolvable:$true] %s312
          %318 = dma.hbm_to_vmem [thread:$0]  %s1, 128, %s313, [#allocation7], 64, 64, 4
        $region20: #{tpu_custom_call.1} parent=11 // pred_fallthru
          _
        // Predicated region
        $region21: #{tpu_custom_call.1} parent=11 // pred_check
          %p319 = pneg %p98
        $region22: #{tpu_custom_call.1} parent=11 // pred_check_branch
          %321 = sbr.rel (%p319) target = $region24
        $region23: #{tpu_custom_call.1} parent=11 // pred_region
          _
        $region24: #{tpu_custom_call.1} parent=11 // pred_fallthru
          _
        // Predicated region
        $region25: #{tpu_custom_call.1} parent=11 // pred_check
          %p322 = pneg %p119
        $region26: #{tpu_custom_call.1} parent=11 // pred_check_branch
          %324 = sbr.rel (%p322) target = $region28
        $region27: #{tpu_custom_call.1} parent=11 // pred_region
          %s326 = ssub.s32 128, 128
          %327 = vsyncadd [#allocation7], %s326
          %s329 = sshll.u32 [#allocation8], 4
          %s330 = int_to_ptr.vmem [resolvable:$true] %s329
          %332 = dma.hbm_to_vmem [thread:$0]  %s3, 128, %s330, [#allocation7]
        $region28: #{tpu_custom_call.1} parent=11 // pred_fallthru
          _
      $region12: #{tpu_custom_call.1} parent=5 // pred_fallthru
        _
      %p333 = scmp.lt.s32.totalorder %s18, 2
      // Predicated region
      $region29: #{tpu_custom_call.1} parent=5 // pred_check
        %p334 = pneg %p333
      $region30: #{tpu_custom_call.1} parent=5 // pred_check_branch
        %336 = sbr.rel (%p334) target = $region32
      $region31: #{tpu_custom_call.1} parent=5 // pred_region
        // Predicated region
        $region33: #{tpu_custom_call.1} parent=31 // pred_check
          %p337 = pneg %p139
        $region34: #{tpu_custom_call.1} parent=31 // pred_check_branch
          %339 = sbr.rel (%p337) target = $region36
        $region35: #{tpu_custom_call.1} parent=31 // pred_region
          %p340 = scmp.lt.s32.totalorder %s26, 1
          %s341 = scalar_select %p340, %s26, 1
          %s342 = smul.addr %s341, 4
          %s343 = smul.addr %s342, 4
          %s344 = scalar_lea.vmem %s4, %s343
        $region36: #{tpu_custom_call.1} parent=31 // pred_fallthru
          _
        // Predicated region
        $region37: #{tpu_custom_call.1} parent=31 // pred_check
          %p345 = pneg %p165
        $region38: #{tpu_custom_call.1} parent=31 // pred_check_branch
          %347 = sbr.rel (%p345) target = $region40
        $region39: #{tpu_custom_call.1} parent=31 // pred_region
          %p348 = scmp.lt.s32.totalorder %s26, 1
          %s349 = scalar_select %p348, %s26, 1
          %s350 = smul.addr %s349, 4
          %s351 = smul.addr %s350, 4
          %s352 = scalar_lea.vmem %s5, %s351
        $region40: #{tpu_custom_call.1} parent=31 // pred_fallthru
          _
        // Predicated region
        $region41: #{tpu_custom_call.1} parent=31 // pred_check
          %p353 = pneg %p191
        $region42: #{tpu_custom_call.1} parent=31 // pred_check_branch
          %355 = sbr.rel (%p353) target = $region44
        $region43: #{tpu_custom_call.1} parent=31 // pred_region
          %p356 = scmp.lt.s32.totalorder %s26, 1
          %s357 = scalar_select %p356, %s26, 1
          %s358 = smul.addr %s357, 4
          %s359 = smul.addr %s358, 4
          %s360 = scalar_lea.vmem %s6, %s359
        $region44: #{tpu_custom_call.1} parent=31 // pred_fallthru
          _
        // Predicated region
        $region45: #{tpu_custom_call.1} parent=31 // pred_check
          %p361 = pneg %p217
        $region46: #{tpu_custom_call.1} parent=31 // pred_check_branch
          %363 = sbr.rel (%p361) target = $region48
        $region47: #{tpu_custom_call.1} parent=31 // pred_region
          %p364 = scmp.lt.s32.totalorder %s26, 1
          %s365 = scalar_select %p364, %s26, 1
          %s366 = smul.addr %s365, 8
          %s367 = smul.addr %s366, 4
          %s368 = scalar_lea.vmem %s7, %s367
        $region48: #{tpu_custom_call.1} parent=31 // pred_fallthru
          _
        // Predicated region
        $region49: #{tpu_custom_call.1} parent=31 // pred_check
          %p369 = pneg %p243
        $region50: #{tpu_custom_call.1} parent=31 // pred_check_branch
          %371 = sbr.rel (%p369) target = $region52
        $region51: #{tpu_custom_call.1} parent=31 // pred_region
          %p372 = scmp.lt.s32.totalorder %s26, 1
          %s373 = scalar_select %p372, %s26, 1
          %s374 = smul.addr %s373, 8
          %s375 = scalar_lea.vmem %s8, %s374
        $region52: #{tpu_custom_call.1} parent=31 // pred_fallthru
          _
      $region32: #{tpu_custom_call.1} parent=5 // pred_fallthru
        _
      %p376 = scmp.le.s32.totalorder 1, %s18
      %p377 = scmp.lt.s32.totalorder %s18, 3
      %p378 = pnand %p376, %p377
      %p379 = pneg %p378
      // Predicated region
      $region53: #{tpu_custom_call.1} parent=5 // pred_check
        _
      $region54: #{tpu_custom_call.1} parent=5 // pred_check_branch
        %381 = sbr.rel (%p378) target = $region56
      $region55: #{tpu_custom_call.1} parent=5 // pred_region
        %s382 = ssub.s32 %s18, 1
        // Predicated region
        $region57: #{tpu_custom_call.1} parent=55 // pred_check
          %p383 = pneg %p56
        $region58: #{tpu_custom_call.1} parent=55 // pred_check_branch
          %385 = sbr.rel (%p383) target = $region60
        $region59: #{tpu_custom_call.1} parent=55 // pred_region
          %386 = dma.done [#allocation4], 256
        $region60: #{tpu_custom_call.1} parent=55 // pred_fallthru
          _
        // Predicated region
        $region61: #{tpu_custom_call.1} parent=55 // pred_check
          %p387 = pneg %p77
        $region62: #{tpu_custom_call.1} parent=55 // pred_check_branch
          %389 = sbr.rel (%p387) target = $region64
        $region63: #{tpu_custom_call.1} parent=55 // pred_region
          %390 = dma.done [#allocation7], 128
        $region64: #{tpu_custom_call.1} parent=55 // pred_fallthru
          _
        // Predicated region
        $region65: #{tpu_custom_call.1} parent=55 // pred_check
          %p391 = pneg %p119
        $region66: #{tpu_custom_call.1} parent=55 // pred_check_branch
          %393 = sbr.rel (%p391) target = $region68
        $region67: #{tpu_custom_call.1} parent=55 // pred_region
          %394 = dma.done [#allocation7], 128
        $region68: #{tpu_custom_call.1} parent=55 // pred_fallthru
          _
        %p395 = pneg %p56
        %p396 = pneg %p53
        %p397 = pneg %p77
        %p398 = pneg %p74
        %p399 = pneg %p98
        %p400 = pneg %p95
        %p401 = pneg %p119
        %p402 = pneg %p116
        %p403 = scmp.lt.s32.totalorder %s28, 1
        %s404 = scalar_select %p403, %s28, 1
        %s405 = smul.addr %s404, 4
        %s406 = smul.addr %s405, 4
        %s407 = scalar_lea.vmem %s4, %s406
        %p408 = pneg %p145
        %p409 = pneg %p142
        %p410 = scmp.lt.s32.totalorder %s28, 1
        %s411 = scalar_select %p410, %s28, 1
        %s412 = smul.addr %s411, 4
        %s413 = smul.addr %s412, 4
        %s414 = scalar_lea.vmem %s5, %s413
        %p415 = pneg %p171
        %p416 = pneg %p168
        %p417 = scmp.lt.s32.totalorder %s28, 1
        %s418 = scalar_select %p417, %s28, 1
        %s419 = smul.addr %s418, 4
        %s420 = smul.addr %s419, 4
        %s421 = scalar_lea.vmem %s6, %s420
        %p422 = pneg %p197
        %p423 = pneg %p194
        %p424 = scmp.lt.s32.totalorder %s28, 1
        %s425 = scalar_select %p424, %s28, 1
        %s426 = smul.addr %s425, 8
        %s427 = smul.addr %s426, 4
        %s428 = scalar_lea.vmem %s7, %s427
        %p429 = pneg %p223
        %p430 = pneg %p220
        %p431 = scmp.lt.s32.totalorder %s28, 1
        %s432 = scalar_select %p431, %s28, 1
        %s433 = smul.addr %s432, 8
        %s434 = scalar_lea.vmem %s8, %s433
        %p435 = pneg %p249
        %p436 = pneg %p246
        %p437 = pneg %p275
        %p438 = pneg %p272
        %s439 = smul.u32 2, %s27
        %p440 = scmp.lt.s32.totalorder %s28, 1
        %s441 = scalar_select %p440, %s28, 1
        %s442 = smul.addr %s441, 4
        %s443 = smul.addr %s442, 4
        %s444 = scalar_lea.vmem %s4, %s443
        %p445 = scmp.lt.s32.totalorder %s28, 1
        %s446 = scalar_select %p445, %s28, 1
        %s447 = smul.addr %s446, 4
        %s448 = smul.addr %s447, 4
        %s449 = scalar_lea.vmem %s5, %s448
        %p450 = scmp.lt.s32.totalorder %s28, 1
        %s451 = scalar_select %p450, %s28, 1
        %s452 = smul.addr %s451, 4
        %s453 = smul.addr %s452, 4
        %s454 = scalar_lea.vmem %s6, %s453
        %p455 = scmp.lt.s32.totalorder %s28, 1
        %s456 = scalar_select %p455, %s28, 1
        %s457 = smul.addr %s456, 8
        %s458 = smul.addr %s457, 4
        %s459 = scalar_lea.vmem %s7, %s458
        %p460 = scmp.lt.s32.totalorder %s28, 1
        %s461 = scalar_select %p460, %s28, 1
        %s462 = smul.addr %s461, 8
        %s463 = scalar_lea.vmem %s8, %s462
        %s464 = smul.u32 2, %s27
        %p466 = scmp.eq.s32.totalorder %s28, 0
        // Predicated region
        $region69: #{tpu_custom_call.1} parent=55 // pred_check
          %p467 = pneg %p466
        $region70: #{tpu_custom_call.1} parent=55 // pred_check_branch
          %469 = sbr.rel (%p467) target = $region72
        $region71: #{tpu_custom_call.1} parent=55 // pred_region
          %v470 = vld [vmem:[#allocation3] sm:$0xff]
          %v471 = vld [vmem:[#allocation3 + $0x8] sm:$0xff]
          %v472 = vpack.c.bf16 %v471, %v470
          %v473 = vld [vmem:[#allocation6] sm:$0xf]
          %v474 = vld [vmem:[#allocation6 + $0x4] sm:$0xf]
          %v475 = vld [vmem:[%s2] sm:$0x1]
          %v477 = vlaneseq
          %v478 = vshrl.u32 %v477, 7
          %v479 = vsub.s32 0, %v478
          %v480 = vrot.slane %v475, %v479
          %v484 = vunpack.c.l.b16 %v473
          %v485 = vunpack.c.l.b16 %v474
          %v486 = vpack.c.b16 %v485, %v484
          %vm488 = vcmask 130048
          %v490 = vsel %vm488, %v472, 0
          %492 = vmatprep.subr.bf16.mxu0 0
          %493 = vmatpush1.bf16.msra.mxu0 %v486
          %494 = vmatprep.subr.bf16.mxu0 0
          %495 = vmatpush1.bf16.msra.mxu0 0
          %496 = vmatprep.subr.bf16.mxu0 0
          %497 = vmatpush1.bf16.msra.mxu0 0
          %498 = vmatprep.subr.bf16.mxu0 0
          %499 = vmatpush1.bf16.msra.mxu0 0
          %500 = vmatprep.subr.bf16.mxu0 0
          %501 = vmatpush1.bf16.msra.mxu0 0
          %502 = vmatprep.subr.bf16.mxu0 0
          %503 = vmatpush1.bf16.msra.mxu0 0
          %504 = vmatprep.subr.bf16.mxu0 0
          %505 = vmatpush1.bf16.msra.mxu0 0
          %506 = vmatprep.subr.bf16.mxu0 0
          %507 = vmatpush1.bf16.msra.mxu0 0
          %508 = vmatprep.subr.bf16.mxu0 0
          %509 = vmatpush1.bf16.msra.mxu0 0
          %510 = vmatprep.subr.bf16.mxu0 0
          %511 = vmatpush1.bf16.msra.mxu0 0
          %512 = vmatprep.subr.bf16.mxu0 0
          %513 = vmatpush1.bf16.msra.mxu0 0
          %514 = vmatprep.subr.bf16.mxu0 0
          %515 = vmatpush1.bf16.msra.mxu0 0
          %516 = vmatprep.subr.bf16.mxu0 0
          %517 = vmatpush1.bf16.msra.mxu0 0
          %518 = vmatprep.subr.bf16.mxu0 0
          %519 = vmatpush1.bf16.msra.mxu0 0
          %520 = vmatprep.subr.bf16.mxu0 0
          %521 = vmatpush1.bf16.msra.mxu0 0
          %522 = vmatprep.subr.bf16.mxu0 0
          %523 = vmatpush1.bf16.msra.mxu0 0
          %524 = vmatprep.mubr.bf16.mxu0 0
          %525 = vmatmul.mubr.bf16.gmra.mrb[0].mxu0 %v490
          %v526 = vpop.f32.mrb[0].mxu0
          %v527 = vadd.f32 %v480, %v526
          %v528 = vpop.f32.mrb[0].mxu0
          %v529 = vpop.f32.mrb[0].mxu0
          %v530 = vadd.f32 %v480, %v529
          %v531 = vpop.f32.mrb[0].mxu0
          %532 = vdwg.mxu0
          %v533 = vld [vmem:[#allocation8] sm:$0xff]
          %v534 = vadd.f32 %v527, %v533
          %v535 = vadd.f32 %v530, %v533
          %vm536 = vcmask 261120
          %537 = vst.msk [vmem:[#allocation2] sm:$0xff] %vm536, %v534
          %538 = vst.msk [vmem:[#allocation2 + $0x8] sm:$0xff] %vm536, %v535
        $region72: #{tpu_custom_call.1} parent=55 // pred_fallthru
          _
        %v539 = vld [vmem:[#allocation2] sm:$0xff]
        %v540 = vld [vmem:[#allocation2 + $0x8] sm:$0xff]
        %v541 = vpack.c.bf16 %v540, %v539
        %v542 = vld [vmem:[%s463] sm:$0xff]
        %v543 = vld [vmem:[%s444] sm:$0xf]
        %v544 = vld [vmem:[%s444 + $0x4] sm:$0xf]
        %v545 = vld [vmem:[%s444 + $0x8] sm:$0xf]
        %v546 = vld [vmem:[%s444 + $0xc] sm:$0xf]
        %v547 = vlaneseq
        %v548 = vshrl.u32 %v547, 7
        %v549 = vsub.s32 0, %v548
        %v550 = vrot.slane %v542, %v549
        %v555 = vunpack.c.l.b16 %v543
        %v556 = vunpack.c.l.b16 %v544
        %v557 = vunpack.c.l.b16 %v545
        %v558 = vunpack.c.l.b16 %v546
        %v559 = vpack.c.b16 %v556, %v555
        %v560 = vpack.c.b16 %v558, %v557
        %vm563 = vcmask 261120
        %v565 = vsel %vm563, %v541, 0
        %567 = vmatprep.subr.bf16.mxu0 0
        %568 = vmatpush1.bf16.msra.mxu0 %v559
        %569 = vmatprep.subr.bf16.mxu0 0
        %570 = vmatpush1.bf16.msra.mxu0 %v560
        %571 = vmatprep.subr.bf16.mxu0 0
        %572 = vmatpush1.bf16.msra.mxu0 0
        %573 = vmatprep.subr.bf16.mxu0 0
        %574 = vmatpush1.bf16.msra.mxu0 0
        %575 = vmatprep.subr.bf16.mxu0 0
        %576 = vmatpush1.bf16.msra.mxu0 0
        %577 = vmatprep.subr.bf16.mxu0 0
        %578 = vmatpush1.bf16.msra.mxu0 0
        %579 = vmatprep.subr.bf16.mxu0 0
        %580 = vmatpush1.bf16.msra.mxu0 0
        %581 = vmatprep.subr.bf16.mxu0 0
        %582 = vmatpush1.bf16.msra.mxu0 0
        %583 = vmatprep.subr.bf16.mxu0 0
        %584 = vmatpush1.bf16.msra.mxu0 0
        %585 = vmatprep.subr.bf16.mxu0 0
        %586 = vmatpush1.bf16.msra.mxu0 0
        %587 = vmatprep.subr.bf16.mxu0 0
        %588 = vmatpush1.bf16.msra.mxu0 0
        %589 = vmatprep.subr.bf16.mxu0 0
        %590 = vmatpush1.bf16.msra.mxu0 0
        %591 = vmatprep.subr.bf16.mxu0 0
        %592 = vmatpush1.bf16.msra.mxu0 0
        %593 = vmatprep.subr.bf16.mxu0 0
        %594 = vmatpush1.bf16.msra.mxu0 0
        %595 = vmatprep.subr.bf16.mxu0 0
        %596 = vmatpush1.bf16.msra.mxu0 0
        %597 = vmatprep.subr.bf16.mxu0 0
        %598 = vmatpush1.bf16.msra.mxu0 0
        %599 = vmatprep.mubr.bf16.mxu0 0
        %600 = vmatmul.mubr.bf16.gmra.mrb[0].mxu0 %v565
        %v601 = vpop.f32.mrb[0].mxu0
        %v602 = vadd.f32 %v550, %v601
        %v603 = vpop.f32.mrb[0].mxu0
        %v604 = vpop.f32.mrb[0].mxu0
        %v605 = vadd.f32 %v550, %v604
        %v606 = vpop.f32.mrb[0].mxu0
        %607 = vdwg.mxu0
        %v608 = vpack.c.bf16 %v605, %v602
        %v610 = vunpack.c.l.b16 %v608
        %v611 = vunpack.c.h.b16 %v608
        %v612 = vpack.c.b16 %v610, %v610
        %v613 = vpack.c.b16 %v611, %v611
        %614 = vrot.lane.b32.xlu0 %v612, 96
        %v615 = vpop.permute.xlu0 %614
        %vm616 = vcmask 64512
        %v618 = vsel %vm616, %v612, 0
        %v621 = vsel %vm616, %v615, 0
        %623 = vmatprep.subr.bf16.mxu0 0
        %624 = vmatpush1.bf16.xpose.msra.mxu0 %v621
        %625 = vmatprep.subr.bf16.mxu0 0
        %626 = vmatpush1.bf16.xpose.msra.mxu0 0
        %627 = vmatprep.subr.bf16.mxu0 0
        %628 = vmatpush1.bf16.xpose.msra.mxu0 0
        %629 = vmatprep.subr.bf16.mxu0 0
        %630 = vmatpush1.bf16.xpose.msra.mxu0 0
        %631 = vmatprep.subr.bf16.mxu0 0
        %632 = vmatpush1.bf16.xpose.msra.mxu0 0
        %633 = vmatprep.subr.bf16.mxu0 0
        %634 = vmatpush1.bf16.xpose.msra.mxu0 0
        %635 = vmatprep.subr.bf16.mxu0 0
        %636 = vmatpush1.bf16.xpose.msra.mxu0 0
        %637 = vmatprep.subr.bf16.mxu0 0
        %638 = vmatpush1.bf16.xpose.msra.mxu0 0
        %639 = vmatprep.subr.bf16.mxu0 0
        %640 = vmatpush1.bf16.xpose.msra.mxu0 0
        %641 = vmatprep.subr.bf16.mxu0 0
        %642 = vmatpush1.bf16.xpose.msra.mxu0 0
        %643 = vmatprep.subr.bf16.mxu0 0
        %644 = vmatpush1.bf16.xpose.msra.mxu0 0
        %645 = vmatprep.subr.bf16.mxu0 0
        %646 = vmatpush1.bf16.xpose.msra.mxu0 0
        %647 = vmatprep.subr.bf16.mxu0 0
        %648 = vmatpush1.bf16.xpose.msra.mxu0 0
        %649 = vmatprep.subr.bf16.mxu0 0
        %650 = vmatpush1.bf16.xpose.msra.mxu0 0
        %651 = vmatprep.subr.bf16.mxu0 0
        %652 = vmatpush1.bf16.xpose.msra.mxu0 0
        %653 = vmatprep.subr.bf16.mxu0 0
        %654 = vmatpush1.bf16.xpose.msra.mxu0 0
        %655 = vmatprep.mubr.bf16.mxu0 0
        %656 = vmatmul.mubr.bf16.gmra.mrb[0].mxu0 %v618
        %v657 = vpop.f32.mrb[0].mxu0
        %v658 = vadd.f32 0.0, %v657
        %v659 = vpop.f32.mrb[0].mxu0
        %v660 = vpop.f32.mrb[0].mxu0
        %v661 = vpop.f32.mrb[0].mxu0
        %662 = vdwg.mxu0
        %663 = vrot.lane.b32.xlu0 %v613, 96
        %v664 = vpop.permute.xlu0 %663
        %v666 = vsel %vm616, %v613, 0
        %v669 = vsel %vm616, %v664, 0
        %671 = vmatprep.subr.bf16.mxu0 0
        %672 = vmatpush1.bf16.xpose.msra.mxu0 %v669
        %673 = vmatprep.subr.bf16.mxu0 0
        %674 = vmatpush1.bf16.xpose.msra.mxu0 0
        %675 = vmatprep.subr.bf16.mxu0 0
        %676 = vmatpush1.bf16.xpose.msra.mxu0 0
        %677 = vmatprep.subr.bf16.mxu0 0
        %678 = vmatpush1.bf16.xpose.msra.mxu0 0
        %679 = vmatprep.subr.bf16.mxu0 0
        %680 = vmatpush1.bf16.xpose.msra.mxu0 0
        %681 = vmatprep.subr.bf16.mxu0 0
        %682 = vmatpush1.bf16.xpose.msra.mxu0 0
        %683 = vmatprep.subr.bf16.mxu0 0
        %684 = vmatpush1.bf16.xpose.msra.mxu0 0
        %685 = vmatprep.subr.bf16.mxu0 0
        %686 = vmatpush1.bf16.xpose.msra.mxu0 0
        %687 = vmatprep.subr.bf16.mxu0 0
        %688 = vmatpush1.bf16.xpose.msra.mxu0 0
        %689 = vmatprep.subr.bf16.mxu0 0
        %690 = vmatpush1.bf16.xpose.msra.mxu0 0
        %691 = vmatprep.subr.bf16.mxu0 0
        %692 = vmatpush1.bf16.xpose.msra.mxu0 0
        %693 = vmatprep.subr.bf16.mxu0 0
        %694 = vmatpush1.bf16.xpose.msra.mxu0 0
        %695 = vmatprep.subr.bf16.mxu0 0
        %696 = vmatpush1.bf16.xpose.msra.mxu0 0
        %697 = vmatprep.subr.bf16.mxu0 0
        %698 = vmatpush1.bf16.xpose.msra.mxu0 0
        %699 = vmatprep.subr.bf16.mxu0 0
        %700 = vmatpush1.bf16.xpose.msra.mxu0 0
        %701 = vmatprep.subr.bf16.mxu0 0
        %702 = vmatpush1.bf16.xpose.msra.mxu0 0
        %703 = vmatprep.mubr.bf16.mxu0 0
        %704 = vmatmul.mubr.bf16.gmra.mrb[0].mxu0 %v666
        %v705 = vpop.f32.mrb[0].mxu0
        %v706 = vadd.f32 0.0, %v705
        %v707 = vpop.f32.mrb[0].mxu0
        %v708 = vpop.f32.mrb[0].mxu0
        %v709 = vpop.f32.mrb[0].mxu0
        %710 = vdwg.mxu0
        %v711 = vmul.f32 %v658, 0.35355338
        %v712 = vmul.f32 %v706, 0.35355338
        %v713 = vsel %vm616, %v711, -inf
        %714 = vmax.xlane.f32.xlu0 %v713
        %v715 = vpop.xlane.xlu0 %714
        %v716 = vsel %vm616, %v712, -inf
        %717 = vmax.xlane.f32.xlu0 %v716
        %v718 = vpop.xlane.xlu0 %717
        %v719 = vsub.f32 %v711, %v715
        %v720 = vsub.f32 %v712, %v718
        %v721 = vmul.f32 %v719, 1.442695
        %v722 = vpow.pop %v721
        %v723 = vmul.f32 %v720, 1.442695
        %v724 = vpow.pop %v723
        %v725 = vsel %vm616, %v722, 0.0
        %726 = vadd.xlane.f32.xlu0 %v725
        %v727 = vpop.xlane.xlu0 %726
        %v728 = vsel %vm616, %v724, 0.0
        %729 = vadd.xlane.f32.xlu0 %v728
        %v730 = vpop.xlane.xlu0 %729
        %v731 = vrcp.pop %v727
        %v732 = vrcp.pop %v730
        %v733 = vmul.f32 %v722, %v731
        %v734 = vmul.f32 %v724, %v732
        %v735 = vpack.c.bf16 %v733, %v733
        %v736 = vpack.c.bf16 %v734, %v734
        %737 = vrot.lane.b32.xlu0 %v612, 64
        %v738 = vpop.permute.xlu0 %737
        %v740 = vsel %vm616, %v735, 0
        %vm742 = vcmask 1043456
        %v744 = vsel %vm742, %v738, 0
        %746 = vmatprep.subr.bf16.mxu0 0
        %747 = vmatpush1.bf16.msra.mxu0 %v744
        %748 = vmatprep.subr.bf16.mxu0 0
        %749 = vmatpush1.bf16.msra.mxu0 0
        %750 = vmatprep.subr.bf16.mxu0 0
        %751 = vmatpush1.bf16.msra.mxu0 0
        %752 = vmatprep.subr.bf16.mxu0 0
        %753 = vmatpush1.bf16.msra.mxu0 0
        %754 = vmatprep.subr.bf16.mxu0 0
        %755 = vmatpush1.bf16.msra.mxu0 0
        %756 = vmatprep.subr.bf16.mxu0 0
        %757 = vmatpush1.bf16.msra.mxu0 0
        %758 = vmatprep.subr.bf16.mxu0 0
        %759 = vmatpush1.bf16.msra.mxu0 0
        %760 = vmatprep.subr.bf16.mxu0 0
        %761 = vmatpush1.bf16.msra.mxu0 0
        %762 = vmatprep.subr.bf16.mxu0 0
        %763 = vmatpush1.bf16.msra.mxu0 0
        %764 = vmatprep.subr.bf16.mxu0 0
        %765 = vmatpush1.bf16.msra.mxu0 0
        %766 = vmatprep.subr.bf16.mxu0 0
        %767 = vmatpush1.bf16.msra.mxu0 0
        %768 = vmatprep.subr.bf16.mxu0 0
        %769 = vmatpush1.bf16.msra.mxu0 0
        %770 = vmatprep.subr.bf16.mxu0 0
        %771 = vmatpush1.bf16.msra.mxu0 0
        %772 = vmatprep.subr.bf16.mxu0 0
        %773 = vmatpush1.bf16.msra.mxu0 0
        %774 = vmatprep.subr.bf16.mxu0 0
        %775 = vmatpush1.bf16.msra.mxu0 0
        %776 = vmatprep.subr.bf16.mxu0 0
        %777 = vmatpush1.bf16.msra.mxu0 0
        %778 = vmatprep.mubr.bf16.mxu0 0
        %779 = vmatmul.mubr.bf16.gmra.mrb[0].mxu0 %v740
        %v780 = vpop.f32.mrb[0].mxu0
        %v781 = vadd.f32 0.0, %v780
        %v782 = vpop.f32.mrb[0].mxu0
        %v783 = vpop.f32.mrb[0].mxu0
        %v784 = vpop.f32.mrb[0].mxu0
        %785 = vdwg.mxu0
        %786 = vrot.lane.b32.xlu0 %v613, 64
        %v787 = vpop.permute.xlu0 %786
        %v789 = vsel %vm616, %v736, 0
        %v792 = vsel %vm742, %v787, 0
        %794 = vmatprep.subr.bf16.mxu0 0
        %795 = vmatpush1.bf16.msra.mxu0 %v792
        %796 = vmatprep.subr.bf16.mxu0 0
        %797 = vmatpush1.bf16.msra.mxu0 0
        %798 = vmatprep.subr.bf16.mxu0 0
        %799 = vmatpush1.bf16.msra.mxu0 0
        %800 = vmatprep.subr.bf16.mxu0 0
        %801 = vmatpush1.bf16.msra.mxu0 0
        %802 = vmatprep.subr.bf16.mxu0 0
        %803 = vmatpush1.bf16.msra.mxu0 0
        %804 = vmatprep.subr.bf16.mxu0 0
        %805 = vmatpush1.bf16.msra.mxu0 0
        %806 = vmatprep.subr.bf16.mxu0 0
        %807 = vmatpush1.bf16.msra.mxu0 0
        %808 = vmatprep.subr.bf16.mxu0 0
        %809 = vmatpush1.bf16.msra.mxu0 0
        %810 = vmatprep.subr.bf16.mxu0 0
        %811 = vmatpush1.bf16.msra.mxu0 0
        %812 = vmatprep.subr.bf16.mxu0 0
        %813 = vmatpush1.bf16.msra.mxu0 0
        %814 = vmatprep.subr.bf16.mxu0 0
        %815 = vmatpush1.bf16.msra.mxu0 0
        %816 = vmatprep.subr.bf16.mxu0 0
        %817 = vmatpush1.bf16.msra.mxu0 0
        %818 = vmatprep.subr.bf16.mxu0 0
        %819 = vmatpush1.bf16.msra.mxu0 0
        %820 = vmatprep.subr.bf16.mxu0 0
        %821 = vmatpush1.bf16.msra.mxu0 0
        %822 = vmatprep.subr.bf16.mxu0 0
        %823 = vmatpush1.bf16.msra.mxu0 0
        %824 = vmatprep.subr.bf16.mxu0 0
        %825 = vmatpush1.bf16.msra.mxu0 0
        %826 = vmatprep.mubr.bf16.mxu0 0
        %827 = vmatmul.mubr.bf16.gmra.mrb[0].mxu0 %v789
        %v828 = vpop.f32.mrb[0].mxu0
        %v829 = vadd.f32 0.0, %v828
        %v830 = vpop.f32.mrb[0].mxu0
        %v831 = vpop.f32.mrb[0].mxu0
        %v832 = vpop.f32.mrb[0].mxu0
        %833 = vdwg.mxu0
        %834 = vrot.lane.b32.xlu0 %v612, 120
        %v835 = vpop.permute.xlu0 %834
        %836 = vrot.lane.b32.xlu0 %v612, 88
        %v837 = vpop.permute.xlu0 %836
        %v839 = vsel %vm616, %v835, 0
        %v842 = vsel %vm616, %v837, 0
        %844 = vmatprep.subr.bf16.mxu0 0
        %845 = vmatpush1.bf16.xpose.msra.mxu0 %v842
        %846 = vmatprep.subr.bf16.mxu0 0
        %847 = vmatpush1.bf16.xpose.msra.mxu0 0
        %848 = vmatprep.subr.bf16.mxu0 0
        %849 = vmatpush1.bf16.xpose.msra.mxu0 0
        %850 = vmatprep.subr.bf16.mxu0 0
        %851 = vmatpush1.bf16.xpose.msra.mxu0 0
        %852 = vmatprep.subr.bf16.mxu0 0
        %853 = vmatpush1.bf16.xpose.msra.mxu0 0
        %854 = vmatprep.subr.bf16.mxu0 0
        %855 = vmatpush1.bf16.xpose.msra.mxu0 0
        %856 = vmatprep.subr.bf16.mxu0 0
        %857 = vmatpush1.bf16.xpose.msra.mxu0 0
        %858 = vmatprep.subr.bf16.mxu0 0
        %859 = vmatpush1.bf16.xpose.msra.mxu0 0
        %860 = vmatprep.subr.bf16.mxu0 0
        %861 = vmatpush1.bf16.xpose.msra.mxu0 0
        %862 = vmatprep.subr.bf16.mxu0 0
        %863 = vmatpush1.bf16.xpose.msra.mxu0 0
        %864 = vmatprep.subr.bf16.mxu0 0
        %865 = vmatpush1.bf16.xpose.msra.mxu0 0
        %866 = vmatprep.subr.bf16.mxu0 0
        %867 = vmatpush1.bf16.xpose.msra.mxu0 0
        %868 = vmatprep.subr.bf16.mxu0 0
        %869 = vmatpush1.bf16.xpose.msra.mxu0 0
        %870 = vmatprep.subr.bf16.mxu0 0
        %871 = vmatpush1.bf16.xpose.msra.mxu0 0
        %872 = vmatprep.subr.bf16.mxu0 0
        %873 = vmatpush1.bf16.xpose.msra.mxu0 0
        %874 = vmatprep.subr.bf16.mxu0 0
        %875 = vmatpush1.bf16.xpose.msra.mxu0 0
        %876 = vmatprep.mubr.bf16.mxu0 0
        %877 = vmatmul.mubr.bf16.gmra.mrb[0].mxu0 %v839
        %v878 = vpop.f32.mrb[0].mxu0
        %v879 = vadd.f32 0.0, %v878
        %v880 = vpop.f32.mrb[0].mxu0
        %v881 = vpop.f32.mrb[0].mxu0
        %v882 = vpop.f32.mrb[0].mxu0
        %883 = vdwg.mxu0
        %884 = vrot.lane.b32.xlu0 %v613, 120
        %v885 = vpop.permute.xlu0 %884
        %886 = vrot.lane.b32.xlu0 %v613, 88
        %v887 = vpop.permute.xlu0 %886
        %v889 = vsel %vm616, %v885, 0
        %v892 = vsel %vm616, %v887, 0
        %894 = vmatprep.subr.bf16.mxu0 0
        %895 = vmatpush1.bf16.xpose.msra.mxu0 %v892
        %896 = vmatprep.subr.bf16.mxu0 0
        %897 = vmatpush1.bf16.xpose.msra.mxu0 0
        %898 = vmatprep.subr.bf16.mxu0 0
        %899 = vmatpush1.bf16.xpose.msra.mxu0 0
        %900 = vmatprep.subr.bf16.mxu0 0
        %901 = vmatpush1.bf16.xpose.msra.mxu0 0
        %902 = vmatprep.subr.bf16.mxu0 0
        %903 = vmatpush1.bf16.xpose.msra.mxu0 0
        %904 = vmatprep.subr.bf16.mxu0 0
        %905 = vmatpush1.bf16.xpose.msra.mxu0 0
        %906 = vmatprep.subr.bf16.mxu0 0
        %907 = vmatpush1.bf16.xpose.msra.mxu0 0
        %908 = vmatprep.subr.bf16.mxu0 0
        %909 = vmatpush1.bf16.xpose.msra.mxu0 0
        %910 = vmatprep.subr.bf16.mxu0 0
        %911 = vmatpush1.bf16.xpose.msra.mxu0 0
        %912 = vmatprep.subr.bf16.mxu0 0
        %913 = vmatpush1.bf16.xpose.msra.mxu0 0
        %914 = vmatprep.subr.bf16.mxu0 0
        %915 = vmatpush1.bf16.xpose.msra.mxu0 0
        %916 = vmatprep.subr.bf16.mxu0 0
        %917 = vmatpush1.bf16.xpose.msra.mxu0 0
        %918 = vmatprep.subr.bf16.mxu0 0
        %919 = vmatpush1.bf16.xpose.msra.mxu0 0
        %920 = vmatprep.subr.bf16.mxu0 0
        %921 = vmatpush1.bf16.xpose.msra.mxu0 0
        %922 = vmatprep.subr.bf16.mxu0 0
        %923 = vmatpush1.bf16.xpose.msra.mxu0 0
        %924 = vmatprep.subr.bf16.mxu0 0
        %925 = vmatpush1.bf16.xpose.msra.mxu0 0
        %926 = vmatprep.mubr.bf16.mxu0 0
        %927 = vmatmul.mubr.bf16.gmra.mrb[0].mxu0 %v889
        %v928 = vpop.f32.mrb[0].mxu0
        %v929 = vadd.f32 0.0, %v928
        %v930 = vpop.f32.mrb[0].mxu0
        %v931 = vpop.f32.mrb[0].mxu0
        %v932 = vpop.f32.mrb[0].mxu0
        %933 = vdwg.mxu0
        %v934 = vmul.f32 %v879, 0.35355338
        %v935 = vmul.f32 %v929, 0.35355338
        %v936 = vsel %vm616, %v934, -inf
        %937 = vmax.xlane.f32.xlu0 %v936
        %v938 = vpop.xlane.xlu0 %937
        %v939 = vsel %vm616, %v935, -inf
        %940 = vmax.xlane.f32.xlu0 %v939
        %v941 = vpop.xlane.xlu0 %940
        %v942 = vsub.f32 %v934, %v938
        %v943 = vsub.f32 %v935, %v941
        %v944 = vmul.f32 %v942, 1.442695
        %v945 = vpow.pop %v944
        %v946 = vmul.f32 %v943, 1.442695
        %v947 = vpow.pop %v946
        %v948 = vsel %vm616, %v945, 0.0
        %949 = vadd.xlane.f32.xlu0 %v948
        %v950 = vpop.xlane.xlu0 %949
        %v951 = vsel %vm616, %v947, 0.0
        %952 = vadd.xlane.f32.xlu0 %v951
        %v953 = vpop.xlane.xlu0 %952
        %v954 = vrcp.pop %v950
        %v955 = vrcp.pop %v953
        %v956 = vmul.f32 %v945, %v954
        %v957 = vmul.f32 %v947, %v955
        %v958 = vpack.c.bf16 %v956, %v956
        %v959 = vpack.c.bf16 %v957, %v957
        %960 = vrot.lane.b32.xlu0 %v612, 56
        %v961 = vpop.permute.xlu0 %960
        %v963 = vsel %vm616, %v958, 0
        %v966 = vsel %vm742, %v961, 0
        %968 = vmatprep.subr.bf16.mxu0 0
        %969 = vmatpush1.bf16.msra.mxu0 %v966
        %970 = vmatprep.subr.bf16.mxu0 0
        %971 = vmatpush1.bf16.msra.mxu0 0
        %972 = vmatprep.subr.bf16.mxu0 0
        %973 = vmatpush1.bf16.msra.mxu0 0
        %974 = vmatprep.subr.bf16.mxu0 0
        %975 = vmatpush1.bf16.msra.mxu0 0
        %976 = vmatprep.subr.bf16.mxu0 0
        %977 = vmatpush1.bf16.msra.mxu0 0
        %978 = vmatprep.subr.bf16.mxu0 0
        %979 = vmatpush1.bf16.msra.mxu0 0
        %980 = vmatprep.subr.bf16.mxu0 0
        %981 = vmatpush1.bf16.msra.mxu0 0
        %982 = vmatprep.subr.bf16.mxu0 0
        %983 = vmatpush1.bf16.msra.mxu0 0
        %984 = vmatprep.subr.bf16.mxu0 0
        %985 = vmatpush1.bf16.msra.mxu0 0
        %986 = vmatprep.subr.bf16.mxu0 0
        %987 = vmatpush1.bf16.msra.mxu0 0
        %988 = vmatprep.subr.bf16.mxu0 0
        %989 = vmatpush1.bf16.msra.mxu0 0
        %990 = vmatprep.subr.bf16.mxu0 0
        %991 = vmatpush1.bf16.msra.mxu0 0
        %992 = vmatprep.subr.bf16.mxu0 0
        %993 = vmatpush1.bf16.msra.mxu0 0
        %994 = vmatprep.subr.bf16.mxu0 0
        %995 = vmatpush1.bf16.msra.mxu0 0
        %996 = vmatprep.subr.bf16.mxu0 0
        %997 = vmatpush1.bf16.msra.mxu0 0
        %998 = vmatprep.subr.bf16.mxu0 0
        %999 = vmatpush1.bf16.msra.mxu0 0
        %1000 = vmatprep.mubr.bf16.mxu0 0
        %1001 = vmatmul.mubr.bf16.gmra.mrb[0].mxu0 %v963
        %v1002 = vpop.f32.mrb[0].mxu0
        %v1003 = vadd.f32 0.0, %v1002
        %v1004 = vpop.f32.mrb[0].mxu0
        %v1005 = vpop.f32.mrb[0].mxu0
        %v1006 = vpop.f32.mrb[0].mxu0
        %1007 = vdwg.mxu0
        %1008 = vrot.lane.b32.xlu0 %v613, 56
        %v1009 = vpop.permute.xlu0 %1008
        %v1011 = vsel %vm616, %v959, 0
        %v1014 = vsel %vm742, %v1009, 0
        %1016 = vmatprep.subr.bf16.mxu0 0
        %1017 = vmatpush1.bf16.msra.mxu0 %v1014
        %1018 = vmatprep.subr.bf16.mxu0 0
        %1019 = vmatpush1.bf16.msra.mxu0 0
        %1020 = vmatprep.subr.bf16.mxu0 0
        %1021 = vmatpush1.bf16.msra.mxu0 0
        %1022 = vmatprep.subr.bf16.mxu0 0
        %1023 = vmatpush1.bf16.msra.mxu0 0
        %1024 = vmatprep.subr.bf16.mxu0 0
        %1025 = vmatpush1.bf16.msra.mxu0 0
        %1026 = vmatprep.subr.bf16.mxu0 0
        %1027 = vmatpush1.bf16.msra.mxu0 0
        %1028 = vmatprep.subr.bf16.mxu0 0
        %1029 = vmatpush1.bf16.msra.mxu0 0
        %1030 = vmatprep.subr.bf16.mxu0 0
        %1031 = vmatpush1.bf16.msra.mxu0 0
        %1032 = vmatprep.subr.bf16.mxu0 0
        %1033 = vmatpush1.bf16.msra.mxu0 0
        %1034 = vmatprep.subr.bf16.mxu0 0
        %1035 = vmatpush1.bf16.msra.mxu0 0
        %1036 = vmatprep.subr.bf16.mxu0 0
        %1037 = vmatpush1.bf16.msra.mxu0 0
        %1038 = vmatprep.subr.bf16.mxu0 0
        %1039 = vmatpush1.bf16.msra.mxu0 0
        %1040 = vmatprep.subr.bf16.mxu0 0
        %1041 = vmatpush1.bf16.msra.mxu0 0
        %1042 = vmatprep.subr.bf16.mxu0 0
        %1043 = vmatpush1.bf16.msra.mxu0 0
        %1044 = vmatprep.subr.bf16.mxu0 0
        %1045 = vmatpush1.bf16.msra.mxu0 0
        %1046 = vmatprep.subr.bf16.mxu0 0
        %1047 = vmatpush1.bf16.msra.mxu0 0
        %1048 = vmatprep.mubr.bf16.mxu0 0
        %1049 = vmatmul.mubr.bf16.gmra.mrb[0].mxu0 %v1011
        %v1050 = vpop.f32.mrb[0].mxu0
        %v1051 = vadd.f32 0.0, %v1050
        %v1052 = vpop.f32.mrb[0].mxu0
        %v1053 = vpop.f32.mrb[0].mxu0
        %v1054 = vpop.f32.mrb[0].mxu0
        %1055 = vdwg.mxu0
        %1056 = vrot.lane.b32.xlu0 %v612, 112
        %v1057 = vpop.permute.xlu0 %1056
        %1058 = vrot.lane.b32.xlu0 %v612, 80
        %v1059 = vpop.permute.xlu0 %1058
        %v1061 = vsel %vm616, %v1057, 0
        %v1064 = vsel %vm616, %v1059, 0
        %1066 = vmatprep.subr.bf16.mxu0 0
        %1067 = vmatpush1.bf16.xpose.msra.mxu0 %v1064
        %1068 = vmatprep.subr.bf16.mxu0 0
        %1069 = vmatpush1.bf16.xpose.msra.mxu0 0
        %1070 = vmatprep.subr.bf16.mxu0 0
        %1071 = vmatpush1.bf16.xpose.msra.mxu0 0
        %1072 = vmatprep.subr.bf16.mxu0 0
        %1073 = vmatpush1.bf16.xpose.msra.mxu0 0
        %1074 = vmatprep.subr.bf16.mxu0 0
        %1075 = vmatpush1.bf16.xpose.msra.mxu0 0
        %1076 = vmatprep.subr.bf16.mxu0 0
        %1077 = vmatpush1.bf16.xpose.msra.mxu0 0
        %1078 = vmatprep.subr.bf16.mxu0 0
        %1079 = vmatpush1.bf16.xpose.msra.mxu0 0
        %1080 = vmatprep.subr.bf16.mxu0 0
        %1081 = vmatpush1.bf16.xpose.msra.mxu0 0
        %1082 = vmatprep.subr.bf16.mxu0 0
        %1083 = vmatpush1.bf16.xpose.msra.mxu0 0
        %1084 = vmatprep.subr.bf16.mxu0 0
        %1085 = vmatpush1.bf16.xpose.msra.mxu0 0
        %1086 = vmatprep.subr.bf16.mxu0 0
        %1087 = vmatpush1.bf16.xpose.msra.mxu0 0
        %1088 = vmatprep.subr.bf16.mxu0 0
        %1089 = vmatpush1.bf16.xpose.msra.mxu0 0
        %1090 = vmatprep.subr.bf16.mxu0 0
        %1091 = vmatpush1.bf16.xpose.msra.mxu0 0
        %1092 = vmatprep.subr.bf16.mxu0 0
        %1093 = vmatpush1.bf16.xpose.msra.mxu0 0
        %1094 = vmatprep.subr.bf16.mxu0 0
        %1095 = vmatpush1.bf16.xpose.msra.mxu0 0
        %1096 = vmatprep.subr.bf16.mxu0 0
        %1097 = vmatpush1.bf16.xpose.msra.mxu0 0
        %1098 = vmatprep.mubr.bf16.mxu0 0
        %1099 = vmatmul.mubr.bf16.gmra.mrb[0].mxu0 %v1061
        %v1100 = vpop.f32.mrb[0].mxu0
        %v1101 = vadd.f32 0.0, %v1100
        %v1102 = vpop.f32.mrb[0].mxu0
        %v1103 = vpop.f32.mrb[0].mxu0
        %v1104 = vpop.f32.mrb[0].mxu0
        %1105 = vdwg.mxu0
        %1106 = vrot.lane.b32.xlu0 %v613, 112
        %v1107 = vpop.permute.xlu0 %1106
        %1108 = vrot.lane.b32.xlu0 %v613, 80
        %v1109 = vpop.permute.xlu0 %1108
        %v1111 = vsel %vm616, %v1107, 0
        %v1114 = vsel %vm616, %v1109, 0
        %1116 = vmatprep.subr.bf16.mxu0 0
        %1117 = vmatpush1.bf16.xpose.msra.mxu0 %v1114
        %1118 = vmatprep.subr.bf16.mxu0 0
        %1119 = vmatpush1.bf16.xpose.msra.mxu0 0
        %1120 = vmatprep.subr.bf16.mxu0 0
        %1121 = vmatpush1.bf16.xpose.msra.mxu0 0
        %1122 = vmatprep.subr.bf16.mxu0 0
        %1123 = vmatpush1.bf16.xpose.msra.mxu0 0
        %1124 = vmatprep.subr.bf16.mxu0 0
        %1125 = vmatpush1.bf16.xpose.msra.mxu0 0
        %1126 = vmatprep.subr.bf16.mxu0 0
        %1127 = vmatpush1.bf16.xpose.msra.mxu0 0
        %1128 = vmatprep.subr.bf16.mxu0 0
        %1129 = vmatpush1.bf16.xpose.msra.mxu0 0
        %1130 = vmatprep.subr.bf16.mxu0 0
        %1131 = vmatpush1.bf16.xpose.msra.mxu0 0
        %1132 = vmatprep.subr.bf16.mxu0 0
        %1133 = vmatpush1.bf16.xpose.msra.mxu0 0
        %1134 = vmatprep.subr.bf16.mxu0 0
        %1135 = vmatpush1.bf16.xpose.msra.mxu0 0
        %1136 = vmatprep.subr.bf16.mxu0 0
        %1137 = vmatpush1.bf16.xpose.msra.mxu0 0
        %1138 = vmatprep.subr.bf16.mxu0 0
        %1139 = vmatpush1.bf16.xpose.msra.mxu0 0
        %1140 = vmatprep.subr.bf16.mxu0 0
        %1141 = vmatpush1.bf16.xpose.msra.mxu0 0
        %1142 = vmatprep.subr.bf16.mxu0 0
        %1143 = vmatpush1.bf16.xpose.msra.mxu0 0
        %1144 = vmatprep.subr.bf16.mxu0 0
        %1145 = vmatpush1.bf16.xpose.msra.mxu0 0
        %1146 = vmatprep.subr.bf16.mxu0 0
        %1147 = vmatpush1.bf16.xpose.msra.mxu0 0
        %1148 = vmatprep.mubr.bf16.mxu0 0
        %1149 = vmatmul.mubr.bf16.gmra.mrb[0].mxu0 %v1111
        %v1150 = vpop.f32.mrb[0].mxu0
        %v1151 = vadd.f32 0.0, %v1150
        %v1152 = vpop.f32.mrb[0].mxu0
        %v1153 = vpop.f32.mrb[0].mxu0
        %v1154 = vpop.f32.mrb[0].mxu0
        %1155 = vdwg.mxu0
        %v1156 = vmul.f32 %v1101, 0.35355338
        %v1157 = vmul.f32 %v1151, 0.35355338
        %v1158 = vsel %vm616, %v1156, -inf
        %1159 = vmax.xlane.f32.xlu0 %v1158
        %v1160 = vpop.xlane.xlu0 %1159
        %v1161 = vsel %vm616, %v1157, -inf
        %1162 = vmax.xlane.f32.xlu0 %v1161
        %v1163 = vpop.xlane.xlu0 %1162
        %v1164 = vsub.f32 %v1156, %v1160
        %v1165 = vsub.f32 %v1157, %v1163
        %v1166 = vmul.f32 %v1164, 1.442695
        %v1167 = vpow.pop %v1166
        %v1168 = vmul.f32 %v1165, 1.442695
        %v1169 = vpow.pop %v1168
        %v1170 = vsel %vm616, %v1167, 0.0
        %1171 = vadd.xlane.f32.xlu0 %v1170
        %v1172 = vpop.xlane.xlu0 %1171
        %v1173 = vsel %vm616, %v1169, 0.0
        %1174 = vadd.xlane.f32.xlu0 %v1173
        %v1175 = vpop.xlane.xlu0 %1174
        %v1176 = vrcp.pop %v1172
        %v1177 = vrcp.pop %v1175
        %v1178 = vmul.f32 %v1167, %v1176
        %v1179 = vmul.f32 %v1169, %v1177
        %v1180 = vpack.c.bf16 %v1178, %v1178
        %v1181 = vpack.c.bf16 %v1179, %v1179
        %1182 = vrot.lane.b32.xlu0 %v612, 48
        %v1183 = vpop.permute.xlu0 %1182
        %v1185 = vsel %vm616, %v1180, 0
        %v1188 = vsel %vm742, %v1183, 0
        %1190 = vmatprep.subr.bf16.mxu0 0
        %1191 = vmatpush1.bf16.msra.mxu0 %v1188
        %1192 = vmatprep.subr.bf16.mxu0 0
        %1193 = vmatpush1.bf16.msra.mxu0 0
        %1194 = vmatprep.subr.bf16.mxu0 0
        %1195 = vmatpush1.bf16.msra.mxu0 0
        %1196 = vmatprep.subr.bf16.mxu0 0
        %1197 = vmatpush1.bf16.msra.mxu0 0
        %1198 = vmatprep.subr.bf16.mxu0 0
        %1199 = vmatpush1.bf16.msra.mxu0 0
        %1200 = vmatprep.subr.bf16.mxu0 0
        %1201 = vmatpush1.bf16.msra.mxu0 0
        %1202 = vmatprep.subr.bf16.mxu0 0
        %1203 = vmatpush1.bf16.msra.mxu0 0
        %1204 = vmatprep.subr.bf16.mxu0 0
        %1205 = vmatpush1.bf16.msra.mxu0 0
        %1206 = vmatprep.subr.bf16.mxu0 0
        %1207 = vmatpush1.bf16.msra.mxu0 0
        %1208 = vmatprep.subr.bf16.mxu0 0
        %1209 = vmatpush1.bf16.msra.mxu0 0
        %1210 = vmatprep.subr.bf16.mxu0 0
        %1211 = vmatpush1.bf16.msra.mxu0 0
        %1212 = vmatprep.subr.bf16.mxu0 0
        %1213 = vmatpush1.bf16.msra.mxu0 0
        %1214 = vmatprep.subr.bf16.mxu0 0
        %1215 = vmatpush1.bf16.msra.mxu0 0
        %1216 = vmatprep.subr.bf16.mxu0 0
        %1217 = vmatpush1.bf16.msra.mxu0 0
        %1218 = vmatprep.subr.bf16.mxu0 0
        %1219 = vmatpush1.bf16.msra.mxu0 0
        %1220 = vmatprep.subr.bf16.mxu0 0
        %1221 = vmatpush1.bf16.msra.mxu0 0
        %1222 = vmatprep.mubr.bf16.mxu0 0
        %1223 = vmatmul.mubr.bf16.gmra.mrb[0].mxu0 %v1185
        %v1224 = vpop.f32.mrb[0].mxu0
        %v1225 = vadd.f32 0.0, %v1224
        %v1226 = vpop.f32.mrb[0].mxu0
        %v1227 = vpop.f32.mrb[0].mxu0
        %v1228 = vpop.f32.mrb[0].mxu0
        %1229 = vdwg.mxu0
        %1230 = vrot.lane.b32.xlu0 %v613, 48
        %v1231 = vpop.permute.xlu0 %1230
        %v1233 = vsel %vm616, %v1181, 0
        %v1236 = vsel %vm742, %v1231, 0
        %1238 = vmatprep.subr.bf16.mxu0 0
        %1239 = vmatpush1.bf16.msra.mxu0 %v1236
        %1240 = vmatprep.subr.bf16.mxu0 0
        %1241 = vmatpush1.bf16.msra.mxu0 0
        %1242 = vmatprep.subr.bf16.mxu0 0
        %1243 = vmatpush1.bf16.msra.mxu0 0
        %1244 = vmatprep.subr.bf16.mxu0 0
        %1245 = vmatpush1.bf16.msra.mxu0 0
        %1246 = vmatprep.subr.bf16.mxu0 0
        %1247 = vmatpush1.bf16.msra.mxu0 0
        %1248 = vmatprep.subr.bf16.mxu0 0
        %1249 = vmatpush1.bf16.msra.mxu0 0
        %1250 = vmatprep.subr.bf16.mxu0 0
        %1251 = vmatpush1.bf16.msra.mxu0 0
        %1252 = vmatprep.subr.bf16.mxu0 0
        %1253 = vmatpush1.bf16.msra.mxu0 0
        %1254 = vmatprep.subr.bf16.mxu0 0
        %1255 = vmatpush1.bf16.msra.mxu0 0
        %1256 = vmatprep.subr.bf16.mxu0 0
        %1257 = vmatpush1.bf16.msra.mxu0 0
        %1258 = vmatprep.subr.bf16.mxu0 0
        %1259 = vmatpush1.bf16.msra.mxu0 0
        %1260 = vmatprep.subr.bf16.mxu0 0
        %1261 = vmatpush1.bf16.msra.mxu0 0
        %1262 = vmatprep.subr.bf16.mxu0 0
        %1263 = vmatpush1.bf16.msra.mxu0 0
        %1264 = vmatprep.subr.bf16.mxu0 0
        %1265 = vmatpush1.bf16.msra.mxu0 0
        %1266 = vmatprep.subr.bf16.mxu0 0
        %1267 = vmatpush1.bf16.msra.mxu0 0
        %1268 = vmatprep.subr.bf16.mxu0 0
        %1269 = vmatpush1.bf16.msra.mxu0 0
        %1270 = vmatprep.mubr.bf16.mxu0 0
        %1271 = vmatmul.mubr.bf16.gmra.mrb[0].mxu0 %v1233
        %v1272 = vpop.f32.mrb[0].mxu0
        %v1273 = vadd.f32 0.0, %v1272
        %v1274 = vpop.f32.mrb[0].mxu0
        %v1275 = vpop.f32.mrb[0].mxu0
        %v1276 = vpop.f32.mrb[0].mxu0
        %1277 = vdwg.mxu0
        %1278 = vrot.lane.b32.xlu0 %v612, 104
        %v1279 = vpop.permute.xlu0 %1278
        %1280 = vrot.lane.b32.xlu0 %v612, 72
        %v1281 = vpop.permute.xlu0 %1280
        %v1283 = vsel %vm616, %v1279, 0
        %v1286 = vsel %vm616, %v1281, 0
        %1288 = vmatprep.subr.bf16.mxu0 0
        %1289 = vmatpush1.bf16.xpose.msra.mxu0 %v1286
        %1290 = vmatprep.subr.bf16.mxu0 0
        %1291 = vmatpush1.bf16.xpose.msra.mxu0 0
        %1292 = vmatprep.subr.bf16.mxu0 0
        %1293 = vmatpush1.bf16.xpose.msra.mxu0 0
        %1294 = vmatprep.subr.bf16.mxu0 0
        %1295 = vmatpush1.bf16.xpose.msra.mxu0 0
        %1296 = vmatprep.subr.bf16.mxu0 0
        %1297 = vmatpush1.bf16.xpose.msra.mxu0 0
        %1298 = vmatprep.subr.bf16.mxu0 0
        %1299 = vmatpush1.bf16.xpose.msra.mxu0 0
        %1300 = vmatprep.subr.bf16.mxu0 0
        %1301 = vmatpush1.bf16.xpose.msra.mxu0 0
        %1302 = vmatprep.subr.bf16.mxu0 0
        %1303 = vmatpush1.bf16.xpose.msra.mxu0 0
        %1304 = vmatprep.subr.bf16.mxu0 0
        %1305 = vmatpush1.bf16.xpose.msra.mxu0 0
        %1306 = vmatprep.subr.bf16.mxu0 0
        %1307 = vmatpush1.bf16.xpose.msra.mxu0 0
        %1308 = vmatprep.subr.bf16.mxu0 0
        %1309 = vmatpush1.bf16.xpose.msra.mxu0 0
        %1310 = vmatprep.subr.bf16.mxu0 0
        %1311 = vmatpush1.bf16.xpose.msra.mxu0 0
        %1312 = vmatprep.subr.bf16.mxu0 0
        %1313 = vmatpush1.bf16.xpose.msra.mxu0 0
        %1314 = vmatprep.subr.bf16.mxu0 0
        %1315 = vmatpush1.bf16.xpose.msra.mxu0 0
        %1316 = vmatprep.subr.bf16.mxu0 0
        %1317 = vmatpush1.bf16.xpose.msra.mxu0 0
        %1318 = vmatprep.subr.bf16.mxu0 0
        %1319 = vmatpush1.bf16.xpose.msra.mxu0 0
        %1320 = vmatprep.mubr.bf16.mxu0 0
        %1321 = vmatmul.mubr.bf16.gmra.mrb[0].mxu0 %v1283
        %v1322 = vpop.f32.mrb[0].mxu0
        %v1323 = vadd.f32 0.0, %v1322
        %v1324 = vpop.f32.mrb[0].mxu0
        %v1325 = vpop.f32.mrb[0].mxu0
        %v1326 = vpop.f32.mrb[0].mxu0
        %1327 = vdwg.mxu0
        %1328 = vrot.lane.b32.xlu0 %v613, 104
        %v1329 = vpop.permute.xlu0 %1328
        %1330 = vrot.lane.b32.xlu0 %v613, 72
        %v1331 = vpop.permute.xlu0 %1330
        %v1333 = vsel %vm616, %v1329, 0
        %v1336 = vsel %vm616, %v1331, 0
        %1338 = vmatprep.subr.bf16.mxu0 0
        %1339 = vmatpush1.bf16.xpose.msra.mxu0 %v1336
        %1340 = vmatprep.subr.bf16.mxu0 0
        %1341 = vmatpush1.bf16.xpose.msra.mxu0 0
        %1342 = vmatprep.subr.bf16.mxu0 0
        %1343 = vmatpush1.bf16.xpose.msra.mxu0 0
        %1344 = vmatprep.subr.bf16.mxu0 0
        %1345 = vmatpush1.bf16.xpose.msra.mxu0 0
        %1346 = vmatprep.subr.bf16.mxu0 0
        %1347 = vmatpush1.bf16.xpose.msra.mxu0 0
        %1348 = vmatprep.subr.bf16.mxu0 0
        %1349 = vmatpush1.bf16.xpose.msra.mxu0 0
        %1350 = vmatprep.subr.bf16.mxu0 0
        %1351 = vmatpush1.bf16.xpose.msra.mxu0 0
        %1352 = vmatprep.subr.bf16.mxu0 0
        %1353 = vmatpush1.bf16.xpose.msra.mxu0 0
        %1354 = vmatprep.subr.bf16.mxu0 0
        %1355 = vmatpush1.bf16.xpose.msra.mxu0 0
        %1356 = vmatprep.subr.bf16.mxu0 0
        %1357 = vmatpush1.bf16.xpose.msra.mxu0 0
        %1358 = vmatprep.subr.bf16.mxu0 0
        %1359 = vmatpush1.bf16.xpose.msra.mxu0 0
        %1360 = vmatprep.subr.bf16.mxu0 0
        %1361 = vmatpush1.bf16.xpose.msra.mxu0 0
        %1362 = vmatprep.subr.bf16.mxu0 0
        %1363 = vmatpush1.bf16.xpose.msra.mxu0 0
        %1364 = vmatprep.subr.bf16.mxu0 0
        %1365 = vmatpush1.bf16.xpose.msra.mxu0 0
        %1366 = vmatprep.subr.bf16.mxu0 0
        %1367 = vmatpush1.bf16.xpose.msra.mxu0 0
        %1368 = vmatprep.subr.bf16.mxu0 0
        %1369 = vmatpush1.bf16.xpose.msra.mxu0 0
        %1370 = vmatprep.mubr.bf16.mxu0 0
        %1371 = vmatmul.mubr.bf16.gmra.mrb[0].mxu0 %v1333
        %v1372 = vpop.f32.mrb[0].mxu0
        %v1373 = vadd.f32 0.0, %v1372
        %v1374 = vpop.f32.mrb[0].mxu0
        %v1375 = vpop.f32.mrb[0].mxu0
        %v1376 = vpop.f32.mrb[0].mxu0
        %1377 = vdwg.mxu0
        %v1378 = vmul.f32 %v1323, 0.35355338
        %v1379 = vmul.f32 %v1373, 0.35355338
        %v1380 = vsel %vm616, %v1378, -inf
        %1381 = vmax.xlane.f32.xlu0 %v1380
        %v1382 = vpop.xlane.xlu0 %1381
        %v1383 = vsel %vm616, %v1379, -inf
        %1384 = vmax.xlane.f32.xlu0 %v1383
        %v1385 = vpop.xlane.xlu0 %1384
        %v1386 = vsub.f32 %v1378, %v1382
        %v1387 = vsub.f32 %v1379, %v1385
        %v1388 = vmul.f32 %v1386, 1.442695
        %v1389 = vpow.pop %v1388
        %v1390 = vmul.f32 %v1387, 1.442695
        %v1391 = vpow.pop %v1390
        %v1392 = vsel %vm616, %v1389, 0.0
        %1393 = vadd.xlane.f32.xlu0 %v1392
        %v1394 = vpop.xlane.xlu0 %1393
        %v1395 = vsel %vm616, %v1391, 0.0
        %1396 = vadd.xlane.f32.xlu0 %v1395
        %v1397 = vpop.xlane.xlu0 %1396
        %v1398 = vrcp.pop %v1394
        %v1399 = vrcp.pop %v1397
        %v1400 = vmul.f32 %v1389, %v1398
        %v1401 = vmul.f32 %v1391, %v1399
        %v1402 = vpack.c.bf16 %v1400, %v1400
        %v1403 = vpack.c.bf16 %v1401, %v1401
        %1404 = vrot.lane.b32.xlu0 %v612, 40
        %v1405 = vpop.permute.xlu0 %1404
        %v1407 = vsel %vm616, %v1402, 0
        %v1410 = vsel %vm742, %v1405, 0
        %1412 = vmatprep.subr.bf16.mxu0 0
        %1413 = vmatpush1.bf16.msra.mxu0 %v1410
        %1414 = vmatprep.subr.bf16.mxu0 0
        %1415 = vmatpush1.bf16.msra.mxu0 0
        %1416 = vmatprep.subr.bf16.mxu0 0
        %1417 = vmatpush1.bf16.msra.mxu0 0
        %1418 = vmatprep.subr.bf16.mxu0 0
        %1419 = vmatpush1.bf16.msra.mxu0 0
        %1420 = vmatprep.subr.bf16.mxu0 0
        %1421 = vmatpush1.bf16.msra.mxu0 0
        %1422 = vmatprep.subr.bf16.mxu0 0
        %1423 = vmatpush1.bf16.msra.mxu0 0
        %1424 = vmatprep.subr.bf16.mxu0 0
        %1425 = vmatpush1.bf16.msra.mxu0 0
        %1426 = vmatprep.subr.bf16.mxu0 0
        %1427 = vmatpush1.bf16.msra.mxu0 0
        %1428 = vmatprep.subr.bf16.mxu0 0
        %1429 = vmatpush1.bf16.msra.mxu0 0
        %1430 = vmatprep.subr.bf16.mxu0 0
        %1431 = vmatpush1.bf16.msra.mxu0 0
        %1432 = vmatprep.subr.bf16.mxu0 0
        %1433 = vmatpush1.bf16.msra.mxu0 0
        %1434 = vmatprep.subr.bf16.mxu0 0
        %1435 = vmatpush1.bf16.msra.mxu0 0
        %1436 = vmatprep.subr.bf16.mxu0 0
        %1437 = vmatpush1.bf16.msra.mxu0 0
        %1438 = vmatprep.subr.bf16.mxu0 0
        %1439 = vmatpush1.bf16.msra.mxu0 0
        %1440 = vmatprep.subr.bf16.mxu0 0
        %1441 = vmatpush1.bf16.msra.mxu0 0
        %1442 = vmatprep.subr.bf16.mxu0 0
        %1443 = vmatpush1.bf16.msra.mxu0 0
        %1444 = vmatprep.mubr.bf16.mxu0 0
        %1445 = vmatmul.mubr.bf16.gmra.mrb[0].mxu0 %v1407
        %v1446 = vpop.f32.mrb[0].mxu0
        %v1447 = vadd.f32 0.0, %v1446
        %v1448 = vpop.f32.mrb[0].mxu0
        %v1449 = vpop.f32.mrb[0].mxu0
        %v1450 = vpop.f32.mrb[0].mxu0
        %1451 = vdwg.mxu0
        %1452 = vrot.lane.b32.xlu0 %v613, 40
        %v1453 = vpop.permute.xlu0 %1452
        %v1455 = vsel %vm616, %v1403, 0
        %v1458 = vsel %vm742, %v1453, 0
        %1460 = vmatprep.subr.bf16.mxu0 0
        %1461 = vmatpush1.bf16.msra.mxu0 %v1458
        %1462 = vmatprep.subr.bf16.mxu0 0
        %1463 = vmatpush1.bf16.msra.mxu0 0
        %1464 = vmatprep.subr.bf16.mxu0 0
        %1465 = vmatpush1.bf16.msra.mxu0 0
        %1466 = vmatprep.subr.bf16.mxu0 0
        %1467 = vmatpush1.bf16.msra.mxu0 0
        %1468 = vmatprep.subr.bf16.mxu0 0
        %1469 = vmatpush1.bf16.msra.mxu0 0
        %1470 = vmatprep.subr.bf16.mxu0 0
        %1471 = vmatpush1.bf16.msra.mxu0 0
        %1472 = vmatprep.subr.bf16.mxu0 0
        %1473 = vmatpush1.bf16.msra.mxu0 0
        %1474 = vmatprep.subr.bf16.mxu0 0
        %1475 = vmatpush1.bf16.msra.mxu0 0
        %1476 = vmatprep.subr.bf16.mxu0 0
        %1477 = vmatpush1.bf16.msra.mxu0 0
        %1478 = vmatprep.subr.bf16.mxu0 0
        %1479 = vmatpush1.bf16.msra.mxu0 0
        %1480 = vmatprep.subr.bf16.mxu0 0
        %1481 = vmatpush1.bf16.msra.mxu0 0
        %1482 = vmatprep.subr.bf16.mxu0 0
        %1483 = vmatpush1.bf16.msra.mxu0 0
        %1484 = vmatprep.subr.bf16.mxu0 0
        %1485 = vmatpush1.bf16.msra.mxu0 0
        %1486 = vmatprep.subr.bf16.mxu0 0
        %1487 = vmatpush1.bf16.msra.mxu0 0
        %1488 = vmatprep.subr.bf16.mxu0 0
        %1489 = vmatpush1.bf16.msra.mxu0 0
        %1490 = vmatprep.subr.bf16.mxu0 0
        %1491 = vmatpush1.bf16.msra.mxu0 0
        %1492 = vmatprep.mubr.bf16.mxu0 0
        %1493 = vmatmul.mubr.bf16.gmra.mrb[0].mxu0 %v1455
        %v1494 = vpop.f32.mrb[0].mxu0
        %v1495 = vadd.f32 0.0, %v1494
        %v1496 = vpop.f32.mrb[0].mxu0
        %v1497 = vpop.f32.mrb[0].mxu0
        %v1498 = vpop.f32.mrb[0].mxu0
        %1499 = vdwg.mxu0
        %1502 = vrot.lane.b32.xlu0 %v1003, 8
        %v1503 = vpop.permute.xlu0 %1502
        %1504 = vrot.lane.b32.xlu0 %v1051, 8
        %v1505 = vpop.permute.xlu0 %1504
        %1510 = vrot.lane.b32.xlu0 %v1225, 16
        %v1511 = vpop.permute.xlu0 %1510
        %1512 = vrot.lane.b32.xlu0 %v1273, 16
        %v1513 = vpop.permute.xlu0 %1512
        %1518 = vrot.lane.b32.xlu0 %v1447, 24
        %v1519 = vpop.permute.xlu0 %1518
        %1520 = vrot.lane.b32.xlu0 %v1495, 24
        %v1521 = vpop.permute.xlu0 %1520
        %v1524 = vsel %vm616, %v781, %v1503
        %v1525 = vsel %vm616, %v829, %v1505
        %vm1526 = vcmask 130048
        %v1527 = vsel %vm1526, %v1524, %v1511
        %v1528 = vsel %vm1526, %v1525, %v1513
        %vm1529 = vcmask 195584
        %v1530 = vsel %vm1529, %v1527, %v1519
        %v1531 = vsel %vm1529, %v1528, %v1521
        %v1532 = vpack.c.bf16 %v1531, %v1530
        %v1533 = vld [vmem:[%s449] sm:$0xf]
        %v1534 = vld [vmem:[%s449 + $0x4] sm:$0xf]
        %v1535 = vld [vmem:[%s449 + $0x8] sm:$0xf]
        %v1536 = vld [vmem:[%s449 + $0xc] sm:$0xf]
        %v1537 = vlaneseq
        %v1538 = vshrl.u32 %v1537, 7
        %v1539 = vsub.s32 1, %v1538
        %v1540 = vrot.slane %v542, %v1539
        %v1545 = vunpack.c.l.b16 %v1533
        %v1546 = vunpack.c.l.b16 %v1534
        %v1547 = vunpack.c.l.b16 %v1535
        %v1548 = vunpack.c.l.b16 %v1536
        %v1549 = vpack.c.b16 %v1546, %v1545
        %v1550 = vpack.c.b16 %v1548, %v1547
        %v1554 = vsel %vm563, %v1532, 0
        %1556 = vmatprep.subr.bf16.mxu0 0
        %1557 = vmatpush1.bf16.msra.mxu0 %v1549
        %1558 = vmatprep.subr.bf16.mxu0 0
        %1559 = vmatpush1.bf16.msra.mxu0 %v1550
        %1560 = vmatprep.subr.bf16.mxu0 0
        %1561 = vmatpush1.bf16.msra.mxu0 0
        %1562 = vmatprep.subr.bf16.mxu0 0
        %1563 = vmatpush1.bf16.msra.mxu0 0
        %1564 = vmatprep.subr.bf16.mxu0 0
        %1565 = vmatpush1.bf16.msra.mxu0 0
        %1566 = vmatprep.subr.bf16.mxu0 0
        %1567 = vmatpush1.bf16.msra.mxu0 0
        %1568 = vmatprep.subr.bf16.mxu0 0
        %1569 = vmatpush1.bf16.msra.mxu0 0
        %1570 = vmatprep.subr.bf16.mxu0 0
        %1571 = vmatpush1.bf16.msra.mxu0 0
        %1572 = vmatprep.subr.bf16.mxu0 0
        %1573 = vmatpush1.bf16.msra.mxu0 0
        %1574 = vmatprep.subr.bf16.mxu0 0
        %1575 = vmatpush1.bf16.msra.mxu0 0
        %1576 = vmatprep.subr.bf16.mxu0 0
        %1577 = vmatpush1.bf16.msra.mxu0 0
        %1578 = vmatprep.subr.bf16.mxu0 0
        %1579 = vmatpush1.bf16.msra.mxu0 0
        %1580 = vmatprep.subr.bf16.mxu0 0
        %1581 = vmatpush1.bf16.msra.mxu0 0
        %1582 = vmatprep.subr.bf16.mxu0 0
        %1583 = vmatpush1.bf16.msra.mxu0 0
        %1584 = vmatprep.subr.bf16.mxu0 0
        %1585 = vmatpush1.bf16.msra.mxu0 0
        %1586 = vmatprep.subr.bf16.mxu0 0
        %1587 = vmatpush1.bf16.msra.mxu0 0
        %1588 = vmatprep.mubr.bf16.mxu0 0
        %1589 = vmatmul.mubr.bf16.gmra.mrb[0].mxu0 %v1554
        %v1590 = vpop.f32.mrb[0].mxu0
        %v1591 = vadd.f32 %v1540, %v1590
        %v1592 = vpop.f32.mrb[0].mxu0
        %v1593 = vpop.f32.mrb[0].mxu0
        %v1594 = vadd.f32 %v1540, %v1593
        %v1595 = vpop.f32.mrb[0].mxu0
        %1596 = vdwg.mxu0
        %v1597 = vadd.f32 %v539, %v1591
        %v1598 = vadd.f32 %v540, %v1594
        %v1599 = vsel %vm563, %v1597, 0.0
        %1600 = vadd.xlane.f32.xlu0 %v1599
        %v1601 = vpop.xlane.xlu0 %1600
        %v1602 = vsel %vm563, %v1598, 0.0
        %1603 = vadd.xlane.f32.xlu0 %v1602
        %v1604 = vpop.xlane.xlu0 %1603
        %v1605 = vrcp.pop 32.0
        %v1606 = vmul.f32 %v1601, %v1605
        %v1607 = vmul.f32 %v1604, %v1605
        %v1608 = vsub.f32 %v1597, %v1606
        %v1609 = vsub.f32 %v1598, %v1607
        %v1610 = vmul.f32 %v1608, %v1608
        %v1611 = vmul.f32 %v1609, %v1609
        %v1612 = vsel %vm563, %v1610, 0.0
        %1613 = vadd.xlane.f32.xlu0 %v1612
        %v1614 = vpop.xlane.xlu0 %1613
        %v1615 = vsel %vm563, %v1611, 0.0
        %1616 = vadd.xlane.f32.xlu0 %v1615
        %v1617 = vpop.xlane.xlu0 %1616
        %v1618 = vmul.f32 %v1614, %v1605
        %v1619 = vmul.f32 %v1617, %v1605
        %v1620 = vadd.f32 %v1618, 1e-05
        %v1621 = vadd.f32 %v1619, 1e-05
        %v1622 = vrsqrt.pop %v1620
        %v1623 = vrsqrt.pop %v1621
        %v1624 = vmul.f32 %v1608, %v1622
        %v1625 = vmul.f32 %v1609, %v1623
        %v1626 = vlaneseq
        %v1627 = vshrl.u32 %v1626, 7
        %v1628 = vsub.s32 2, %v1627
        %v1629 = vrot.slane %v542, %v1628
        %v1630 = vmul.f32 %v1624, %v1629
        %v1631 = vmul.f32 %v1625, %v1629
        %v1632 = vlaneseq
        %v1633 = vshrl.u32 %v1632, 7
        %v1634 = vsub.s32 3, %v1633
        %v1635 = vrot.slane %v542, %v1634
        %v1636 = vadd.f32 %v1630, %v1635
        %v1637 = vadd.f32 %v1631, %v1635
        %v1638 = vpack.c.bf16 %v1637, %v1636
        %v1639 = vld [vmem:[%s454] sm:$0xf]
        %v1640 = vld [vmem:[%s454 + $0x4] sm:$0xf]
        %v1641 = vld [vmem:[%s454 + $0x8] sm:$0xf]
        %v1642 = vld [vmem:[%s454 + $0xc] sm:$0xf]
        %v1643 = vlaneseq
        %v1644 = vshrl.u32 %v1643, 7
        %v1645 = vsub.s32 4, %v1644
        %v1646 = vrot.slane %v542, %v1645
        %v1651 = vunpack.c.l.b16 %v1639
        %v1652 = vunpack.c.l.b16 %v1640
        %v1653 = vunpack.c.l.b16 %v1641
        %v1654 = vunpack.c.l.b16 %v1642
        %v1655 = vpack.c.b16 %v1652, %v1651
        %v1656 = vpack.c.b16 %v1654, %v1653
        %v1660 = vsel %vm563, %v1638, 0
        %1662 = vmatprep.subr.bf16.mxu0 0
        %1663 = vmatpush1.bf16.msra.mxu0 %v1655
        %1664 = vmatprep.subr.bf16.mxu0 0
        %1665 = vmatpush1.bf16.msra.mxu0 %v1656
        %1666 = vmatprep.subr.bf16.mxu0 0
        %1667 = vmatpush1.bf16.msra.mxu0 0
        %1668 = vmatprep.subr.bf16.mxu0 0
        %1669 = vmatpush1.bf16.msra.mxu0 0
        %1670 = vmatprep.subr.bf16.mxu0 0
        %1671 = vmatpush1.bf16.msra.mxu0 0
        %1672 = vmatprep.subr.bf16.mxu0 0
        %1673 = vmatpush1.bf16.msra.mxu0 0
        %1674 = vmatprep.subr.bf16.mxu0 0
        %1675 = vmatpush1.bf16.msra.mxu0 0
        %1676 = vmatprep.subr.bf16.mxu0 0
        %1677 = vmatpush1.bf16.msra.mxu0 0
        %1678 = vmatprep.subr.bf16.mxu0 0
        %1679 = vmatpush1.bf16.msra.mxu0 0
        %1680 = vmatprep.subr.bf16.mxu0 0
        %1681 = vmatpush1.bf16.msra.mxu0 0
        %1682 = vmatprep.subr.bf16.mxu0 0
        %1683 = vmatpush1.bf16.msra.mxu0 0
        %1684 = vmatprep.subr.bf16.mxu0 0
        %1685 = vmatpush1.bf16.msra.mxu0 0
        %1686 = vmatprep.subr.bf16.mxu0 0
        %1687 = vmatpush1.bf16.msra.mxu0 0
        %1688 = vmatprep.subr.bf16.mxu0 0
        %1689 = vmatpush1.bf16.msra.mxu0 0
        %1690 = vmatprep.subr.bf16.mxu0 0
        %1691 = vmatpush1.bf16.msra.mxu0 0
        %1692 = vmatprep.subr.bf16.mxu0 0
        %1693 = vmatpush1.bf16.msra.mxu0 0
        %1694 = vmatprep.mubr.bf16.mxu0 0
        %1695 = vmatmul.mubr.bf16.gmra.mrb[0].mxu0 %v1660
        %v1696 = vpop.f32.mrb[0].mxu0
        %v1697 = vadd.f32 %v1646, %v1696
        %v1698 = vpop.f32.mrb[0].mxu0
        %v1699 = vpop.f32.mrb[0].mxu0
        %v1700 = vadd.f32 %v1646, %v1699
        %v1701 = vpop.f32.mrb[0].mxu0
        %1702 = vdwg.mxu0
        %v1703 = vmax.f32 %v1697, 0.0
        %v1704 = vmax.f32 %v1700, 0.0
        %v1705 = vpack.c.bf16 %v1704, %v1703
        %v1706 = vld [vmem:[%s459] sm:$0xf]
        %v1707 = vld [vmem:[%s459 + $0x4] sm:$0xf]
        %v1708 = vld [vmem:[%s459 + $0x8] sm:$0xf]
        %v1709 = vld [vmem:[%s459 + $0xc] sm:$0xf]
        %v1710 = vld [vmem:[%s459 + $0x10] sm:$0xf]
        %v1711 = vld [vmem:[%s459 + $0x14] sm:$0xf]
        %v1712 = vld [vmem:[%s459 + $0x18] sm:$0xf]
        %v1713 = vld [vmem:[%s459 + $0x1c] sm:$0xf]
        %v1714 = vlaneseq
        %v1715 = vshrl.u32 %v1714, 7
        %v1716 = vsub.s32 5, %v1715
        %v1717 = vrot.slane %v542, %v1716
        %v1726 = vunpack.c.l.b16 %v1706
        %v1727 = vunpack.c.l.b16 %v1707
        %v1728 = vunpack.c.l.b16 %v1708
        %v1729 = vunpack.c.l.b16 %v1709
        %v1730 = vunpack.c.l.b16 %v1710
        %v1731 = vunpack.c.l.b16 %v1711
        %v1732 = vunpack.c.l.b16 %v1712
        %v1733 = vunpack.c.l.b16 %v1713
        %v1734 = vpack.c.b16 %v1727, %v1726
        %v1735 = vpack.c.b16 %v1729, %v1728
        %v1736 = vpack.c.b16 %v1731, %v1730
        %v1737 = vpack.c.b16 %v1733, %v1732
        %vm1742 = vcmask 523264
        %v1744 = vsel %vm1742, %v1705, 0
        %1746 = vmatprep.subr.bf16.mxu0 0
        %1747 = vmatpush1.bf16.msra.mxu0 %v1734
        %1748 = vmatprep.subr.bf16.mxu0 0
        %1749 = vmatpush1.bf16.msra.mxu0 %v1735
        %1750 = vmatprep.subr.bf16.mxu0 0
        %1751 = vmatpush1.bf16.msra.mxu0 %v1736
        %1752 = vmatprep.subr.bf16.mxu0 0
        %1753 = vmatpush1.bf16.msra.mxu0 %v1737
        %1754 = vmatprep.subr.bf16.mxu0 0
        %1755 = vmatpush1.bf16.msra.mxu0 0
        %1756 = vmatprep.subr.bf16.mxu0 0
        %1757 = vmatpush1.bf16.msra.mxu0 0
        %1758 = vmatprep.subr.bf16.mxu0 0
        %1759 = vmatpush1.bf16.msra.mxu0 0
        %1760 = vmatprep.subr.bf16.mxu0 0
        %1761 = vmatpush1.bf16.msra.mxu0 0
        %1762 = vmatprep.subr.bf16.mxu0 0
        %1763 = vmatpush1.bf16.msra.mxu0 0
        %1764 = vmatprep.subr.bf16.mxu0 0
        %1765 = vmatpush1.bf16.msra.mxu0 0
        %1766 = vmatprep.subr.bf16.mxu0 0
        %1767 = vmatpush1.bf16.msra.mxu0 0
        %1768 = vmatprep.subr.bf16.mxu0 0
        %1769 = vmatpush1.bf16.msra.mxu0 0
        %1770 = vmatprep.subr.bf16.mxu0 0
        %1771 = vmatpush1.bf16.msra.mxu0 0
        %1772 = vmatprep.subr.bf16.mxu0 0
        %1773 = vmatpush1.bf16.msra.mxu0 0
        %1774 = vmatprep.subr.bf16.mxu0 0
        %1775 = vmatpush1.bf16.msra.mxu0 0
        %1776 = vmatprep.subr.bf16.mxu0 0
        %1777 = vmatpush1.bf16.msra.mxu0 0
        %1778 = vmatprep.mubr.bf16.mxu0 0
        %1779 = vmatmul.mubr.bf16.gmra.mrb[0].mxu0 %v1744
        %v1780 = vpop.f32.mrb[0].mxu0
        %v1781 = vadd.f32 %v1717, %v1780
        %v1782 = vpop.f32.mrb[0].mxu0
        %v1783 = vpop.f32.mrb[0].mxu0
        %v1784 = vadd.f32 %v1717, %v1783
        %v1785 = vpop.f32.mrb[0].mxu0
        %1786 = vdwg.mxu0
        %v1787 = vadd.f32 %v1636, %v1781
        %v1788 = vadd.f32 %v1637, %v1784
        %v1789 = vsel %vm563, %v1787, 0.0
        %1790 = vadd.xlane.f32.xlu0 %v1789
        %v1791 = vpop.xlane.xlu0 %1790
        %v1792 = vsel %vm563, %v1788, 0.0
        %1793 = vadd.xlane.f32.xlu0 %v1792
        %v1794 = vpop.xlane.xlu0 %1793
        %v1795 = vmul.f32 %v1791, %v1605
        %v1796 = vmul.f32 %v1794, %v1605
        %v1797 = vsub.f32 %v1787, %v1795
        %v1798 = vsub.f32 %v1788, %v1796
        %v1799 = vmul.f32 %v1797, %v1797
        %v1800 = vmul.f32 %v1798, %v1798
        %v1801 = vsel %vm563, %v1799, 0.0
        %1802 = vadd.xlane.f32.xlu0 %v1801
        %v1803 = vpop.xlane.xlu0 %1802
        %v1804 = vsel %vm563, %v1800, 0.0
        %1805 = vadd.xlane.f32.xlu0 %v1804
        %v1806 = vpop.xlane.xlu0 %1805
        %v1807 = vmul.f32 %v1803, %v1605
        %v1808 = vmul.f32 %v1806, %v1605
        %v1809 = vadd.f32 %v1807, 1e-05
        %v1810 = vadd.f32 %v1808, 1e-05
        %v1811 = vrsqrt.pop %v1809
        %v1812 = vrsqrt.pop %v1810
        %v1813 = vmul.f32 %v1797, %v1811
        %v1814 = vmul.f32 %v1798, %v1812
        %v1815 = vlaneseq
        %v1816 = vshrl.u32 %v1815, 7
        %v1817 = vsub.s32 6, %v1816
        %v1818 = vrot.slane %v542, %v1817
        %v1819 = vmul.f32 %v1813, %v1818
        %v1820 = vmul.f32 %v1814, %v1818
        %v1821 = vlaneseq
        %v1822 = vshrl.u32 %v1821, 7
        %v1823 = vsub.s32 7, %v1822
        %v1824 = vrot.slane %v542, %v1823
        %v1825 = vadd.f32 %v1819, %v1824
        %v1826 = vadd.f32 %v1820, %v1824
        %1827 = vst.msk [vmem:[#allocation2] sm:$0xff] %vm563, %v1825
        %1828 = vst.msk [vmem:[#allocation2 + $0x8] sm:$0xff] %vm563, %v1826
        %p1829 = scmp.eq.s32.totalorder %s28, 1
        // Predicated region
        $region73: #{tpu_custom_call.1} parent=55 // pred_check
          %p1830 = pneg %p1829
        $region74: #{tpu_custom_call.1} parent=55 // pred_check_branch
          %1832 = sbr.rel (%p1830) target = $region76
        $region75: #{tpu_custom_call.1} parent=55 // pred_region
          %v1833 = vsel %vm563, %v1825, 0.0
          %v1834 = vrot.slane %v1833, 4
          %v1835 = vadd.f32 %v1833, %v1834
          %v1836 = vrot.slane %v1835, 2
          %v1837 = vadd.f32 %v1835, %v1836
          %v1838 = vrot.slane %v1837, 1
          %v1839 = vadd.f32 %v1837, %v1838
          %v1840 = vsel %vm563, %v1826, 0.0
          %v1841 = vrot.slane %v1840, 4
          %v1842 = vadd.f32 %v1840, %v1841
          %v1843 = vrot.slane %v1842, 2
          %v1844 = vadd.f32 %v1842, %v1843
          %v1845 = vrot.slane %v1844, 1
          %v1846 = vadd.f32 %v1844, %v1845
          %v1847 = vrcp.pop 8.0
          %v1848 = vmul.f32 %v1839, %v1847
          %v1849 = vmul.f32 %v1846, %v1847
          %vm1850 = vcmask 253952
          %1851 = vst.msk [vmem:[#allocation9] sm:$0x1] %vm1850, %v1848
          %1852 = vst.msk [vmem:[#allocation9 + $0x1] sm:$0x1] %vm1850, %v1849
        $region76: #{tpu_custom_call.1} parent=55 // pred_fallthru
          _
        // Predicated region
        $region77: #{tpu_custom_call.1} parent=55 // pred_check
          %p1853 = pneg %p272
        $region78: #{tpu_custom_call.1} parent=55 // pred_check_branch
          %1855 = sbr.rel (%p1853) target = $region80
        $region79: #{tpu_custom_call.1} parent=55 // pred_region
          %s1856 = smul.u32 2, %s27
          %s1858 = ssub.s32 32, 32
          %1859 = vsyncadd [#allocation5], %s1858
          %s1860 = smul.addr %s1856, 16
          %s1861 = scalar_lea.hbm %s9, %s1860
          %s1862 = sshll.u32 [#allocation9], 4
          %s1863 = int_to_ptr.vmem [resolvable:$true] %s1862
          %1868 = dma.vmem_to_hbm [thread:$0]  %s1863, 32, %s1861, [#allocation5], 16, 16, 1
        $region80: #{tpu_custom_call.1} parent=55 // pred_fallthru
          _
        // Predicated region
        $region81: #{tpu_custom_call.1} parent=55 // pred_check
          %p1869 = pneg %p272
        $region82: #{tpu_custom_call.1} parent=55 // pred_check_branch
          %1871 = sbr.rel (%p1869) target = $region84
        $region83: #{tpu_custom_call.1} parent=55 // pred_region
          %1872 = dma.done [#allocation5], 32
        $region84: #{tpu_custom_call.1} parent=55 // pred_fallthru
          _
      $region56: #{tpu_custom_call.1} parent=5 // pred_fallthru
        _
      %p1873 = scmp.le.s32.totalorder 2, %s18
      // Predicated region
      $region85: #{tpu_custom_call.1} parent=5 // pred_check
        %p1874 = pneg %p1873
      $region86: #{tpu_custom_call.1} parent=5 // pred_check_branch
        %1876 = sbr.rel (%p1874) target = $region88
      $region87: #{tpu_custom_call.1} parent=5 // pred_region
        %s1877 = ssub.s32 %s18, 2
      $region88: #{tpu_custom_call.1} parent=5 // pred_fallthru
        _
    $region6: #{tpu_custom_call.1} parent=1 // loop_footer
      %s22 = sadd.s32 1, %s18
    $region7: #{tpu_custom_call.1} parent=1 // loop_footer_branch
      %17 = sbr.rel target = $region3
    $region8: #{tpu_custom_call.1} parent=1 // loop_exit
      _
    %1878 = vsyncpa [#allocation4], 1
    %s1879 = scalar_lea.sflag [#allocation4], 1
    %1880 = vsyncpa %s1879, 1
    %1881 = vsyncpa [#allocation7], 1
    %1882 = vsyncpa [#allocation5], 1
    %s1883 = scalar_lea.sflag [#allocation5], 1
    %1884 = vsyncpa %s1883, 1

</llo_original>
